<compile_context>
chip_gen: v6e
topology: v6e:2x2x1
jax: 0.10.0
libtpu: 0.0.40
codegen_flags: <defaults>
</compile_context>

<pallas_src>
import functools
import math

import jax
import jax.numpy as jnp
from jax.experimental import pallas as pl
from jax.experimental.pallas import tpu as pltpu

_SQRT1_2 = 0.7071067811865476
_SQRT_2_OVER_PI = 0.7978845608028654


# ---------------------------------------------------------------------------
# In-kernel helpers (trace into the Pallas kernel body).
# ---------------------------------------------------------------------------
def _erf_approx(x):
    # Abramowitz & Stegun 7.1.26, |err| < 1.5e-7 -> exact GELU to f32 precision.
    p = 0.3275911
    a1, a2, a3, a4, a5 = (0.254829592, -0.284496736, 1.421413741,
                          -1.453152027, 1.061405429)
    ax = jnp.abs(x)
    t = 1.0 / (1.0 + p * ax)
    poly = ((((a5 * t + a4) * t + a3) * t + a2) * t + a1) * t
    y = 1.0 - poly * jnp.exp(-ax * ax)
    return jnp.where(x >= 0.0, y, -y)


def _gelu_exact(x):
    # PyTorch nn.GELU() default (exact, erf-based).
    return 0.5 * x * (1.0 + _erf_approx(x * _SQRT1_2))


def _gelu_tanh(x):
    # tanh GELU: ~5 VALU ops + one EUP tanh (production fast path).
    return 0.5 * x * (1.0 + jnp.tanh(_SQRT_2_OVER_PI * (x + 0.044715 * x * x * x)))


def _nan_to_num(x):
    # torch.nan_to_num defaults: nan->0, +inf->f32 max, -inf->f32 min.
    big = jnp.float32(jnp.finfo(jnp.float32).max)
    x = jnp.where(jnp.isnan(x), jnp.float32(0.0), x)
    return jnp.clip(x, -big, big)


def _shift_rows(x, d, rows, n):
    """x viewed as row-blocks of length n stacked on the sublane axis of a
    (M, C) slab: return x[r + d] within each block, zeros outside the block.

    Implemented as a pltpu.roll (XLU slot) + boundary mask — no concatenated
    padded buffers, no sublane-misaligned slice copies.  The mask also zeroes
    the rows that would leak across batch-block boundaries of the merged view.
    """
    if abs(d) >= n:
        return jnp.zeros_like(x)
    m = x.shape[0]
    rolled = pltpu.roll(x, shift=(-d) % m, axis=0)        # rolled[i] = x[(i+d) % m]
    mask = (rows < n - d) if d > 0 else (rows >= -d)
    return jnp.where(mask, rolled, 0.0)


def _dual_conv(x, wa, wb, pad, rows, n):
    """Two depthwise convs along N over the SAME input (grouped Conv1d C->2C):
    each shifted tap feeds both weight sets (one roll, two FMAs)."""
    oa = x * wa[pad:pad + 1, :]
    ob = x * wb[pad:pad + 1, :]
    for t in range(2 * pad + 1):                          # K is tiny (3 or 5)
        if t == pad:
            continue
        s = _shift_rows(x, t - pad, rows, n)
        oa = oa + s * wa[t:t + 1, :]
        ob = ob + s * wb[t:t + 1, :]
    return oa, ob


def _conv_sum(xa, wa, xb, wb, pad, rows, n):
    """conv(xa, wa) + conv(xb, wb) fused into one accumulator (the grouped
    Conv1d(2C -> C) of the noise-reduction path)."""
    o = xa * wa[pad:pad + 1, :] + xb * wb[pad:pad + 1, :]
    for t in range(2 * pad + 1):
        if t == pad:
            continue
        d = t - pad
        o = o + _shift_rows(xa, d, rows, n) * wa[t:t + 1, :]
        o = o + _shift_rows(xb, d, rows, n) * wb[t:t + 1, :]
    return o


def _conv(x, w, pad, rows, n):
    """Single depthwise conv along N (high-freq-preserve path)."""
    o = x * w[pad:pad + 1, :]
    for t in range(2 * pad + 1):
        if t == pad:
            continue
        o = o + _shift_rows(x, t - pad, rows, n) * w[t:t + 1, :]
    return o


def _median_rows(e):
    """torch.quantile(., 0.5, dim=1, keepdim=True) per batch row of the block.

    e: (Bb, N, 1) strictly positive -> (Bb, 1, 1).  Value-only counting
    selection: int32 less / less-equal counts (chunked along the compare axis
    so the live compare tensor stays bounded) and an order-statistic pick.
    No (Bb, N, N) iota tensors, no serial min-extraction.
    """
    bb, n, _ = e.shape
    pos = 0.5 * (n - 1)
    k_lo = int(math.floor(pos))
    k_hi = int(math.ceil(pos))
    frac = jnp.float32(pos - k_lo)

    e_row = jnp.swapaxes(e, 1, 2)                         # (Bb, 1, N)
    chunk = min(n, 256)
    c_lt = jnp.zeros((bb, n, 1), jnp.int32)
    c_le = jnp.zeros((bb, n, 1), jnp.int32)
    for j0 in range(0, n, chunk):                         # static trip count
        ej = jax.lax.slice_in_dim(e_row, j0, min(j0 + chunk, n), axis=2)
        c_lt = c_lt + jnp.sum((ej < e).astype(jnp.int32), axis=2, keepdims=True)
        c_le = c_le + jnp.sum((ej <= e).astype(jnp.int32), axis=2, keepdims=True)

    def order_stat(k):
        # All elements satisfying the condition equal the k-th order statistic,
        # and e > 0, so a max over the masked values extracts it.
        sel = (c_lt <= k) & (c_le > k)
        return jnp.max(jnp.where(sel, e, 0.0), axis=1, keepdims=True)   # (Bb,1,1)

    m_lo = order_stat(k_lo)
    m_hi = m_lo if k_hi == k_lo else order_stat(k_hi)
    return (1.0 - frac) * m_lo + frac * m_hi


# ---------------------------------------------------------------------------
# The Pallas kernel: one block of `Bb` batch elements per grid step.
# ---------------------------------------------------------------------------
def _afdb_kernel(x_ref, dctT_ref, dct_ref, wh_ref, wl_ref,
                 w1a_ref, w1b_ref, b1a_ref, b1b_ref,
                 w2a_ref, w2b_ref, b2_ref,
                 w3_ref, b3_ref, scal_ref, o_ref, *, fast):
    bb, n, c = x_ref.shape
    m = bb * n
    mm_dtype = jnp.bfloat16 if fast else jnp.float32
    prec = None if fast else jax.lax.Precision.HIGHEST
    gelu = _gelu_tanh if fast else _gelu_exact

    # Row index within each batch segment of the merged (m, C) view.  Built
    # once (JAX does not CSE broadcasts) and shared by every conv tap mask.
    rows = jax.lax.broadcasted_iota(jnp.int32, (bb, n, 1), 1).reshape(m, 1)

    # DCT-II (ortho) along C: a single (m, C) x (C, C) MXU matmul.  In fast
    # mode both operands are bf16 with f32 accumulation (one MXU pass).
    x2 = x_ref[...].reshape(m, c).astype(mm_dtype)
    x_dct = jnp.dot(x2, dctT_ref[...], precision=prec,
                    preferred_element_type=jnp.float32)              # (m, C) f32

    # multi_scale_dct: sum_i sigmoid(w_i) pre-summed host-side into wh / wl.
    x_high = x_dct * wh_ref[...]

    # create_adaptive_mask: shared energy, per-batch-row median, thresholds
    # pre-scaled by 10 host-side so each mask is one FMA + sigmoid.
    energy = jnp.sum(x_high * x_high, axis=-1, keepdims=True)        # (m, 1)
    e3 = energy.reshape(bb, n, 1)
    median = _median_rows(e3 + 1e-8)                                  # (bb, 1, 1)
    inv_med = (pl.reciprocal(median + 1e-6, approx=True) if fast
               else 1.0 / (median + 1e-6))
    scale3 = 10.0 * inv_med
    reg_mask = jax.nn.sigmoid(e3 * scale3 - scal_ref[0]).reshape(m, 1)
    cls_mask = jax.nn.sigmoid(e3 * scale3 - scal_ref[1]).reshape(m, 1)

    # Regression path: Conv1d(C->2C,k=5,groups=C) -> GELU -> Conv1d(2C->C,k=3,groups=C).
    h0, h1 = _dual_conv(x_high * reg_mask, w1a_ref[...], w1b_ref[...], 2, rows, n)
    g0 = gelu(h0 + b1a_ref[...])                                      # out ch 2c
    g1 = gelu(h1 + b1b_ref[...])                                      # out ch 2c+1

    # x_low evaluated lazily; the second conv's weights/bias were pre-scaled by
    # sigmoid(task_balance) host-side, so its taps accumulate straight into the
    # blend (no separate x_high_reg tensor, no blend multiply).
    x_comb = x_dct * wl_ref[...]
    x_comb = (x_comb
              + _conv_sum(g0, w2a_ref[...], g1, w2b_ref[...], 1, rows, n)
              + b2_ref[...])

    # Classification path: depthwise Conv1d(C->C,k=3) -> GELU, weighted by (1-balance).
    x_cls = gelu(_conv(x_high * cls_mask, w3_ref[...], 1, rows, n) + b3_ref[...])
    x_comb = x_comb + scal_ref[2] * x_cls

    # Inverse DCT (ortho) along C + fused nan_to_num epilogue.
    # NOTE: PyTorch only applies nan_to_num when NaNs are present; applying it
    # unconditionally is identical for finite outputs (and also clamps ±inf).
    out2 = jnp.dot(x_comb.astype(mm_dtype), dct_ref[...], precision=prec,
                   preferred_element_type=jnp.float32)
    o_ref[...] = _nan_to_num(out2).reshape(bb, n, c)


# ---------------------------------------------------------------------------
# Glue: parameter construction / layout conversion / pallas_call wrapper.
# ---------------------------------------------------------------------------
def dct_matrix(n):
    """Orthonormal DCT-II matrix D (n, n):  X = D @ x  (torch_dct norm='ortho')."""
    k = jnp.arange(n, dtype=jnp.float32)[:, None]
    i = jnp.arange(n, dtype=jnp.float32)[None, :]
    m = jnp.sqrt(2.0 / n) * jnp.cos(jnp.pi * (2.0 * i + 1.0) * k / (2.0 * n))
    m = m.at[0, :].multiply(1.0 / jnp.sqrt(2.0))
    return m


def init_params(key, dim, scale_levels=3):
    ks = jax.random.split(key, 12)
    p = {}
    p["weights_high"] = [0.02 * jax.random.normal(ks[i], (dim,), jnp.float32)
                         for i in range(scale_levels)]
    p["weights_low"] = [0.02 * jax.random.normal(ks[scale_levels + i], (dim,), jnp.float32)
                        for i in range(scale_levels)]
    p["task_balance"] = jnp.array([0.5], jnp.float32)
    p["reg_threshold"] = jnp.array([0.3], jnp.float32)
    p["cls_threshold"] = jnp.array([0.5], jnp.float32)
    # noise_reduction: Conv1d(dim, 2*dim, k=5, pad=2, groups=dim) -> GELU ->
    #                  Conv1d(2*dim, dim, k=3, pad=1, groups=dim)
    p["nr_w1"] = 0.2 * jax.random.normal(ks[6], (2 * dim, 1, 5), jnp.float32)
    p["nr_b1"] = 0.1 * jax.random.normal(ks[7], (2 * dim,), jnp.float32)
    p["nr_w2"] = 0.2 * jax.random.normal(ks[8], (dim, 2, 3), jnp.float32)
    p["nr_b2"] = 0.1 * jax.random.normal(ks[9], (dim,), jnp.float32)
    # high_freq_preserve: Conv1d(dim, dim, k=3, pad=1, groups=dim) -> GELU
    p["hf_w"] = 0.2 * jax.random.normal(ks[10], (dim, 1, 3), jnp.float32)
    p["hf_b"] = 0.1 * jax.random.normal(ks[11], (dim,), jnp.float32)
    return p


def _kernel_args(p, dim, c_pad, mm_dtype):
    """Repack PyTorch-layout params into channel-last, lane-padded slabs."""
    d = dct_matrix(dim)
    pad2 = ((0, c_pad - dim), (0, c_pad - dim))
    dT = jnp.pad(d.T, pad2).astype(mm_dtype)              # x @ dT  = DCT(x)
    dd = jnp.pad(d, pad2).astype(mm_dtype)                # y @ dd  = IDCT(y)

    def padc(a):                                          # zero-pad channel dim
        return jnp.pad(a, [(0, 0)] * (a.ndim - 1) + [(0, c_pad - dim)])

    wh = padc(sum(jax.nn.sigmoid(w) for w in p["weights_high"]).reshape(1, dim))
    wl = padc(sum(jax.nn.sigmoid(w) for w in p["weights_low"]).reshape(1, dim))
    # PyTorch grouped-conv weight (Cout, Cin/groups, K) -> channel-last (K, C).
    w1 = p["nr_w1"][:, 0, :]                              # (2C, 5)
    w1a = padc(w1[0::2, :].T)                             # (5, Cp)  out ch 2c
    w1b = padc(w1[1::2, :].T)                             # (5, Cp)  out ch 2c+1
    b1a = padc(p["nr_b1"][0::2][None, :])
    b1b = padc(p["nr_b1"][1::2][None, :])
    balance = jax.nn.sigmoid(p["task_balance"])[0]
    # Fold sigmoid(task_balance) into the second conv so its taps accumulate
    # straight into the blended output inside the kernel.
    w2a = padc(p["nr_w2"][:, 0, :].T) * balance           # (3, Cp)  in ch 2c
    w2b = padc(p["nr_w2"][:, 1, :].T) * balance           # (3, Cp)  in ch 2c+1
    b2 = padc(p["nr_b2"][None, :]) * balance
    w3 = padc(p["hf_w"][:, 0, :].T)                       # (3, Cp)
    b3 = padc(p["hf_b"][None, :])
    # 10*threshold pre-folded so each mask is one fused multiply-add + sigmoid.
    scal = jnp.stack([
        10.0 * jnp.clip(p["reg_threshold"], 0.1, 0.9)[0],
        10.0 * jnp.clip(p["cls_threshold"], 0.1, 0.9)[0],
        1.0 - balance,
    ]).astype(jnp.float32)
    return (dT, dd, wh, wl, w1a, w1b, b1a, b1b, w2a, w2b, b2, w3, b3, scal)


def _pick_block_b(B, N, c_pad, vmem_limit_bytes):
    """Batch elements per grid step: fill the MXU M dim and VMEM without
    overshooting the scoped budget, and keep >= 2 grid steps for megacore."""
    budget = int(0.75 * (vmem_limit_bytes or (32 * 1024 * 1024)))
    bytes_per_row = N * c_pad * 4
    live = 18                    # ~14 live (Bb,N,Cp) f32 temps + 2x2 in/out buffers
    bb_mem = max(1, budget // (live * bytes_per_row))
    bb_mxu = max(1, -(-256 // N))          # target >= 256 matmul rows per step
    bb = max(1, min(B, bb_mem, bb_mxu))
    if B >= 2:
        bb = max(1, min(bb, B // 2))       # >= 2 grid steps (v7x 2-TC split / overlap)
    while B % bb:                          # fall back to a divisor of B
        bb -= 1
    return bb


@functools.partial(jax.jit,
                   static_argnames=("block_b", "fast", "vmem_limit_bytes"))
def adaptive_freq_denoise_block(x, params, *, block_b=None, fast=True,
                                vmem_limit_bytes=48 * 1024 * 1024):
    """Forward pass of AdaptiveFreqDenoiseBlock.

    fast=True  (production): bf16 MXU DCT/IDCT (f32 accumulate), tanh GELU,
               approx reciprocal for the energy normalization.
    fast=False (parity):     f32 HIGHEST matmuls, exact-erf GELU — matches the
               f32 reference to ~1e-5.
    block_b:   batch elements per grid step; auto-sized against the VMEM budget
               if None (>= 2 grid steps kept whenever B >= 2).
    """
    B, N, C = x.shape
    if N % 8 != 0:
        # TODO(synk): pad N to a multiple of 8 with median-aware masking for
        # ragged sequence lengths; the reshapes/rolls assume 8-row alignment.
        raise ValueError(f"N (= {N}) must be a multiple of 8 (sublane tile).")

    c_pad = max(128, -(-C // 128) * 128)   # lane-dense channel axis
    mm_dtype = jnp.bfloat16 if fast else jnp.float32
    args = _kernel_args(params, C, c_pad, mm_dtype)       # jit'ed: built once/shape

    xf = x.astype(jnp.float32)
    if c_pad != C:
        xf = jnp.pad(xf, ((0, 0), (0, 0), (0, c_pad - C)))

    bb = block_b if block_b is not None else _pick_block_b(B, N, c_pad, vmem_limit_bytes)
    bb = max(1, min(bb, B))
    while B % bb:
        bb -= 1

    # Constant operands use grid-invariant index_maps, so their DMA is not
    # re-issued across grid steps.
    c2 = lambda shape: pl.BlockSpec(shape, lambda b: (0, 0))
    in_specs = [
        pl.BlockSpec((bb, N, c_pad), lambda b: (b, 0, 0)),   # x: one batch block
        c2((c_pad, c_pad)), c2((c_pad, c_pad)),              # DCT^T, DCT
        c2((1, c_pad)), c2((1, c_pad)),                      # wh, wl
        c2((5, c_pad)), c2((5, c_pad)), c2((1, c_pad)), c2((1, c_pad)),  # conv1
        c2((3, c_pad)), c2((3, c_pad)), c2((1, c_pad)),      # conv2 (balance-scaled)
        c2((3, c_pad)), c2((1, c_pad)),                      # hf conv
        pl.BlockSpec(memory_space=pltpu.MemorySpace.SMEM),   # 3 scalars
    ]
    out_spec = pl.BlockSpec((bb, N, c_pad), lambda b: (b, 0, 0))

    out = pl.pallas_call(
        functools.partial(_afdb_kernel, fast=fast),
        out_shape=jax.ShapeDtypeStruct((B, N, c_pad), jnp.float32),
        grid=(B // bb,),
        in_specs=in_specs,
        out_specs=out_spec,
        compiler_params=pltpu.CompilerParams(
            dimension_semantics=("parallel",),
            vmem_limit_bytes=vmem_limit_bytes),
    )(xf, *args)
    if c_pad != C:
        out = out[..., :C]
    return out          # nan_to_num already fused into the kernel epilogue


# ---------------------------------------------------------------------------
# Pure-JAX reference (for a correctness sanity check).
# ---------------------------------------------------------------------------
def reference_forward(x, p):
    B, N, C = x.shape
    hp = jax.lax.Precision.HIGHEST
    d = dct_matrix(C)
    x_dct = jnp.einsum("bnc,kc->bnk", x, d, precision=hp)
    wh = sum(jax.nn.sigmoid(w) for w in p["weights_high"])
    wl = sum(jax.nn.sigmoid(w) for w in p["weights_low"])
    x_high = x_dct * wh[None, None, :]
    x_low = x_dct * wl[None, None, :]

    energy = jnp.sum(x_high ** 2, axis=-1, keepdims=True)
    med = jnp.quantile(energy + 1e-8, 0.5, axis=1, keepdims=True)
    norm_e = energy / (med + 1e-6)
    reg_mask = jax.nn.sigmoid(10.0 * (norm_e - jnp.clip(p["reg_threshold"], 0.1, 0.9)))
    cls_mask = jax.nn.sigmoid(10.0 * (norm_e - jnp.clip(p["cls_threshold"], 0.1, 0.9)))

    def conv1d(inp_bnc, w, b, groups, pad):
        out = jax.lax.conv_general_dilated(
            inp_bnc.transpose(0, 2, 1), w, window_strides=(1,),
            padding=[(pad, pad)], dimension_numbers=("NCH", "OIH", "NCH"),
            feature_group_count=groups, precision=hp)
        return (out + b[None, :, None]).transpose(0, 2, 1)

    def gelu(v):
        return 0.5 * v * (1.0 + jax.scipy.special.erf(v * _SQRT1_2))

    xr = x_high * reg_mask
    h = gelu(conv1d(xr, p["nr_w1"], p["nr_b1"], C, 2))
    x_high_reg = conv1d(h, p["nr_w2"], p["nr_b2"], C, 1)

    xc = x_high * cls_mask
    x_high_cls = gelu(conv1d(xc, p["hf_w"], p["hf_b"], C, 1))

    balance = jax.nn.sigmoid(p["task_balance"])
    x_h = x_high_reg * balance + x_high_cls * (1 - balance)
    x_comb = x_h + x_low
    x_recon = jnp.einsum("bnk,kc->bnc", x_comb, d, precision=hp)
    return jnp.nan_to_num(x_recon)


if __name__ == "__main__":
    B, N, C = 4, 8, 32          # batch, sequence length, feature dim (`dim`)
    key = jax.random.PRNGKey(0)
    kx, kp = jax.random.split(key)
    x = jax.random.normal(kx, (B, N, C), jnp.float32)
    params = init_params(kp, C, scale_levels=3)

    ref = reference_forward(x, params)

    # Strict-parity path: f32 HIGHEST matmuls + exact-erf GELU.
    out = adaptive_freq_denoise_block(x, params, fast=False)
    out = jax.block_until_ready(out)
    assert out.shape == (B, N, C), out.shape
    err = float(jnp.max(jnp.abs(out - ref)))
    assert err < 1e-3, f"mismatch vs reference, max abs err = {err}"

    # Production path (default): bf16 MXU, tanh GELU, approx reciprocal.
    out_fast = jax.block_until_ready(adaptive_freq_denoise_block(x, params))
    assert out_fast.shape == (B, N, C), out_fast.shape
    assert bool(jnp.all(jnp.isfinite(out_fast)))
    err_fast = float(jnp.max(jnp.abs(out_fast - ref)))
    assert err_fast < 0.5, f"fast path diverged, max abs err = {err_fast}"

    print("KERNEL_OK")
</pallas_src>

<mosaic_0001>
module attributes {stable_mosaic.version = 11 : i64} {
  func.func @_afdb_kernel(%arg0: i32, %arg1: memref<2x8x128xf32, #tpu.memory_space<vmem>>, %arg2: memref<128x128xf32, #tpu.memory_space<vmem>>, %arg3: memref<128x128xf32, #tpu.memory_space<vmem>>, %arg4: memref<1x128xf32, #tpu.memory_space<vmem>>, %arg5: memref<1x128xf32, #tpu.memory_space<vmem>>, %arg6: memref<5x128xf32, #tpu.memory_space<vmem>>, %arg7: memref<5x128xf32, #tpu.memory_space<vmem>>, %arg8: memref<1x128xf32, #tpu.memory_space<vmem>>, %arg9: memref<1x128xf32, #tpu.memory_space<vmem>>, %arg10: memref<3x128xf32, #tpu.memory_space<vmem>>, %arg11: memref<3x128xf32, #tpu.memory_space<vmem>>, %arg12: memref<1x128xf32, #tpu.memory_space<vmem>>, %arg13: memref<3x128xf32, #tpu.memory_space<vmem>>, %arg14: memref<1x128xf32, #tpu.memory_space<vmem>>, %arg15: memref<3xf32, #tpu.memory_space<smem>>, %arg16: memref<2x8x128xf32, #tpu.memory_space<vmem>>) attributes {dimension_semantics = [#tpu.dimension_semantics<parallel>], iteration_bounds = array<i64: 2>, scalar_prefetch = 0 : i64, scratch_operands = 0 : i64, tpu.core_type = #tpu.core_type<tc>, window_params = [{transform_indices = @transform_0, window_bounds = array<i64: 2, 8, 128>}, {pipeline_mode = #tpu.pipeline_mode<synchronous>, transform_indices = @transform_1, window_bounds = array<i64: 128, 128>}, {pipeline_mode = #tpu.pipeline_mode<synchronous>, transform_indices = @transform_2, window_bounds = array<i64: 128, 128>}, {pipeline_mode = #tpu.pipeline_mode<synchronous>, transform_indices = @transform_3, window_bounds = array<i64: 1, 128>}, {pipeline_mode = #tpu.pipeline_mode<synchronous>, transform_indices = @transform_4, window_bounds = array<i64: 1, 128>}, {pipeline_mode = #tpu.pipeline_mode<synchronous>, transform_indices = @transform_5, window_bounds = array<i64: 5, 128>}, {pipeline_mode = #tpu.pipeline_mode<synchronous>, transform_indices = @transform_6, window_bounds = array<i64: 5, 128>}, {pipeline_mode = #tpu.pipeline_mode<synchronous>, transform_indices = @transform_7, window_bounds = array<i64: 1, 128>}, {pipeline_mode = #tpu.pipeline_mode<synchronous>, transform_indices = @transform_8, window_bounds = array<i64: 1, 128>}, {pipeline_mode = #tpu.pipeline_mode<synchronous>, transform_indices = @transform_9, window_bounds = array<i64: 3, 128>}, {pipeline_mode = #tpu.pipeline_mode<synchronous>, transform_indices = @transform_10, window_bounds = array<i64: 3, 128>}, {pipeline_mode = #tpu.pipeline_mode<synchronous>, transform_indices = @transform_11, window_bounds = array<i64: 1, 128>}, {pipeline_mode = #tpu.pipeline_mode<synchronous>, transform_indices = @transform_12, window_bounds = array<i64: 3, 128>}, {pipeline_mode = #tpu.pipeline_mode<synchronous>, transform_indices = @transform_13, window_bounds = array<i64: 1, 128>}, {transform_indices = @transform_14, window_bounds = array<i64: 3>}, {transform_indices = @transform_15, window_bounds = array<i64: 2, 8, 128>}]} {
    %0 = tpu.iota {dimensions = array<i32: 1>} : vector<2x8x1xi32>
    %1 = vector.shape_cast %0 : vector<2x8x1xi32> to vector<16x1xi32>
    %c0 = arith.constant 0 : index
    %c0_0 = arith.constant 0 : index
    %c0_1 = arith.constant 0 : index
    %2 = vector.load %arg1[%c0, %c0_0, %c0_1] : memref<2x8x128xf32, #tpu.memory_space<vmem>>, vector<2x8x128xf32>
    %3 = vector.shape_cast %2 : vector<2x8x128xf32> to vector<16x128xf32>
    %c0_2 = arith.constant 0 : index
    %c0_3 = arith.constant 0 : index
    %4 = vector.load %arg2[%c0_2, %c0_3] : memref<128x128xf32, #tpu.memory_space<vmem>>, vector<128x128xf32>
    %cst = arith.constant dense<0.000000e+00> : vector<16x128xf32>
    %5 = tpu.matmul %3, %4, %cst {dimension_numbers = #tpu.dot_dimension_numbers<[1], [0], [0], [1], [0, 0, 1, 1], [], []>, precision = #tpu.contract_precision<fp32>} : vector<16x128xf32>, vector<128x128xf32>, vector<16x128xf32> -> vector<16x128xf32>
    %c0_4 = arith.constant 0 : index
    %c0_5 = arith.constant 0 : index
    %6 = vector.load %arg4[%c0_4, %c0_5] : memref<1x128xf32, #tpu.memory_space<vmem>>, vector<1x128xf32>
    %7 = vector.broadcast %6 : vector<1x128xf32> to vector<16x128xf32>
    %8 = arith.mulf %5, %7 : vector<16x128xf32>
    %9 = arith.mulf %8, %8 : vector<16x128xf32>
    %cst_6 = arith.constant dense<0.000000e+00> : vector<16xf32>
    %10 = vector.multi_reduction <add>, %9, %cst_6 [1] : vector<16x128xf32> to vector<16xf32>
    %11 = vector.shape_cast %10 : vector<16xf32> to vector<16x1xf32>
    %12 = vector.shape_cast %11 : vector<16x1xf32> to vector<2x8x1xf32>
    %cst_7 = arith.constant 9.99999993E-9 : f32
    %13 = vector.broadcast %cst_7 : f32 to vector<2x8x1xf32>
    %14 = arith.addf %12, %13 : vector<2x8x1xf32>
    %15 = tpu.transpose %14, [0, 2, 1] : vector<2x8x1xf32> -> vector<2x1x8xf32>
    %c0_i32 = arith.constant 0 : i32
    %16 = vector.broadcast %c0_i32 : i32 to vector<2x8x1xi32>
    %c0_i32_8 = arith.constant 0 : i32
    %17 = vector.broadcast %c0_i32_8 : i32 to vector<2x8x1xi32>
    %18 = vector.extract_strided_slice %15 {offsets = [0, 0, 0], sizes = [2, 1, 8], strides = [1, 1, 1]} : vector<2x1x8xf32> to vector<2x1x8xf32>
    %19 = vector.broadcast %18 : vector<2x1x8xf32> to vector<2x8x8xf32>
    %20 = vector.broadcast %14 : vector<2x8x1xf32> to vector<2x8x8xf32>
    %21 = arith.cmpf olt, %19, %20 : vector<2x8x8xf32>
    %22 = arith.extui %21 : vector<2x8x8xi1> to vector<2x8x8xi32>
    %cst_9 = arith.constant dense<0> : vector<2x8xi32>
    %23 = vector.multi_reduction <add>, %22, %cst_9 [2] : vector<2x8x8xi32> to vector<2x8xi32>
    %24 = vector.shape_cast %23 : vector<2x8xi32> to vector<2x8x1xi32>
    %25 = arith.addi %16, %24 : vector<2x8x1xi32>
    %26 = vector.broadcast %18 : vector<2x1x8xf32> to vector<2x8x8xf32>
    %27 = vector.broadcast %14 : vector<2x8x1xf32> to vector<2x8x8xf32>
    %28 = arith.cmpf ole, %26, %27 : vector<2x8x8xf32>
    %29 = arith.extui %28 : vector<2x8x8xi1> to vector<2x8x8xi32>
    %cst_10 = arith.constant dense<0> : vector<2x8xi32>
    %30 = vector.multi_reduction <add>, %29, %cst_10 [2] : vector<2x8x8xi32> to vector<2x8xi32>
    %31 = vector.shape_cast %30 : vector<2x8xi32> to vector<2x8x1xi32>
    %32 = arith.addi %17, %31 : vector<2x8x1xi32>
    %c3_i32 = arith.constant 3 : i32
    %33 = vector.broadcast %c3_i32 : i32 to vector<2x8x1xi32>
    %34 = arith.cmpi sle, %25, %33 : vector<2x8x1xi32>
    %c3_i32_11 = arith.constant 3 : i32
    %35 = vector.broadcast %c3_i32_11 : i32 to vector<2x8x1xi32>
    %36 = arith.cmpi sgt, %32, %35 : vector<2x8x1xi32>
    %37 = arith.andi %34, %36 : vector<2x8x1xi1>
    %cst_12 = arith.constant 0.000000e+00 : f32
    %38 = vector.broadcast %cst_12 : f32 to vector<2x8x1xf32>
    %39 = arith.select %37, %14, %38 : vector<2x8x1xi1>, vector<2x8x1xf32>
    %cst_13 = arith.constant dense<0xFF800000> : vector<2x1xf32>
    %40 = vector.multi_reduction <maximumf>, %39, %cst_13 [1] : vector<2x8x1xf32> to vector<2x1xf32>
    %41 = vector.shape_cast %40 : vector<2x1xf32> to vector<2x1x1xf32>
    %c4_i32 = arith.constant 4 : i32
    %42 = vector.broadcast %c4_i32 : i32 to vector<2x8x1xi32>
    %43 = arith.cmpi sle, %25, %42 : vector<2x8x1xi32>
    %c4_i32_14 = arith.constant 4 : i32
    %44 = vector.broadcast %c4_i32_14 : i32 to vector<2x8x1xi32>
    %45 = arith.cmpi sgt, %32, %44 : vector<2x8x1xi32>
    %46 = arith.andi %43, %45 : vector<2x8x1xi1>
    %cst_15 = arith.constant 0.000000e+00 : f32
    %47 = vector.broadcast %cst_15 : f32 to vector<2x8x1xf32>
    %48 = arith.select %46, %14, %47 : vector<2x8x1xi1>, vector<2x8x1xf32>
    %cst_16 = arith.constant dense<0xFF800000> : vector<2x1xf32>
    %49 = vector.multi_reduction <maximumf>, %48, %cst_16 [1] : vector<2x8x1xf32> to vector<2x1xf32>
    %50 = vector.shape_cast %49 : vector<2x1xf32> to vector<2x1x1xf32>
    %cst_17 = arith.constant 1.000000e+00 : f32
    %cst_18 = arith.constant 5.000000e-01 : f32
    %51 = arith.subf %cst_17, %cst_18 : f32
    %52 = vector.broadcast %51 : f32 to vector<2x1x1xf32>
    %53 = arith.mulf %52, %41 : vector<2x1x1xf32>
    %cst_19 = arith.constant 5.000000e-01 : f32
    %54 = vector.broadcast %cst_19 : f32 to vector<2x1x1xf32>
    %55 = arith.mulf %54, %50 : vector<2x1x1xf32>
    %56 = arith.addf %53, %55 : vector<2x1x1xf32>
    %cst_20 = arith.constant 9.99999997E-7 : f32
    %57 = vector.broadcast %cst_20 : f32 to vector<2x1x1xf32>
    %58 = arith.addf %56, %57 : vector<2x1x1xf32>
    %cst_21 = arith.constant 1.000000e+00 : f32
    %59 = vector.broadcast %cst_21 : f32 to vector<2x1x1xf32>
    %60 = arith.divf %59, %58 : vector<2x1x1xf32>
    %cst_22 = arith.constant 1.000000e+01 : f32
    %61 = vector.broadcast %cst_22 : f32 to vector<2x1x1xf32>
    %62 = arith.mulf %61, %60 : vector<2x1x1xf32>
    %63 = vector.broadcast %62 : vector<2x1x1xf32> to vector<2x8x1xf32>
    %64 = arith.mulf %12, %63 : vector<2x8x1xf32>
    %c0_23 = arith.constant 0 : index
    %65 = memref.load %arg15[%c0_23] : memref<3xf32, #tpu.memory_space<smem>>
    %66 = vector.broadcast %65 : f32 to vector<2x8x1xf32>
    %67 = arith.subf %64, %66 : vector<2x8x1xf32>
    %68 = arith.negf %67 : vector<2x8x1xf32>
    %69 = math.exp %68 : vector<2x8x1xf32>
    %cst_24 = arith.constant 1.000000e+00 : f32
    %70 = vector.broadcast %cst_24 : f32 to vector<2x8x1xf32>
    %71 = arith.addf %70, %69 : vector<2x8x1xf32>
    %72 = arith.divf %70, %71 : vector<2x8x1xf32>
    %73 = vector.shape_cast %72 : vector<2x8x1xf32> to vector<16x1xf32>
    %74 = vector.broadcast %62 : vector<2x1x1xf32> to vector<2x8x1xf32>
    %75 = arith.mulf %12, %74 : vector<2x8x1xf32>
    %c1 = arith.constant 1 : index
    %76 = memref.load %arg15[%c1] : memref<3xf32, #tpu.memory_space<smem>>
    %77 = vector.broadcast %76 : f32 to vector<2x8x1xf32>
    %78 = arith.subf %75, %77 : vector<2x8x1xf32>
    %79 = arith.negf %78 : vector<2x8x1xf32>
    %80 = math.exp %79 : vector<2x8x1xf32>
    %cst_25 = arith.constant 1.000000e+00 : f32
    %81 = vector.broadcast %cst_25 : f32 to vector<2x8x1xf32>
    %82 = arith.addf %81, %80 : vector<2x8x1xf32>
    %83 = arith.divf %81, %82 : vector<2x8x1xf32>
    %84 = vector.shape_cast %83 : vector<2x8x1xf32> to vector<16x1xf32>
    %85 = vector.broadcast %73 : vector<16x1xf32> to vector<16x128xf32>
    %86 = arith.mulf %8, %85 : vector<16x128xf32>
    %c0_26 = arith.constant 0 : index
    %c0_27 = arith.constant 0 : index
    %87 = vector.load %arg6[%c0_26, %c0_27] : memref<5x128xf32, #tpu.memory_space<vmem>>, vector<5x128xf32>
    %c0_28 = arith.constant 0 : index
    %c0_29 = arith.constant 0 : index
    %88 = vector.load %arg7[%c0_28, %c0_29] : memref<5x128xf32, #tpu.memory_space<vmem>>, vector<5x128xf32>
    %89 = vector.extract_strided_slice %87 {offsets = [2, 0], sizes = [1, 128], strides = [1, 1]} : vector<5x128xf32> to vector<1x128xf32>
    %90 = vector.broadcast %89 : vector<1x128xf32> to vector<16x128xf32>
    %91 = arith.mulf %86, %90 : vector<16x128xf32>
    %92 = vector.extract_strided_slice %88 {offsets = [2, 0], sizes = [1, 128], strides = [1, 1]} : vector<5x128xf32> to vector<1x128xf32>
    %93 = vector.broadcast %92 : vector<1x128xf32> to vector<16x128xf32>
    %94 = arith.mulf %86, %93 : vector<16x128xf32>
    %c2_i32 = arith.constant 2 : i32
    %95 = tpu.dynamic_rotate %86 by %c2_i32 dim 0 : vector<16x128xf32>, i32 -> vector<16x128xf32>
    %c2_i32_30 = arith.constant 2 : i32
    %96 = vector.broadcast %c2_i32_30 : i32 to vector<16x1xi32>
    %97 = arith.cmpi sge, %1, %96 : vector<16x1xi32>
    %cst_31 = arith.constant 0.000000e+00 : f32
    %98 = vector.shape_cast %97 : vector<16x1xi1> to vector<16x1xi1>
    %99 = vector.broadcast %98 : vector<16x1xi1> to vector<16x128xi1>
    %100 = vector.broadcast %cst_31 : f32 to vector<16x128xf32>
    %101 = arith.select %99, %95, %100 : vector<16x128xi1>, vector<16x128xf32>
    %102 = vector.extract_strided_slice %87 {offsets = [0, 0], sizes = [1, 128], strides = [1, 1]} : vector<5x128xf32> to vector<1x128xf32>
    %103 = vector.broadcast %102 : vector<1x128xf32> to vector<16x128xf32>
    %104 = arith.mulf %101, %103 : vector<16x128xf32>
    %105 = arith.addf %91, %104 : vector<16x128xf32>
    %106 = vector.extract_strided_slice %88 {offsets = [0, 0], sizes = [1, 128], strides = [1, 1]} : vector<5x128xf32> to vector<1x128xf32>
    %107 = vector.broadcast %106 : vector<1x128xf32> to vector<16x128xf32>
    %108 = arith.mulf %101, %107 : vector<16x128xf32>
    %109 = arith.addf %94, %108 : vector<16x128xf32>
    %c1_i32 = arith.constant 1 : i32
    %110 = tpu.dynamic_rotate %86 by %c1_i32 dim 0 : vector<16x128xf32>, i32 -> vector<16x128xf32>
    %c1_i32_32 = arith.constant 1 : i32
    %111 = vector.broadcast %c1_i32_32 : i32 to vector<16x1xi32>
    %112 = arith.cmpi sge, %1, %111 : vector<16x1xi32>
    %cst_33 = arith.constant 0.000000e+00 : f32
    %113 = vector.shape_cast %112 : vector<16x1xi1> to vector<16x1xi1>
    %114 = vector.broadcast %113 : vector<16x1xi1> to vector<16x128xi1>
    %115 = vector.broadcast %cst_33 : f32 to vector<16x128xf32>
    %116 = arith.select %114, %110, %115 : vector<16x128xi1>, vector<16x128xf32>
    %117 = vector.extract_strided_slice %87 {offsets = [1, 0], sizes = [1, 128], strides = [1, 1]} : vector<5x128xf32> to vector<1x128xf32>
    %118 = vector.broadcast %117 : vector<1x128xf32> to vector<16x128xf32>
    %119 = arith.mulf %116, %118 : vector<16x128xf32>
    %120 = arith.addf %105, %119 : vector<16x128xf32>
    %121 = vector.extract_strided_slice %88 {offsets = [1, 0], sizes = [1, 128], strides = [1, 1]} : vector<5x128xf32> to vector<1x128xf32>
    %122 = vector.broadcast %121 : vector<1x128xf32> to vector<16x128xf32>
    %123 = arith.mulf %116, %122 : vector<16x128xf32>
    %124 = arith.addf %109, %123 : vector<16x128xf32>
    %c15_i32 = arith.constant 15 : i32
    %125 = tpu.dynamic_rotate %86 by %c15_i32 dim 0 : vector<16x128xf32>, i32 -> vector<16x128xf32>
    %c7_i32 = arith.constant 7 : i32
    %126 = vector.broadcast %c7_i32 : i32 to vector<16x1xi32>
    %127 = arith.cmpi slt, %1, %126 : vector<16x1xi32>
    %cst_34 = arith.constant 0.000000e+00 : f32
    %128 = vector.shape_cast %127 : vector<16x1xi1> to vector<16x1xi1>
    %129 = vector.broadcast %128 : vector<16x1xi1> to vector<16x128xi1>
    %130 = vector.broadcast %cst_34 : f32 to vector<16x128xf32>
    %131 = arith.select %129, %125, %130 : vector<16x128xi1>, vector<16x128xf32>
    %132 = vector.extract_strided_slice %87 {offsets = [3, 0], sizes = [1, 128], strides = [1, 1]} : vector<5x128xf32> to vector<1x128xf32>
    %133 = vector.broadcast %132 : vector<1x128xf32> to vector<16x128xf32>
    %134 = arith.mulf %131, %133 : vector<16x128xf32>
    %135 = arith.addf %120, %134 : vector<16x128xf32>
    %136 = vector.extract_strided_slice %88 {offsets = [3, 0], sizes = [1, 128], strides = [1, 1]} : vector<5x128xf32> to vector<1x128xf32>
    %137 = vector.broadcast %136 : vector<1x128xf32> to vector<16x128xf32>
    %138 = arith.mulf %131, %137 : vector<16x128xf32>
    %139 = arith.addf %124, %138 : vector<16x128xf32>
    %c14_i32 = arith.constant 14 : i32
    %140 = tpu.dynamic_rotate %86 by %c14_i32 dim 0 : vector<16x128xf32>, i32 -> vector<16x128xf32>
    %c6_i32 = arith.constant 6 : i32
    %141 = vector.broadcast %c6_i32 : i32 to vector<16x1xi32>
    %142 = arith.cmpi slt, %1, %141 : vector<16x1xi32>
    %cst_35 = arith.constant 0.000000e+00 : f32
    %143 = vector.shape_cast %142 : vector<16x1xi1> to vector<16x1xi1>
    %144 = vector.broadcast %143 : vector<16x1xi1> to vector<16x128xi1>
    %145 = vector.broadcast %cst_35 : f32 to vector<16x128xf32>
    %146 = arith.select %144, %140, %145 : vector<16x128xi1>, vector<16x128xf32>
    %147 = vector.extract_strided_slice %87 {offsets = [4, 0], sizes = [1, 128], strides = [1, 1]} : vector<5x128xf32> to vector<1x128xf32>
    %148 = vector.broadcast %147 : vector<1x128xf32> to vector<16x128xf32>
    %149 = arith.mulf %146, %148 : vector<16x128xf32>
    %150 = arith.addf %135, %149 : vector<16x128xf32>
    %151 = vector.extract_strided_slice %88 {offsets = [4, 0], sizes = [1, 128], strides = [1, 1]} : vector<5x128xf32> to vector<1x128xf32>
    %152 = vector.broadcast %151 : vector<1x128xf32> to vector<16x128xf32>
    %153 = arith.mulf %146, %152 : vector<16x128xf32>
    %154 = arith.addf %139, %153 : vector<16x128xf32>
    %c0_36 = arith.constant 0 : index
    %c0_37 = arith.constant 0 : index
    %155 = vector.load %arg8[%c0_36, %c0_37] : memref<1x128xf32, #tpu.memory_space<vmem>>, vector<1x128xf32>
    %156 = vector.broadcast %155 : vector<1x128xf32> to vector<16x128xf32>
    %157 = arith.addf %150, %156 : vector<16x128xf32>
    %cst_38 = arith.constant 5.000000e-01 : f32
    %158 = vector.broadcast %cst_38 : f32 to vector<16x128xf32>
    %159 = arith.mulf %158, %157 : vector<16x128xf32>
    %cst_39 = arith.constant 0.707106769 : f32
    %160 = vector.broadcast %cst_39 : f32 to vector<16x128xf32>
    %161 = arith.mulf %157, %160 : vector<16x128xf32>
    %162 = math.absf %161 : vector<16x128xf32>
    %cst_40 = arith.constant 0.327591091 : f32
    %163 = vector.broadcast %cst_40 : f32 to vector<16x128xf32>
    %164 = arith.mulf %163, %162 : vector<16x128xf32>
    %cst_41 = arith.constant 1.000000e+00 : f32
    %165 = vector.broadcast %cst_41 : f32 to vector<16x128xf32>
    %166 = arith.addf %165, %164 : vector<16x128xf32>
    %cst_42 = arith.constant 1.000000e+00 : f32
    %167 = vector.broadcast %cst_42 : f32 to vector<16x128xf32>
    %168 = arith.divf %167, %166 : vector<16x128xf32>
    %cst_43 = arith.constant 1.06140542 : f32
    %169 = vector.broadcast %cst_43 : f32 to vector<16x128xf32>
    %170 = arith.mulf %169, %168 : vector<16x128xf32>
    %cst_44 = arith.constant -1.45315206 : f32
    %171 = vector.broadcast %cst_44 : f32 to vector<16x128xf32>
    %172 = arith.addf %170, %171 : vector<16x128xf32>
    %173 = arith.mulf %172, %168 : vector<16x128xf32>
    %cst_45 = arith.constant 1.42141378 : f32
    %174 = vector.broadcast %cst_45 : f32 to vector<16x128xf32>
    %175 = arith.addf %173, %174 : vector<16x128xf32>
    %176 = arith.mulf %175, %168 : vector<16x128xf32>
    %cst_46 = arith.constant -0.284496725 : f32
    %177 = vector.broadcast %cst_46 : f32 to vector<16x128xf32>
    %178 = arith.addf %176, %177 : vector<16x128xf32>
    %179 = arith.mulf %178, %168 : vector<16x128xf32>
    %cst_47 = arith.constant 0.254829586 : f32
    %180 = vector.broadcast %cst_47 : f32 to vector<16x128xf32>
    %181 = arith.addf %179, %180 : vector<16x128xf32>
    %182 = arith.mulf %181, %168 : vector<16x128xf32>
    %cst_48 = arith.constant 0.000000e+00 : f32
    %183 = vector.broadcast %cst_48 : f32 to vector<16x128xf32>
    %184 = arith.subf %183, %162 : vector<16x128xf32>
    %185 = arith.mulf %184, %162 : vector<16x128xf32>
    %186 = math.exp %185 : vector<16x128xf32>
    %187 = arith.mulf %182, %186 : vector<16x128xf32>
    %cst_49 = arith.constant 1.000000e+00 : f32
    %188 = vector.broadcast %cst_49 : f32 to vector<16x128xf32>
    %189 = arith.subf %188, %187 : vector<16x128xf32>
    %cst_50 = arith.constant 0.000000e+00 : f32
    %190 = vector.broadcast %cst_50 : f32 to vector<16x128xf32>
    %191 = arith.cmpf oge, %161, %190 : vector<16x128xf32>
    %cst_51 = arith.constant 0.000000e+00 : f32
    %192 = vector.broadcast %cst_51 : f32 to vector<16x128xf32>
    %193 = arith.subf %192, %189 : vector<16x128xf32>
    %194 = arith.select %191, %189, %193 : vector<16x128xi1>, vector<16x128xf32>
    %cst_52 = arith.constant 1.000000e+00 : f32
    %195 = vector.broadcast %cst_52 : f32 to vector<16x128xf32>
    %196 = arith.addf %195, %194 : vector<16x128xf32>
    %197 = arith.mulf %159, %196 : vector<16x128xf32>
    %c0_53 = arith.constant 0 : index
    %c0_54 = arith.constant 0 : index
    %198 = vector.load %arg9[%c0_53, %c0_54] : memref<1x128xf32, #tpu.memory_space<vmem>>, vector<1x128xf32>
    %199 = vector.broadcast %198 : vector<1x128xf32> to vector<16x128xf32>
    %200 = arith.addf %154, %199 : vector<16x128xf32>
    %cst_55 = arith.constant 5.000000e-01 : f32
    %201 = vector.broadcast %cst_55 : f32 to vector<16x128xf32>
    %202 = arith.mulf %201, %200 : vector<16x128xf32>
    %cst_56 = arith.constant 0.707106769 : f32
    %203 = vector.broadcast %cst_56 : f32 to vector<16x128xf32>
    %204 = arith.mulf %200, %203 : vector<16x128xf32>
    %205 = math.absf %204 : vector<16x128xf32>
    %cst_57 = arith.constant 0.327591091 : f32
    %206 = vector.broadcast %cst_57 : f32 to vector<16x128xf32>
    %207 = arith.mulf %206, %205 : vector<16x128xf32>
    %cst_58 = arith.constant 1.000000e+00 : f32
    %208 = vector.broadcast %cst_58 : f32 to vector<16x128xf32>
    %209 = arith.addf %208, %207 : vector<16x128xf32>
    %cst_59 = arith.constant 1.000000e+00 : f32
    %210 = vector.broadcast %cst_59 : f32 to vector<16x128xf32>
    %211 = arith.divf %210, %209 : vector<16x128xf32>
    %cst_60 = arith.constant 1.06140542 : f32
    %212 = vector.broadcast %cst_60 : f32 to vector<16x128xf32>
    %213 = arith.mulf %212, %211 : vector<16x128xf32>
    %cst_61 = arith.constant -1.45315206 : f32
    %214 = vector.broadcast %cst_61 : f32 to vector<16x128xf32>
    %215 = arith.addf %213, %214 : vector<16x128xf32>
    %216 = arith.mulf %215, %211 : vector<16x128xf32>
    %cst_62 = arith.constant 1.42141378 : f32
    %217 = vector.broadcast %cst_62 : f32 to vector<16x128xf32>
    %218 = arith.addf %216, %217 : vector<16x128xf32>
    %219 = arith.mulf %218, %211 : vector<16x128xf32>
    %cst_63 = arith.constant -0.284496725 : f32
    %220 = vector.broadcast %cst_63 : f32 to vector<16x128xf32>
    %221 = arith.addf %219, %220 : vector<16x128xf32>
    %222 = arith.mulf %221, %211 : vector<16x128xf32>
    %cst_64 = arith.constant 0.254829586 : f32
    %223 = vector.broadcast %cst_64 : f32 to vector<16x128xf32>
    %224 = arith.addf %222, %223 : vector<16x128xf32>
    %225 = arith.mulf %224, %211 : vector<16x128xf32>
    %cst_65 = arith.constant 0.000000e+00 : f32
    %226 = vector.broadcast %cst_65 : f32 to vector<16x128xf32>
    %227 = arith.subf %226, %205 : vector<16x128xf32>
    %228 = arith.mulf %227, %205 : vector<16x128xf32>
    %229 = math.exp %228 : vector<16x128xf32>
    %230 = arith.mulf %225, %229 : vector<16x128xf32>
    %cst_66 = arith.constant 1.000000e+00 : f32
    %231 = vector.broadcast %cst_66 : f32 to vector<16x128xf32>
    %232 = arith.subf %231, %230 : vector<16x128xf32>
    %cst_67 = arith.constant 0.000000e+00 : f32
    %233 = vector.broadcast %cst_67 : f32 to vector<16x128xf32>
    %234 = arith.cmpf oge, %204, %233 : vector<16x128xf32>
    %cst_68 = arith.constant 0.000000e+00 : f32
    %235 = vector.broadcast %cst_68 : f32 to vector<16x128xf32>
    %236 = arith.subf %235, %232 : vector<16x128xf32>
    %237 = arith.select %234, %232, %236 : vector<16x128xi1>, vector<16x128xf32>
    %cst_69 = arith.constant 1.000000e+00 : f32
    %238 = vector.broadcast %cst_69 : f32 to vector<16x128xf32>
    %239 = arith.addf %238, %237 : vector<16x128xf32>
    %240 = arith.mulf %202, %239 : vector<16x128xf32>
    %c0_70 = arith.constant 0 : index
    %c0_71 = arith.constant 0 : index
    %241 = vector.load %arg5[%c0_70, %c0_71] : memref<1x128xf32, #tpu.memory_space<vmem>>, vector<1x128xf32>
    %242 = vector.broadcast %241 : vector<1x128xf32> to vector<16x128xf32>
    %243 = arith.mulf %5, %242 : vector<16x128xf32>
    %c0_72 = arith.constant 0 : index
    %c0_73 = arith.constant 0 : index
    %244 = vector.load %arg10[%c0_72, %c0_73] : memref<3x128xf32, #tpu.memory_space<vmem>>, vector<3x128xf32>
    %c0_74 = arith.constant 0 : index
    %c0_75 = arith.constant 0 : index
    %245 = vector.load %arg11[%c0_74, %c0_75] : memref<3x128xf32, #tpu.memory_space<vmem>>, vector<3x128xf32>
    %246 = vector.extract_strided_slice %244 {offsets = [1, 0], sizes = [1, 128], strides = [1, 1]} : vector<3x128xf32> to vector<1x128xf32>
    %247 = vector.broadcast %246 : vector<1x128xf32> to vector<16x128xf32>
    %248 = arith.mulf %197, %247 : vector<16x128xf32>
    %249 = vector.extract_strided_slice %245 {offsets = [1, 0], sizes = [1, 128], strides = [1, 1]} : vector<3x128xf32> to vector<1x128xf32>
    %250 = vector.broadcast %249 : vector<1x128xf32> to vector<16x128xf32>
    %251 = arith.mulf %240, %250 : vector<16x128xf32>
    %252 = arith.addf %248, %251 : vector<16x128xf32>
    %c1_i32_76 = arith.constant 1 : i32
    %253 = tpu.dynamic_rotate %197 by %c1_i32_76 dim 0 : vector<16x128xf32>, i32 -> vector<16x128xf32>
    %c1_i32_77 = arith.constant 1 : i32
    %254 = vector.broadcast %c1_i32_77 : i32 to vector<16x1xi32>
    %255 = arith.cmpi sge, %1, %254 : vector<16x1xi32>
    %cst_78 = arith.constant 0.000000e+00 : f32
    %256 = vector.shape_cast %255 : vector<16x1xi1> to vector<16x1xi1>
    %257 = vector.broadcast %256 : vector<16x1xi1> to vector<16x128xi1>
    %258 = vector.broadcast %cst_78 : f32 to vector<16x128xf32>
    %259 = arith.select %257, %253, %258 : vector<16x128xi1>, vector<16x128xf32>
    %260 = vector.extract_strided_slice %244 {offsets = [0, 0], sizes = [1, 128], strides = [1, 1]} : vector<3x128xf32> to vector<1x128xf32>
    %261 = vector.broadcast %260 : vector<1x128xf32> to vector<16x128xf32>
    %262 = arith.mulf %259, %261 : vector<16x128xf32>
    %263 = arith.addf %252, %262 : vector<16x128xf32>
    %c1_i32_79 = arith.constant 1 : i32
    %264 = tpu.dynamic_rotate %240 by %c1_i32_79 dim 0 : vector<16x128xf32>, i32 -> vector<16x128xf32>
    %c1_i32_80 = arith.constant 1 : i32
    %265 = vector.broadcast %c1_i32_80 : i32 to vector<16x1xi32>
    %266 = arith.cmpi sge, %1, %265 : vector<16x1xi32>
    %cst_81 = arith.constant 0.000000e+00 : f32
    %267 = vector.shape_cast %266 : vector<16x1xi1> to vector<16x1xi1>
    %268 = vector.broadcast %267 : vector<16x1xi1> to vector<16x128xi1>
    %269 = vector.broadcast %cst_81 : f32 to vector<16x128xf32>
    %270 = arith.select %268, %264, %269 : vector<16x128xi1>, vector<16x128xf32>
    %271 = vector.extract_strided_slice %245 {offsets = [0, 0], sizes = [1, 128], strides = [1, 1]} : vector<3x128xf32> to vector<1x128xf32>
    %272 = vector.broadcast %271 : vector<1x128xf32> to vector<16x128xf32>
    %273 = arith.mulf %270, %272 : vector<16x128xf32>
    %274 = arith.addf %263, %273 : vector<16x128xf32>
    %c15_i32_82 = arith.constant 15 : i32
    %275 = tpu.dynamic_rotate %197 by %c15_i32_82 dim 0 : vector<16x128xf32>, i32 -> vector<16x128xf32>
    %c7_i32_83 = arith.constant 7 : i32
    %276 = vector.broadcast %c7_i32_83 : i32 to vector<16x1xi32>
    %277 = arith.cmpi slt, %1, %276 : vector<16x1xi32>
    %cst_84 = arith.constant 0.000000e+00 : f32
    %278 = vector.shape_cast %277 : vector<16x1xi1> to vector<16x1xi1>
    %279 = vector.broadcast %278 : vector<16x1xi1> to vector<16x128xi1>
    %280 = vector.broadcast %cst_84 : f32 to vector<16x128xf32>
    %281 = arith.select %279, %275, %280 : vector<16x128xi1>, vector<16x128xf32>
    %282 = vector.extract_strided_slice %244 {offsets = [2, 0], sizes = [1, 128], strides = [1, 1]} : vector<3x128xf32> to vector<1x128xf32>
    %283 = vector.broadcast %282 : vector<1x128xf32> to vector<16x128xf32>
    %284 = arith.mulf %281, %283 : vector<16x128xf32>
    %285 = arith.addf %274, %284 : vector<16x128xf32>
    %c15_i32_85 = arith.constant 15 : i32
    %286 = tpu.dynamic_rotate %240 by %c15_i32_85 dim 0 : vector<16x128xf32>, i32 -> vector<16x128xf32>
    %c7_i32_86 = arith.constant 7 : i32
    %287 = vector.broadcast %c7_i32_86 : i32 to vector<16x1xi32>
    %288 = arith.cmpi slt, %1, %287 : vector<16x1xi32>
    %cst_87 = arith.constant 0.000000e+00 : f32
    %289 = vector.shape_cast %288 : vector<16x1xi1> to vector<16x1xi1>
    %290 = vector.broadcast %289 : vector<16x1xi1> to vector<16x128xi1>
    %291 = vector.broadcast %cst_87 : f32 to vector<16x128xf32>
    %292 = arith.select %290, %286, %291 : vector<16x128xi1>, vector<16x128xf32>
    %293 = vector.extract_strided_slice %245 {offsets = [2, 0], sizes = [1, 128], strides = [1, 1]} : vector<3x128xf32> to vector<1x128xf32>
    %294 = vector.broadcast %293 : vector<1x128xf32> to vector<16x128xf32>
    %295 = arith.mulf %292, %294 : vector<16x128xf32>
    %296 = arith.addf %285, %295 : vector<16x128xf32>
    %297 = arith.addf %243, %296 : vector<16x128xf32>
    %c0_88 = arith.constant 0 : index
    %c0_89 = arith.constant 0 : index
    %298 = vector.load %arg12[%c0_88, %c0_89] : memref<1x128xf32, #tpu.memory_space<vmem>>, vector<1x128xf32>
    %299 = vector.broadcast %298 : vector<1x128xf32> to vector<16x128xf32>
    %300 = arith.addf %297, %299 : vector<16x128xf32>
    %301 = vector.broadcast %84 : vector<16x1xf32> to vector<16x128xf32>
    %302 = arith.mulf %8, %301 : vector<16x128xf32>
    %c0_90 = arith.constant 0 : index
    %c0_91 = arith.constant 0 : index
    %303 = vector.load %arg13[%c0_90, %c0_91] : memref<3x128xf32, #tpu.memory_space<vmem>>, vector<3x128xf32>
    %304 = vector.extract_strided_slice %303 {offsets = [1, 0], sizes = [1, 128], strides = [1, 1]} : vector<3x128xf32> to vector<1x128xf32>
    %305 = vector.broadcast %304 : vector<1x128xf32> to vector<16x128xf32>
    %306 = arith.mulf %302, %305 : vector<16x128xf32>
    %c1_i32_92 = arith.constant 1 : i32
    %307 = tpu.dynamic_rotate %302 by %c1_i32_92 dim 0 : vector<16x128xf32>, i32 -> vector<16x128xf32>
    %c1_i32_93 = arith.constant 1 : i32
    %308 = vector.broadcast %c1_i32_93 : i32 to vector<16x1xi32>
    %309 = arith.cmpi sge, %1, %308 : vector<16x1xi32>
    %cst_94 = arith.constant 0.000000e+00 : f32
    %310 = vector.shape_cast %309 : vector<16x1xi1> to vector<16x1xi1>
    %311 = vector.broadcast %310 : vector<16x1xi1> to vector<16x128xi1>
    %312 = vector.broadcast %cst_94 : f32 to vector<16x128xf32>
    %313 = arith.select %311, %307, %312 : vector<16x128xi1>, vector<16x128xf32>
    %314 = vector.extract_strided_slice %303 {offsets = [0, 0], sizes = [1, 128], strides = [1, 1]} : vector<3x128xf32> to vector<1x128xf32>
    %315 = vector.broadcast %314 : vector<1x128xf32> to vector<16x128xf32>
    %316 = arith.mulf %313, %315 : vector<16x128xf32>
    %317 = arith.addf %306, %316 : vector<16x128xf32>
    %c15_i32_95 = arith.constant 15 : i32
    %318 = tpu.dynamic_rotate %302 by %c15_i32_95 dim 0 : vector<16x128xf32>, i32 -> vector<16x128xf32>
    %c7_i32_96 = arith.constant 7 : i32
    %319 = vector.broadcast %c7_i32_96 : i32 to vector<16x1xi32>
    %320 = arith.cmpi slt, %1, %319 : vector<16x1xi32>
    %cst_97 = arith.constant 0.000000e+00 : f32
    %321 = vector.shape_cast %320 : vector<16x1xi1> to vector<16x1xi1>
    %322 = vector.broadcast %321 : vector<16x1xi1> to vector<16x128xi1>
    %323 = vector.broadcast %cst_97 : f32 to vector<16x128xf32>
    %324 = arith.select %322, %318, %323 : vector<16x128xi1>, vector<16x128xf32>
    %325 = vector.extract_strided_slice %303 {offsets = [2, 0], sizes = [1, 128], strides = [1, 1]} : vector<3x128xf32> to vector<1x128xf32>
    %326 = vector.broadcast %325 : vector<1x128xf32> to vector<16x128xf32>
    %327 = arith.mulf %324, %326 : vector<16x128xf32>
    %328 = arith.addf %317, %327 : vector<16x128xf32>
    %c0_98 = arith.constant 0 : index
    %c0_99 = arith.constant 0 : index
    %329 = vector.load %arg14[%c0_98, %c0_99] : memref<1x128xf32, #tpu.memory_space<vmem>>, vector<1x128xf32>
    %330 = vector.broadcast %329 : vector<1x128xf32> to vector<16x128xf32>
    %331 = arith.addf %328, %330 : vector<16x128xf32>
    %cst_100 = arith.constant 5.000000e-01 : f32
    %332 = vector.broadcast %cst_100 : f32 to vector<16x128xf32>
    %333 = arith.mulf %332, %331 : vector<16x128xf32>
    %cst_101 = arith.constant 0.707106769 : f32
    %334 = vector.broadcast %cst_101 : f32 to vector<16x128xf32>
    %335 = arith.mulf %331, %334 : vector<16x128xf32>
    %336 = math.absf %335 : vector<16x128xf32>
    %cst_102 = arith.constant 0.327591091 : f32
    %337 = vector.broadcast %cst_102 : f32 to vector<16x128xf32>
    %338 = arith.mulf %337, %336 : vector<16x128xf32>
    %cst_103 = arith.constant 1.000000e+00 : f32
    %339 = vector.broadcast %cst_103 : f32 to vector<16x128xf32>
    %340 = arith.addf %339, %338 : vector<16x128xf32>
    %cst_104 = arith.constant 1.000000e+00 : f32
    %341 = vector.broadcast %cst_104 : f32 to vector<16x128xf32>
    %342 = arith.divf %341, %340 : vector<16x128xf32>
    %cst_105 = arith.constant 1.06140542 : f32
    %343 = vector.broadcast %cst_105 : f32 to vector<16x128xf32>
    %344 = arith.mulf %343, %342 : vector<16x128xf32>
    %cst_106 = arith.constant -1.45315206 : f32
    %345 = vector.broadcast %cst_106 : f32 to vector<16x128xf32>
    %346 = arith.addf %344, %345 : vector<16x128xf32>
    %347 = arith.mulf %346, %342 : vector<16x128xf32>
    %cst_107 = arith.constant 1.42141378 : f32
    %348 = vector.broadcast %cst_107 : f32 to vector<16x128xf32>
    %349 = arith.addf %347, %348 : vector<16x128xf32>
    %350 = arith.mulf %349, %342 : vector<16x128xf32>
    %cst_108 = arith.constant -0.284496725 : f32
    %351 = vector.broadcast %cst_108 : f32 to vector<16x128xf32>
    %352 = arith.addf %350, %351 : vector<16x128xf32>
    %353 = arith.mulf %352, %342 : vector<16x128xf32>
    %cst_109 = arith.constant 0.254829586 : f32
    %354 = vector.broadcast %cst_109 : f32 to vector<16x128xf32>
    %355 = arith.addf %353, %354 : vector<16x128xf32>
    %356 = arith.mulf %355, %342 : vector<16x128xf32>
    %cst_110 = arith.constant 0.000000e+00 : f32
    %357 = vector.broadcast %cst_110 : f32 to vector<16x128xf32>
    %358 = arith.subf %357, %336 : vector<16x128xf32>
    %359 = arith.mulf %358, %336 : vector<16x128xf32>
    %360 = math.exp %359 : vector<16x128xf32>
    %361 = arith.mulf %356, %360 : vector<16x128xf32>
    %cst_111 = arith.constant 1.000000e+00 : f32
    %362 = vector.broadcast %cst_111 : f32 to vector<16x128xf32>
    %363 = arith.subf %362, %361 : vector<16x128xf32>
    %cst_112 = arith.constant 0.000000e+00 : f32
    %364 = vector.broadcast %cst_112 : f32 to vector<16x128xf32>
    %365 = arith.cmpf oge, %335, %364 : vector<16x128xf32>
    %cst_113 = arith.constant 0.000000e+00 : f32
    %366 = vector.broadcast %cst_113 : f32 to vector<16x128xf32>
    %367 = arith.subf %366, %363 : vector<16x128xf32>
    %368 = arith.select %365, %363, %367 : vector<16x128xi1>, vector<16x128xf32>
    %cst_114 = arith.constant 1.000000e+00 : f32
    %369 = vector.broadcast %cst_114 : f32 to vector<16x128xf32>
    %370 = arith.addf %369, %368 : vector<16x128xf32>
    %371 = arith.mulf %333, %370 : vector<16x128xf32>
    %c2 = arith.constant 2 : index
    %372 = memref.load %arg15[%c2] : memref<3xf32, #tpu.memory_space<smem>>
    %373 = vector.broadcast %372 : f32 to vector<16x128xf32>
    %374 = arith.mulf %373, %371 : vector<16x128xf32>
    %375 = arith.addf %300, %374 : vector<16x128xf32>
    %c0_115 = arith.constant 0 : index
    %c0_116 = arith.constant 0 : index
    %376 = vector.load %arg3[%c0_115, %c0_116] : memref<128x128xf32, #tpu.memory_space<vmem>>, vector<128x128xf32>
    %cst_117 = arith.constant dense<0.000000e+00> : vector<16x128xf32>
    %377 = tpu.matmul %375, %376, %cst_117 {dimension_numbers = #tpu.dot_dimension_numbers<[1], [0], [0], [1], [0, 0, 1, 1], [], []>, precision = #tpu.contract_precision<fp32>} : vector<16x128xf32>, vector<128x128xf32>, vector<16x128xf32> -> vector<16x128xf32>
    %378 = arith.cmpf one, %377, %377 : vector<16x128xf32>
    %cst_118 = arith.constant 0.000000e+00 : f32
    %379 = vector.broadcast %cst_118 : f32 to vector<16x128xf32>
    %380 = arith.select %378, %379, %377 : vector<16x128xi1>, vector<16x128xf32>
    %cst_119 = arith.constant 0.000000e+00 : f32
    %cst_120 = arith.constant 3.40282347E+38 : f32
    %381 = arith.subf %cst_119, %cst_120 : f32
    %cst_121 = arith.constant 3.40282347E+38 : f32
    %382 = vector.broadcast %381 : f32 to vector<16x128xf32>
    %383 = arith.maximumf %382, %380 : vector<16x128xf32>
    %384 = vector.broadcast %cst_121 : f32 to vector<16x128xf32>
    %385 = arith.minimumf %384, %383 : vector<16x128xf32>
    %386 = vector.shape_cast %385 : vector<16x128xf32> to vector<2x8x128xf32>
    %c0_122 = arith.constant 0 : index
    %c0_123 = arith.constant 0 : index
    %c0_124 = arith.constant 0 : index
    %387 = vector.load %arg16[%c0_122, %c0_123, %c0_124] : memref<2x8x128xf32, #tpu.memory_space<vmem>>, vector<2x8x128xf32>
    tpu.vector_store %arg16[%c0_122, %c0_123, %c0_124], %386 {strides = array<i32>} : memref<2x8x128xf32, #tpu.memory_space<vmem>>, vector<2x8x128xf32>,
    return
  }
  func.func @transform_0(%arg0: i32) -> (i32, i32, i32) {
    %c0_i32 = arith.constant 0 : i32
    %c0_i32_0 = arith.constant 0 : i32
    %c0_i32_1 = arith.constant 0 : i32
    return %arg0, %c0_i32, %c0_i32_0 : i32, i32, i32
  }
  func.func @transform_1(%arg0: i32) -> (i32, i32) {
    %c0_i32 = arith.constant 0 : i32
    %c0_i32_0 = arith.constant 0 : i32
    %c0_i32_1 = arith.constant 0 : i32
    return %c0_i32, %c0_i32_0 : i32, i32
  }
  func.func @transform_2(%arg0: i32) -> (i32, i32) {
    %c0_i32 = arith.constant 0 : i32
    %c0_i32_0 = arith.constant 0 : i32
    %c0_i32_1 = arith.constant 0 : i32
    return %c0_i32, %c0_i32_0 : i32, i32
  }
  func.func @transform_3(%arg0: i32) -> (i32, i32) {
    %c0_i32 = arith.constant 0 : i32
    %c0_i32_0 = arith.constant 0 : i32
    %c0_i32_1 = arith.constant 0 : i32
    return %c0_i32, %c0_i32_0 : i32, i32
  }
  func.func @transform_4(%arg0: i32) -> (i32, i32) {
    %c0_i32 = arith.constant 0 : i32
    %c0_i32_0 = arith.constant 0 : i32
    %c0_i32_1 = arith.constant 0 : i32
    return %c0_i32, %c0_i32_0 : i32, i32
  }
  func.func @transform_5(%arg0: i32) -> (i32, i32) {
    %c0_i32 = arith.constant 0 : i32
    %c0_i32_0 = arith.constant 0 : i32
    %c0_i32_1 = arith.constant 0 : i32
    return %c0_i32, %c0_i32_0 : i32, i32
  }
  func.func @transform_6(%arg0: i32) -> (i32, i32) {
    %c0_i32 = arith.constant 0 : i32
    %c0_i32_0 = arith.constant 0 : i32
    %c0_i32_1 = arith.constant 0 : i32
    return %c0_i32, %c0_i32_0 : i32, i32
  }
  func.func @transform_7(%arg0: i32) -> (i32, i32) {
    %c0_i32 = arith.constant 0 : i32
    %c0_i32_0 = arith.constant 0 : i32
    %c0_i32_1 = arith.constant 0 : i32
    return %c0_i32, %c0_i32_0 : i32, i32
  }
  func.func @transform_8(%arg0: i32) -> (i32, i32) {
    %c0_i32 = arith.constant 0 : i32
    %c0_i32_0 = arith.constant 0 : i32
    %c0_i32_1 = arith.constant 0 : i32
    return %c0_i32, %c0_i32_0 : i32, i32
  }
  func.func @transform_9(%arg0: i32) -> (i32, i32) {
    %c0_i32 = arith.constant 0 : i32
    %c0_i32_0 = arith.constant 0 : i32
    %c0_i32_1 = arith.constant 0 : i32
    return %c0_i32, %c0_i32_0 : i32, i32
  }
  func.func @transform_10(%arg0: i32) -> (i32, i32) {
    %c0_i32 = arith.constant 0 : i32
    %c0_i32_0 = arith.constant 0 : i32
    %c0_i32_1 = arith.constant 0 : i32
    return %c0_i32, %c0_i32_0 : i32, i32
  }
  func.func @transform_11(%arg0: i32) -> (i32, i32) {
    %c0_i32 = arith.constant 0 : i32
    %c0_i32_0 = arith.constant 0 : i32
    %c0_i32_1 = arith.constant 0 : i32
    return %c0_i32, %c0_i32_0 : i32, i32
  }
  func.func @transform_12(%arg0: i32) -> (i32, i32) {
    %c0_i32 = arith.constant 0 : i32
    %c0_i32_0 = arith.constant 0 : i32
    %c0_i32_1 = arith.constant 0 : i32
    return %c0_i32, %c0_i32_0 : i32, i32
  }
  func.func @transform_13(%arg0: i32) -> (i32, i32) {
    %c0_i32 = arith.constant 0 : i32
    %c0_i32_0 = arith.constant 0 : i32
    %c0_i32_1 = arith.constant 0 : i32
    return %c0_i32, %c0_i32_0 : i32, i32
  }
  func.func @transform_14(%arg0: i32) -> i32 {
    %c0_i32 = arith.constant 0 : i32
    %c0_i32_0 = arith.constant 0 : i32
    return %c0_i32 : i32
  }
  func.func @transform_15(%arg0: i32) -> (i32, i32, i32) {
    %c0_i32 = arith.constant 0 : i32
    %c0_i32_0 = arith.constant 0 : i32
    %c0_i32_1 = arith.constant 0 : i32
    return %arg0, %c0_i32, %c0_i32_0 : i32, i32, i32
  }
}

</mosaic_0001>

<llo_original>
// kernel: adaptive_freq_denoise_block.1
$region0: #{adaptive_freq_denoise_block.1}
  #allocation0 [shape = 'u32[]', space=smem, size = 0x4, offset = 0x4, fixed_abs, tag = 'smem constant byte address 0x4 - core index']
  #allocation1 [shape = 'u32[144,128]{1,0:T(1,128)}', space=vmem, size = 0x12000, scoped, tag = 'internal scratch']
  %s0 = inlined_call_operand.vmem [shape: f32[4,8,128], index: 0, kind: input, shape index: {}]
  %s1 = inlined_call_operand.vmem [shape: f32[128,128], index: 1, kind: input, shape index: {}]
  %s2 = inlined_call_operand.vmem [shape: f32[128,128], index: 2, kind: input, shape index: {}]
  %s3 = inlined_call_operand.vmem [shape: f32[1,128], index: 3, kind: input, shape index: {}]
  %s4 = inlined_call_operand.vmem [shape: f32[1,128], index: 4, kind: input, shape index: {}]
  %s5 = inlined_call_operand.vmem [shape: f32[5,128], index: 5, kind: input, shape index: {}]
  %s6 = inlined_call_operand.vmem [shape: f32[5,128], index: 6, kind: input, shape index: {}]
  %s7 = inlined_call_operand.vmem [shape: f32[1,128], index: 7, kind: input, shape index: {}]
  %s8 = inlined_call_operand.vmem [shape: f32[1,128], index: 8, kind: input, shape index: {}]
  %s9 = inlined_call_operand.vmem [shape: f32[3,128], index: 9, kind: input, shape index: {}]
  %s10 = inlined_call_operand.vmem [shape: f32[3,128], index: 10, kind: input, shape index: {}]
  %s11 = inlined_call_operand.vmem [shape: f32[1,128], index: 11, kind: input, shape index: {}]
  %s12 = inlined_call_operand.vmem [shape: f32[3,128], index: 12, kind: input, shape index: {}]
  %s13 = inlined_call_operand.vmem [shape: f32[1,128], index: 13, kind: input, shape index: {}]
  %s14 = inlined_call_operand.vmem [shape: f32[3], index: 14, kind: input, shape index: {}]
  %s15 = inlined_call_operand.hbm [shape: f32[4,8,128], index: 15, kind: output, shape index: {}]
  %s16 = sld [smem:[#allocation0]]
  $region97: #{adaptive_freq_denoise_block.1} parent=0
    _
  %s18 = ssub.s32 1, %s16
  %s19 = scalar_select 0, %s18, %s16
  $region1: #{adaptive_freq_denoise_block.1} parent=0
    #allocation2 [shape = 'u8[512]{0}', space=smem, size = 0x200, scoped, tag = 'input window, operand 14, single buffered']
    #allocation3 [shape = 's32[2]{0}', space=sflag, size = 0x8, scoped, tag = 'scoped memory for adaptive_freq_denoise_block.1']
    #allocation4 [shape = 's32[2]{0}', space=sflag, size = 0x8, scoped, tag = 'scoped memory for adaptive_freq_denoise_block.1']
    #allocation5 [shape = 'u8[16384]{0}', space=vmem, size = 0x4000, scoped, tag = 'output window, operand 0']
    %20 = vsyncpa [#allocation4], 0
    %21 = vsyncpa [#allocation3], 0
    %s22 = scalar_lea.sflag [#allocation3], 1
    %23 = vsyncpa %s22, 0
    loop: start=0, step=1, limit=4
    $region2: #{adaptive_freq_denoise_block.1} parent=1 // loop_pre_header
      _
    $region3: #{adaptive_freq_denoise_block.1} parent=1 // loop_header
      %s25 = sphi 0, %s29
      %p26 = scmp.ge.s32.totalorder %s25, 4
      %s35 = sphi 0, %s37
      %s38 = sphi 0, %s35
      %s39 = sphi 0, %s38
      %s55 = sphi 0, %s39
      %s59 = sphi 0, %s59
      %s61 = sphi 0, %s59
      %s62 = sphi 0, %s61
      %s76 = sphi 0, %s62
      %s80 = sphi 0, %s80
      %s82 = sphi 0, %s80
      %s83 = sphi 0, %s82
      %s97 = sphi 0, %s83
      %s101 = sphi 0, %s101
      %s103 = sphi 0, %s101
      %s104 = sphi 0, %s103
      %s118 = sphi 0, %s104
      %s122 = sphi 0, %s122
      %s124 = sphi 0, %s122
      %s125 = sphi 0, %s124
      %s139 = sphi 0, %s125
      %s143 = sphi 0, %s143
      %s145 = sphi 0, %s143
      %s146 = sphi 0, %s145
      %s160 = sphi 0, %s146
      %s164 = sphi 0, %s164
      %s166 = sphi 0, %s164
      %s167 = sphi 0, %s166
      %s181 = sphi 0, %s167
      %s185 = sphi 0, %s185
      %s187 = sphi 0, %s185
      %s188 = sphi 0, %s187
      %s202 = sphi 0, %s188
      %s206 = sphi 0, %s206
      %s208 = sphi 0, %s206
      %s209 = sphi 0, %s208
      %s223 = sphi 0, %s209
      %s227 = sphi 0, %s227
      %s229 = sphi 0, %s227
      %s230 = sphi 0, %s229
      %s244 = sphi 0, %s230
      %s248 = sphi 0, %s248
      %s250 = sphi 0, %s248
      %s251 = sphi 0, %s250
      %s265 = sphi 0, %s251
      %s269 = sphi 0, %s269
      %s271 = sphi 0, %s269
      %s272 = sphi 0, %s271
      %s286 = sphi 0, %s272
      %s290 = sphi 0, %s290
      %s292 = sphi 0, %s290
      %s293 = sphi 0, %s292
      %s307 = sphi 0, %s293
      %s311 = sphi 0, %s311
      %s313 = sphi 0, %s311
      %s314 = sphi 0, %s313
      %s328 = sphi 0, %s314
      %s332 = sphi 0, %s332
      %s334 = sphi 0, %s332
      %s335 = sphi 0, %s334
      %s349 = sphi 0, %s335
      %s355 = sphi 0, %s357
      %s358 = sphi 0, %s355
      %s359 = sphi 0, %s358
      %s375 = sphi 0, %s359
    $region4: #{adaptive_freq_denoise_block.1} parent=1 // loop_header_branch
      %28 = sbr.rel (%p26) target = $region8
    $region5: #{adaptive_freq_denoise_block.1} parent=1 // loop_body
      %s30 = ssub.s32 %s25, 1
      %s31 = ssub.s32 %s25, 2
      %s32 = sadd.s32 %s25, 1
      %s33 = ssub.s32 %s25, %s32
      %p34 = scmp.eq.s32.totalorder %s33, 0
      %s36 = sadd.s32 %s35, 1
      %s37 = scalar_select %p34, %s35, %s36
      %p40 = pneg %p34
      %p41 = scmp.eq.s32.totalorder %s25, 1
      %p42 = por %p40, %p41
      %p43 = scmp.ne.s32.totalorder %s35, %s38
      %p44 = scmp.eq.s32.totalorder %s25, 0
      %p45 = por %p43, %p44
      %p46 = scmp.ne.s32.totalorder %s35, %s38
      %p47 = scmp.eq.s32.totalorder %s30, 1
      %p48 = por %p46, %p47
      %p49 = scmp.ne.s32.totalorder %s38, %s39
      %p50 = scmp.eq.s32.totalorder %s30, 0
      %p51 = por %p49, %p50
      %p52 = scmp.ne.s32.totalorder %s38, %s39
      %p53 = scmp.eq.s32.totalorder %s31, 1
      %p54 = por %p52, %p53
      %p56 = scmp.ne.s32.totalorder %s39, %s55
      %p57 = scmp.eq.s32.totalorder %s31, 0
      %p58 = por %p56, %p57
      %s60 = sadd.s32 %s59, 1
      %p63 = scmp.eq.s32.totalorder %s25, 1
      %p64 = scmp.ne.s32.totalorder %s59, %s61
      %p65 = scmp.eq.s32.totalorder %s25, 0
      %p66 = por %p64, %p65
      %p67 = scmp.ne.s32.totalorder %s59, %s61
      %p68 = scmp.eq.s32.totalorder %s30, 1
      %p69 = por %p67, %p68
      %p70 = scmp.ne.s32.totalorder %s61, %s62
      %p71 = scmp.eq.s32.totalorder %s30, 0
      %p72 = por %p70, %p71
      %p73 = scmp.ne.s32.totalorder %s61, %s62
      %p74 = scmp.eq.s32.totalorder %s31, 1
      %p75 = por %p73, %p74
      %p77 = scmp.ne.s32.totalorder %s62, %s76
      %p78 = scmp.eq.s32.totalorder %s31, 0
      %p79 = por %p77, %p78
      %s81 = sadd.s32 %s80, 1
      %p84 = scmp.eq.s32.totalorder %s25, 1
      %p85 = scmp.ne.s32.totalorder %s80, %s82
      %p86 = scmp.eq.s32.totalorder %s25, 0
      %p87 = por %p85, %p86
      %p88 = scmp.ne.s32.totalorder %s80, %s82
      %p89 = scmp.eq.s32.totalorder %s30, 1
      %p90 = por %p88, %p89
      %p91 = scmp.ne.s32.totalorder %s82, %s83
      %p92 = scmp.eq.s32.totalorder %s30, 0
      %p93 = por %p91, %p92
      %p94 = scmp.ne.s32.totalorder %s82, %s83
      %p95 = scmp.eq.s32.totalorder %s31, 1
      %p96 = por %p94, %p95
      %p98 = scmp.ne.s32.totalorder %s83, %s97
      %p99 = scmp.eq.s32.totalorder %s31, 0
      %p100 = por %p98, %p99
      %s102 = sadd.s32 %s101, 1
      %p105 = scmp.eq.s32.totalorder %s25, 1
      %p106 = scmp.ne.s32.totalorder %s101, %s103
      %p107 = scmp.eq.s32.totalorder %s25, 0
      %p108 = por %p106, %p107
      %p109 = scmp.ne.s32.totalorder %s101, %s103
      %p110 = scmp.eq.s32.totalorder %s30, 1
      %p111 = por %p109, %p110
      %p112 = scmp.ne.s32.totalorder %s103, %s104
      %p113 = scmp.eq.s32.totalorder %s30, 0
      %p114 = por %p112, %p113
      %p115 = scmp.ne.s32.totalorder %s103, %s104
      %p116 = scmp.eq.s32.totalorder %s31, 1
      %p117 = por %p115, %p116
      %p119 = scmp.ne.s32.totalorder %s104, %s118
      %p120 = scmp.eq.s32.totalorder %s31, 0
      %p121 = por %p119, %p120
      %s123 = sadd.s32 %s122, 1
      %p126 = scmp.eq.s32.totalorder %s25, 1
      %p127 = scmp.ne.s32.totalorder %s122, %s124
      %p128 = scmp.eq.s32.totalorder %s25, 0
      %p129 = por %p127, %p128
      %p130 = scmp.ne.s32.totalorder %s122, %s124
      %p131 = scmp.eq.s32.totalorder %s30, 1
      %p132 = por %p130, %p131
      %p133 = scmp.ne.s32.totalorder %s124, %s125
      %p134 = scmp.eq.s32.totalorder %s30, 0
      %p135 = por %p133, %p134
      %p136 = scmp.ne.s32.totalorder %s124, %s125
      %p137 = scmp.eq.s32.totalorder %s31, 1
      %p138 = por %p136, %p137
      %p140 = scmp.ne.s32.totalorder %s125, %s139
      %p141 = scmp.eq.s32.totalorder %s31, 0
      %p142 = por %p140, %p141
      %s144 = sadd.s32 %s143, 1
      %p147 = scmp.eq.s32.totalorder %s25, 1
      %p148 = scmp.ne.s32.totalorder %s143, %s145
      %p149 = scmp.eq.s32.totalorder %s25, 0
      %p150 = por %p148, %p149
      %p151 = scmp.ne.s32.totalorder %s143, %s145
      %p152 = scmp.eq.s32.totalorder %s30, 1
      %p153 = por %p151, %p152
      %p154 = scmp.ne.s32.totalorder %s145, %s146
      %p155 = scmp.eq.s32.totalorder %s30, 0
      %p156 = por %p154, %p155
      %p157 = scmp.ne.s32.totalorder %s145, %s146
      %p158 = scmp.eq.s32.totalorder %s31, 1
      %p159 = por %p157, %p158
      %p161 = scmp.ne.s32.totalorder %s146, %s160
      %p162 = scmp.eq.s32.totalorder %s31, 0
      %p163 = por %p161, %p162
      %s165 = sadd.s32 %s164, 1
      %p168 = scmp.eq.s32.totalorder %s25, 1
      %p169 = scmp.ne.s32.totalorder %s164, %s166
      %p170 = scmp.eq.s32.totalorder %s25, 0
      %p171 = por %p169, %p170
      %p172 = scmp.ne.s32.totalorder %s164, %s166
      %p173 = scmp.eq.s32.totalorder %s30, 1
      %p174 = por %p172, %p173
      %p175 = scmp.ne.s32.totalorder %s166, %s167
      %p176 = scmp.eq.s32.totalorder %s30, 0
      %p177 = por %p175, %p176
      %p178 = scmp.ne.s32.totalorder %s166, %s167
      %p179 = scmp.eq.s32.totalorder %s31, 1
      %p180 = por %p178, %p179
      %p182 = scmp.ne.s32.totalorder %s167, %s181
      %p183 = scmp.eq.s32.totalorder %s31, 0
      %p184 = por %p182, %p183
      %s186 = sadd.s32 %s185, 1
      %p189 = scmp.eq.s32.totalorder %s25, 1
      %p190 = scmp.ne.s32.totalorder %s185, %s187
      %p191 = scmp.eq.s32.totalorder %s25, 0
      %p192 = por %p190, %p191
      %p193 = scmp.ne.s32.totalorder %s185, %s187
      %p194 = scmp.eq.s32.totalorder %s30, 1
      %p195 = por %p193, %p194
      %p196 = scmp.ne.s32.totalorder %s187, %s188
      %p197 = scmp.eq.s32.totalorder %s30, 0
      %p198 = por %p196, %p197
      %p199 = scmp.ne.s32.totalorder %s187, %s188
      %p200 = scmp.eq.s32.totalorder %s31, 1
      %p201 = por %p199, %p200
      %p203 = scmp.ne.s32.totalorder %s188, %s202
      %p204 = scmp.eq.s32.totalorder %s31, 0
      %p205 = por %p203, %p204
      %s207 = sadd.s32 %s206, 1
      %p210 = scmp.eq.s32.totalorder %s25, 1
      %p211 = scmp.ne.s32.totalorder %s206, %s208
      %p212 = scmp.eq.s32.totalorder %s25, 0
      %p213 = por %p211, %p212
      %p214 = scmp.ne.s32.totalorder %s206, %s208
      %p215 = scmp.eq.s32.totalorder %s30, 1
      %p216 = por %p214, %p215
      %p217 = scmp.ne.s32.totalorder %s208, %s209
      %p218 = scmp.eq.s32.totalorder %s30, 0
      %p219 = por %p217, %p218
      %p220 = scmp.ne.s32.totalorder %s208, %s209
      %p221 = scmp.eq.s32.totalorder %s31, 1
      %p222 = por %p220, %p221
      %p224 = scmp.ne.s32.totalorder %s209, %s223
      %p225 = scmp.eq.s32.totalorder %s31, 0
      %p226 = por %p224, %p225
      %s228 = sadd.s32 %s227, 1
      %p231 = scmp.eq.s32.totalorder %s25, 1
      %p232 = scmp.ne.s32.totalorder %s227, %s229
      %p233 = scmp.eq.s32.totalorder %s25, 0
      %p234 = por %p232, %p233
      %p235 = scmp.ne.s32.totalorder %s227, %s229
      %p236 = scmp.eq.s32.totalorder %s30, 1
      %p237 = por %p235, %p236
      %p238 = scmp.ne.s32.totalorder %s229, %s230
      %p239 = scmp.eq.s32.totalorder %s30, 0
      %p240 = por %p238, %p239
      %p241 = scmp.ne.s32.totalorder %s229, %s230
      %p242 = scmp.eq.s32.totalorder %s31, 1
      %p243 = por %p241, %p242
      %p245 = scmp.ne.s32.totalorder %s230, %s244
      %p246 = scmp.eq.s32.totalorder %s31, 0
      %p247 = por %p245, %p246
      %s249 = sadd.s32 %s248, 1
      %p252 = scmp.eq.s32.totalorder %s25, 1
      %p253 = scmp.ne.s32.totalorder %s248, %s250
      %p254 = scmp.eq.s32.totalorder %s25, 0
      %p255 = por %p253, %p254
      %p256 = scmp.ne.s32.totalorder %s248, %s250
      %p257 = scmp.eq.s32.totalorder %s30, 1
      %p258 = por %p256, %p257
      %p259 = scmp.ne.s32.totalorder %s250, %s251
      %p260 = scmp.eq.s32.totalorder %s30, 0
      %p261 = por %p259, %p260
      %p262 = scmp.ne.s32.totalorder %s250, %s251
      %p263 = scmp.eq.s32.totalorder %s31, 1
      %p264 = por %p262, %p263
      %p266 = scmp.ne.s32.totalorder %s251, %s265
      %p267 = scmp.eq.s32.totalorder %s31, 0
      %p268 = por %p266, %p267
      %s270 = sadd.s32 %s269, 1
      %p273 = scmp.eq.s32.totalorder %s25, 1
      %p274 = scmp.ne.s32.totalorder %s269, %s271
      %p275 = scmp.eq.s32.totalorder %s25, 0
      %p276 = por %p274, %p275
      %p277 = scmp.ne.s32.totalorder %s269, %s271
      %p278 = scmp.eq.s32.totalorder %s30, 1
      %p279 = por %p277, %p278
      %p280 = scmp.ne.s32.totalorder %s271, %s272
      %p281 = scmp.eq.s32.totalorder %s30, 0
      %p282 = por %p280, %p281
      %p283 = scmp.ne.s32.totalorder %s271, %s272
      %p284 = scmp.eq.s32.totalorder %s31, 1
      %p285 = por %p283, %p284
      %p287 = scmp.ne.s32.totalorder %s272, %s286
      %p288 = scmp.eq.s32.totalorder %s31, 0
      %p289 = por %p287, %p288
      %s291 = sadd.s32 %s290, 1
      %p294 = scmp.eq.s32.totalorder %s25, 1
      %p295 = scmp.ne.s32.totalorder %s290, %s292
      %p296 = scmp.eq.s32.totalorder %s25, 0
      %p297 = por %p295, %p296
      %p298 = scmp.ne.s32.totalorder %s290, %s292
      %p299 = scmp.eq.s32.totalorder %s30, 1
      %p300 = por %p298, %p299
      %p301 = scmp.ne.s32.totalorder %s292, %s293
      %p302 = scmp.eq.s32.totalorder %s30, 0
      %p303 = por %p301, %p302
      %p304 = scmp.ne.s32.totalorder %s292, %s293
      %p305 = scmp.eq.s32.totalorder %s31, 1
      %p306 = por %p304, %p305
      %p308 = scmp.ne.s32.totalorder %s293, %s307
      %p309 = scmp.eq.s32.totalorder %s31, 0
      %p310 = por %p308, %p309
      %s312 = sadd.s32 %s311, 1
      %p315 = scmp.eq.s32.totalorder %s25, 1
      %p316 = scmp.ne.s32.totalorder %s311, %s313
      %p317 = scmp.eq.s32.totalorder %s25, 0
      %p318 = por %p316, %p317
      %p319 = scmp.ne.s32.totalorder %s311, %s313
      %p320 = scmp.eq.s32.totalorder %s30, 1
      %p321 = por %p319, %p320
      %p322 = scmp.ne.s32.totalorder %s313, %s314
      %p323 = scmp.eq.s32.totalorder %s30, 0
      %p324 = por %p322, %p323
      %p325 = scmp.ne.s32.totalorder %s313, %s314
      %p326 = scmp.eq.s32.totalorder %s31, 1
      %p327 = por %p325, %p326
      %p329 = scmp.ne.s32.totalorder %s314, %s328
      %p330 = scmp.eq.s32.totalorder %s31, 0
      %p331 = por %p329, %p330
      %s333 = sadd.s32 %s332, 1
      %p336 = scmp.eq.s32.totalorder %s25, 1
      %p337 = scmp.ne.s32.totalorder %s332, %s334
      %p338 = scmp.eq.s32.totalorder %s25, 0
      %p339 = por %p337, %p338
      %p340 = scmp.ne.s32.totalorder %s332, %s334
      %p341 = scmp.eq.s32.totalorder %s30, 1
      %p342 = por %p340, %p341
      %p343 = scmp.ne.s32.totalorder %s334, %s335
      %p344 = scmp.eq.s32.totalorder %s30, 0
      %p345 = por %p343, %p344
      %p346 = scmp.ne.s32.totalorder %s334, %s335
      %p347 = scmp.eq.s32.totalorder %s31, 1
      %p348 = por %p346, %p347
      %p350 = scmp.ne.s32.totalorder %s335, %s349
      %p351 = scmp.eq.s32.totalorder %s31, 0
      %p352 = por %p350, %p351
      %s353 = ssub.s32 %s25, %s32
      %p354 = scmp.eq.s32.totalorder %s353, 0
      %s356 = sadd.s32 %s355, 1
      %s357 = scalar_select %p354, %s355, %s356
      %p360 = pneg %p354
      %p361 = scmp.eq.s32.totalorder %s25, 1
      %p362 = por %p360, %p361
      %p363 = scmp.ne.s32.totalorder %s355, %s358
      %p364 = scmp.eq.s32.totalorder %s25, 0
      %p365 = por %p363, %p364
      %p366 = scmp.ne.s32.totalorder %s355, %s358
      %p367 = scmp.eq.s32.totalorder %s30, 1
      %p368 = por %p366, %p367
      %p369 = scmp.ne.s32.totalorder %s358, %s359
      %p370 = scmp.eq.s32.totalorder %s30, 0
      %p371 = por %p369, %p370
      %p372 = scmp.ne.s32.totalorder %s358, %s359
      %p373 = scmp.eq.s32.totalorder %s31, 1
      %p374 = por %p372, %p373
      %p376 = scmp.ne.s32.totalorder %s359, %s375
      %p377 = scmp.eq.s32.totalorder %s31, 0
      %p378 = por %p376, %p377
      %p379 = scmp.le.s32.totalorder 1, %s25
      %p380 = scmp.lt.s32.totalorder %s25, 3
      %p381 = pnand %p379, %p380
      %p382 = pneg %p381
      // Predicated region
      $region9: #{adaptive_freq_denoise_block.1} parent=5 // pred_check
        _
      $region10: #{adaptive_freq_denoise_block.1} parent=5 // pred_check_branch
        %384 = sbr.rel (%p381) target = $region12
      $region11: #{adaptive_freq_denoise_block.1} parent=5 // pred_region
        %s385 = ssub.s32 %s25, 1
        // Predicated region
        $region13: #{adaptive_freq_denoise_block.1} parent=11 // pred_check
          %p386 = pneg %p72
        $region14: #{adaptive_freq_denoise_block.1} parent=11 // pred_check_branch
          %388 = sbr.rel (%p386) target = $region16
        $region15: #{adaptive_freq_denoise_block.1} parent=11 // pred_region
          _
        $region16: #{adaptive_freq_denoise_block.1} parent=11 // pred_fallthru
          _
        // Predicated region
        $region17: #{adaptive_freq_denoise_block.1} parent=11 // pred_check
          %p389 = pneg %p93
        $region18: #{adaptive_freq_denoise_block.1} parent=11 // pred_check_branch
          %391 = sbr.rel (%p389) target = $region20
        $region19: #{adaptive_freq_denoise_block.1} parent=11 // pred_region
          _
        $region20: #{adaptive_freq_denoise_block.1} parent=11 // pred_fallthru
          _
        // Predicated region
        $region21: #{adaptive_freq_denoise_block.1} parent=11 // pred_check
          %p392 = pneg %p114
        $region22: #{adaptive_freq_denoise_block.1} parent=11 // pred_check_branch
          %394 = sbr.rel (%p392) target = $region24
        $region23: #{adaptive_freq_denoise_block.1} parent=11 // pred_region
          _
        $region24: #{adaptive_freq_denoise_block.1} parent=11 // pred_fallthru
          _
        // Predicated region
        $region25: #{adaptive_freq_denoise_block.1} parent=11 // pred_check
          %p395 = pneg %p135
        $region26: #{adaptive_freq_denoise_block.1} parent=11 // pred_check_branch
          %397 = sbr.rel (%p395) target = $region28
        $region27: #{adaptive_freq_denoise_block.1} parent=11 // pred_region
          _
        $region28: #{adaptive_freq_denoise_block.1} parent=11 // pred_fallthru
          _
        // Predicated region
        $region29: #{adaptive_freq_denoise_block.1} parent=11 // pred_check
          %p398 = pneg %p156
        $region30: #{adaptive_freq_denoise_block.1} parent=11 // pred_check_branch
          %400 = sbr.rel (%p398) target = $region32
        $region31: #{adaptive_freq_denoise_block.1} parent=11 // pred_region
          _
        $region32: #{adaptive_freq_denoise_block.1} parent=11 // pred_fallthru
          _
        // Predicated region
        $region33: #{adaptive_freq_denoise_block.1} parent=11 // pred_check
          %p401 = pneg %p177
        $region34: #{adaptive_freq_denoise_block.1} parent=11 // pred_check_branch
          %403 = sbr.rel (%p401) target = $region36
        $region35: #{adaptive_freq_denoise_block.1} parent=11 // pred_region
          _
        $region36: #{adaptive_freq_denoise_block.1} parent=11 // pred_fallthru
          _
        // Predicated region
        $region37: #{adaptive_freq_denoise_block.1} parent=11 // pred_check
          %p404 = pneg %p198
        $region38: #{adaptive_freq_denoise_block.1} parent=11 // pred_check_branch
          %406 = sbr.rel (%p404) target = $region40
        $region39: #{adaptive_freq_denoise_block.1} parent=11 // pred_region
          _
        $region40: #{adaptive_freq_denoise_block.1} parent=11 // pred_fallthru
          _
        // Predicated region
        $region41: #{adaptive_freq_denoise_block.1} parent=11 // pred_check
          %p407 = pneg %p219
        $region42: #{adaptive_freq_denoise_block.1} parent=11 // pred_check_branch
          %409 = sbr.rel (%p407) target = $region44
        $region43: #{adaptive_freq_denoise_block.1} parent=11 // pred_region
          _
        $region44: #{adaptive_freq_denoise_block.1} parent=11 // pred_fallthru
          _
        // Predicated region
        $region45: #{adaptive_freq_denoise_block.1} parent=11 // pred_check
          %p410 = pneg %p240
        $region46: #{adaptive_freq_denoise_block.1} parent=11 // pred_check_branch
          %412 = sbr.rel (%p410) target = $region48
        $region47: #{adaptive_freq_denoise_block.1} parent=11 // pred_region
          _
        $region48: #{adaptive_freq_denoise_block.1} parent=11 // pred_fallthru
          _
        // Predicated region
        $region49: #{adaptive_freq_denoise_block.1} parent=11 // pred_check
          %p413 = pneg %p261
        $region50: #{adaptive_freq_denoise_block.1} parent=11 // pred_check_branch
          %415 = sbr.rel (%p413) target = $region52
        $region51: #{adaptive_freq_denoise_block.1} parent=11 // pred_region
          _
        $region52: #{adaptive_freq_denoise_block.1} parent=11 // pred_fallthru
          _
        // Predicated region
        $region53: #{adaptive_freq_denoise_block.1} parent=11 // pred_check
          %p416 = pneg %p282
        $region54: #{adaptive_freq_denoise_block.1} parent=11 // pred_check_branch
          %418 = sbr.rel (%p416) target = $region56
        $region55: #{adaptive_freq_denoise_block.1} parent=11 // pred_region
          _
        $region56: #{adaptive_freq_denoise_block.1} parent=11 // pred_fallthru
          _
        // Predicated region
        $region57: #{adaptive_freq_denoise_block.1} parent=11 // pred_check
          %p419 = pneg %p303
        $region58: #{adaptive_freq_denoise_block.1} parent=11 // pred_check_branch
          %421 = sbr.rel (%p419) target = $region60
        $region59: #{adaptive_freq_denoise_block.1} parent=11 // pred_region
          _
        $region60: #{adaptive_freq_denoise_block.1} parent=11 // pred_fallthru
          _
        // Predicated region
        $region61: #{adaptive_freq_denoise_block.1} parent=11 // pred_check
          %p422 = pneg %p324
        $region62: #{adaptive_freq_denoise_block.1} parent=11 // pred_check_branch
          %424 = sbr.rel (%p422) target = $region64
        $region63: #{adaptive_freq_denoise_block.1} parent=11 // pred_region
          _
        $region64: #{adaptive_freq_denoise_block.1} parent=11 // pred_fallthru
          _
        // Predicated region
        $region65: #{adaptive_freq_denoise_block.1} parent=11 // pred_check
          %p425 = pneg %p345
        $region66: #{adaptive_freq_denoise_block.1} parent=11 // pred_check_branch
          %427 = sbr.rel (%p425) target = $region68
        $region67: #{adaptive_freq_denoise_block.1} parent=11 // pred_region
          %s429 = ssub.s32 16, 16
          %430 = vsyncadd [#allocation4], %s429
          %s432 = sshll.u32 %s14, 4
          %s433 = int_to_ptr.vmem [resolvable:$true] %s432
          %435 = dma.vmem_to_smem %s433, 16, [#allocation2], [#allocation4]
        $region68: #{adaptive_freq_denoise_block.1} parent=11 // pred_fallthru
          _
      $region12: #{adaptive_freq_denoise_block.1} parent=5 // pred_fallthru
        _
      %p436 = scmp.lt.s32.totalorder %s25, 2
      // Predicated region
      $region69: #{adaptive_freq_denoise_block.1} parent=5 // pred_check
        %p437 = pneg %p436
      $region70: #{adaptive_freq_denoise_block.1} parent=5 // pred_check_branch
        %439 = sbr.rel (%p437) target = $region72
      $region71: #{adaptive_freq_denoise_block.1} parent=5 // pred_region
        // Predicated region
        $region73: #{adaptive_freq_denoise_block.1} parent=71 // pred_check
          %p440 = pneg %p45
        $region74: #{adaptive_freq_denoise_block.1} parent=71 // pred_check_branch
          %442 = sbr.rel (%p440) target = $region76
        $region75: #{adaptive_freq_denoise_block.1} parent=71 // pred_region
          %s443 = smul.u32 2, %s25
          %p444 = scmp.lt.s32.totalorder %s443, 3
          %s445 = scalar_select %p444, %s443, 3
          %s446 = smul.addr %s445, 8
          %s447 = scalar_lea.vmem %s0, %s446
          %s448 = smul.u32 2, %s25
        $region76: #{adaptive_freq_denoise_block.1} parent=71 // pred_fallthru
          _
      $region72: #{adaptive_freq_denoise_block.1} parent=5 // pred_fallthru
        _
      %p449 = scmp.le.s32.totalorder 1, %s25
      %p450 = scmp.lt.s32.totalorder %s25, 3
      %p451 = pnand %p449, %p450
      %p452 = pneg %p451
      // Predicated region
      $region77: #{adaptive_freq_denoise_block.1} parent=5 // pred_check
        _
      $region78: #{adaptive_freq_denoise_block.1} parent=5 // pred_check_branch
        %454 = sbr.rel (%p451) target = $region80
      $region79: #{adaptive_freq_denoise_block.1} parent=5 // pred_region
        %s455 = ssub.s32 %s25, 1
        // Predicated region
        $region81: #{adaptive_freq_denoise_block.1} parent=79 // pred_check
          %p456 = pneg %p345
        $region82: #{adaptive_freq_denoise_block.1} parent=79 // pred_check_branch
          %458 = sbr.rel (%p456) target = $region84
        $region83: #{adaptive_freq_denoise_block.1} parent=79 // pred_region
          %459 = dma.done [#allocation4], 16
        $region84: #{adaptive_freq_denoise_block.1} parent=79 // pred_fallthru
          _
        %460 = sfence
        %s461 = smul.u32 2, %s30
        %p462 = scmp.lt.s32.totalorder %s461, 3
        %s463 = scalar_select %p462, %s461, 3
        %s464 = smul.addr %s463, 8
        %s465 = scalar_lea.vmem %s0, %s464
        %p466 = pneg %p51
        %p467 = pneg %p48
        %p468 = pneg %p72
        %p469 = pneg %p69
        %p470 = pneg %p93
        %p471 = pneg %p90
        %p472 = pneg %p114
        %p473 = pneg %p111
        %p474 = pneg %p135
        %p475 = pneg %p132
        %p476 = pneg %p156
        %p477 = pneg %p153
        %p478 = pneg %p177
        %p479 = pneg %p174
        %p480 = pneg %p198
        %p481 = pneg %p195
        %p482 = pneg %p219
        %p483 = pneg %p216
        %p484 = pneg %p240
        %p485 = pneg %p237
        %p486 = pneg %p261
        %p487 = pneg %p258
        %p488 = pneg %p282
        %p489 = pneg %p279
        %p490 = pneg %p303
        %p491 = pneg %p300
        %p492 = pneg %p324
        %p493 = pneg %p321
        %p494 = pneg %p345
        %p495 = pneg %p342
        %p496 = pneg %p371
        %p497 = pneg %p368
        %s498 = sand.u32 %s358, 1
        %s499 = scalar_lea.sflag [#allocation3], %s498
        %s500 = sand.u32 %s358, 1
        %s501 = smul.addr %s500, 16
        %s502 = scalar_lea.vmem [#allocation5], %s501
        %s503 = smul.u32 2, %s30
        %p504 = scmp.lt.s32.totalorder %s503, 3
        %s505 = scalar_select %p504, %s503, 3
        %s506 = smul.addr %s505, 8
        %s507 = scalar_lea.vmem %s0, %s506
        %s508 = smul.u32 2, %s30
        %s509 = smul.u32 2, %s30
        %v510 = vlaneseq
        %v511 = vshrl.u32 %v510, 7
        %v512 = vld [vmem:[%s507] sm:$0xff]
        %v513 = vld [vmem:[%s507 + $0x8] sm:$0xff]
        %v514 = vld [vmem:[%s1] sm:$0xff]
        %v515 = vld [vmem:[%s1 + $0x8] sm:$0xff]
        %v516 = vld [vmem:[%s1 + $0x10] sm:$0xff]
        %v517 = vld [vmem:[%s1 + $0x18] sm:$0xff]
        %v518 = vld [vmem:[%s1 + $0x20] sm:$0xff]
        %v519 = vld [vmem:[%s1 + $0x28] sm:$0xff]
        %v520 = vld [vmem:[%s1 + $0x30] sm:$0xff]
        %v521 = vld [vmem:[%s1 + $0x38] sm:$0xff]
        %v522 = vld [vmem:[%s1 + $0x40] sm:$0xff]
        %v523 = vld [vmem:[%s1 + $0x48] sm:$0xff]
        %v524 = vld [vmem:[%s1 + $0x50] sm:$0xff]
        %v525 = vld [vmem:[%s1 + $0x58] sm:$0xff]
        %v526 = vld [vmem:[%s1 + $0x60] sm:$0xff]
        %v527 = vld [vmem:[%s1 + $0x68] sm:$0xff]
        %v528 = vld [vmem:[%s1 + $0x70] sm:$0xff]
        %v529 = vld [vmem:[%s1 + $0x78] sm:$0xff]
        %530 = vmatprep.subr.mxu0 0.0
        %v531 = vand.u32 %v529, 4294901760
        %532 = vmatpush1.msra.mxu0 %v531
        %533 = vmatprep.subr.mxu0 0.0
        %v534 = vand.u32 %v528, 4294901760
        %535 = vmatpush1.msra.mxu0 %v534
        %536 = vmatprep.subr.mxu0 0.0
        %v537 = vand.u32 %v527, 4294901760
        %538 = vmatpush1.msra.mxu0 %v537
        %539 = vmatprep.subr.mxu0 0.0
        %v540 = vand.u32 %v526, 4294901760
        %541 = vmatpush1.msra.mxu0 %v540
        %542 = vmatprep.subr.mxu0 0.0
        %v543 = vand.u32 %v525, 4294901760
        %544 = vmatpush1.msra.mxu0 %v543
        %545 = vmatprep.subr.mxu0 0.0
        %v546 = vand.u32 %v524, 4294901760
        %547 = vmatpush1.msra.mxu0 %v546
        %548 = vmatprep.subr.mxu0 0.0
        %v549 = vand.u32 %v523, 4294901760
        %550 = vmatpush1.msra.mxu0 %v549
        %551 = vmatprep.subr.mxu0 0.0
        %v552 = vand.u32 %v522, 4294901760
        %553 = vmatpush1.msra.mxu0 %v552
        %554 = vmatprep.subr.mxu0 0.0
        %v555 = vand.u32 %v521, 4294901760
        %556 = vmatpush1.msra.mxu0 %v555
        %557 = vmatprep.subr.mxu0 0.0
        %v558 = vand.u32 %v520, 4294901760
        %559 = vmatpush1.msra.mxu0 %v558
        %560 = vmatprep.subr.mxu0 0.0
        %v561 = vand.u32 %v519, 4294901760
        %562 = vmatpush1.msra.mxu0 %v561
        %563 = vmatprep.subr.mxu0 0.0
        %v564 = vand.u32 %v518, 4294901760
        %565 = vmatpush1.msra.mxu0 %v564
        %566 = vmatprep.subr.mxu0 0.0
        %v567 = vand.u32 %v517, 4294901760
        %568 = vmatpush1.msra.mxu0 %v567
        %569 = vmatprep.subr.mxu0 0.0
        %v570 = vand.u32 %v516, 4294901760
        %571 = vmatpush1.msra.mxu0 %v570
        %572 = vmatprep.subr.mxu0 0.0
        %v573 = vand.u32 %v515, 4294901760
        %574 = vmatpush1.msra.mxu0 %v573
        %575 = vmatprep.subr.mxu0 0.0
        %v576 = vand.u32 %v514, 4294901760
        %577 = vmatpush1.msra.mxu0 %v576
        %578 = vmatprep.subr.mxu0 0.0
        %579 = vmatpush2.msra.mxu0 0.0
        %580 = vmatprep.subr.mxu0 0.0
        %581 = vmatpush2.msra.mxu0 0.0
        %582 = vmatprep.subr.mxu0 0.0
        %583 = vmatpush2.msra.mxu0 0.0
        %584 = vmatprep.subr.mxu0 0.0
        %585 = vmatpush2.msra.mxu0 0.0
        %586 = vmatprep.subr.mxu0 0.0
        %587 = vmatpush2.msra.mxu0 0.0
        %588 = vmatprep.subr.mxu0 0.0
        %589 = vmatpush2.msra.mxu0 0.0
        %590 = vmatprep.subr.mxu0 0.0
        %591 = vmatpush2.msra.mxu0 0.0
        %592 = vmatprep.subr.mxu0 0.0
        %593 = vmatpush2.msra.mxu0 0.0
        %594 = vmatprep.subr.mxu0 0.0
        %595 = vmatpush2.msra.mxu0 0.0
        %596 = vmatprep.subr.mxu0 0.0
        %597 = vmatpush2.msra.mxu0 0.0
        %598 = vmatprep.subr.mxu0 0.0
        %599 = vmatpush2.msra.mxu0 0.0
        %600 = vmatprep.subr.mxu0 0.0
        %601 = vmatpush2.msra.mxu0 0.0
        %602 = vmatprep.subr.mxu0 0.0
        %603 = vmatpush2.msra.mxu0 0.0
        %604 = vmatprep.subr.mxu0 0.0
        %605 = vmatpush2.msra.mxu0 0.0
        %606 = vmatprep.subr.mxu0 0.0
        %607 = vmatpush2.msra.mxu0 0.0
        %608 = vmatprep.subr.mxu0 0.0
        %609 = vmatpush2.msra.mxu0 0.0
        %610 = vmatprep.mubr.f32.mxu0 0.0
        %v611 = vand.u32 %v512, 4294901760
        %v612 = vsub.f32 %v512, %v611
        %v613 = vand.u32 %v612, 4294901760
        %v614 = vsub.f32 %v612, %v613
        %v615 = vand.u32 %v614, 4294901760
        %616 = vmatmul.mubr.f32.gmra.mxu0 %v615
        %v617 = vpop.f32.mrf.mxu0
        %v618 = vadd.f32 0.0, %v617
        %v619 = vpop.f32.mrf.mxu0
        %620 = vmatprep.mubr.f32.mxu0 0.0
        %v621 = vand.u32 %v513, 4294901760
        %v622 = vsub.f32 %v513, %v621
        %v623 = vand.u32 %v622, 4294901760
        %v624 = vsub.f32 %v622, %v623
        %v625 = vand.u32 %v624, 4294901760
        %626 = vmatmul.mubr.f32.gmra.mxu0 %v625
        %v627 = vpop.f32.mrf.mxu0
        %v628 = vadd.f32 0.0, %v627
        %v629 = vpop.f32.mrf.mxu0
        %630 = vdwg.mxu0
        %631 = vmatprep.subr.mxu0 0.0
        %v632 = vand.u32 %v529, 4294901760
        %v633 = vsub.f32 %v529, %v632
        %v634 = vand.u32 %v633, 4294901760
        %v635 = vsub.f32 %v633, %v634
        %v636 = vand.u32 %v635, 4294901760
        %637 = vmatpush1.msra.mxu0 %v636
        %638 = vmatprep.subr.mxu0 0.0
        %v639 = vand.u32 %v528, 4294901760
        %v640 = vsub.f32 %v528, %v639
        %v641 = vand.u32 %v640, 4294901760
        %v642 = vsub.f32 %v640, %v641
        %v643 = vand.u32 %v642, 4294901760
        %644 = vmatpush1.msra.mxu0 %v643
        %645 = vmatprep.subr.mxu0 0.0
        %v646 = vand.u32 %v527, 4294901760
        %v647 = vsub.f32 %v527, %v646
        %v648 = vand.u32 %v647, 4294901760
        %v649 = vsub.f32 %v647, %v648
        %v650 = vand.u32 %v649, 4294901760
        %651 = vmatpush1.msra.mxu0 %v650
        %652 = vmatprep.subr.mxu0 0.0
        %v653 = vand.u32 %v526, 4294901760
        %v654 = vsub.f32 %v526, %v653
        %v655 = vand.u32 %v654, 4294901760
        %v656 = vsub.f32 %v654, %v655
        %v657 = vand.u32 %v656, 4294901760
        %658 = vmatpush1.msra.mxu0 %v657
        %659 = vmatprep.subr.mxu0 0.0
        %v660 = vand.u32 %v525, 4294901760
        %v661 = vsub.f32 %v525, %v660
        %v662 = vand.u32 %v661, 4294901760
        %v663 = vsub.f32 %v661, %v662
        %v664 = vand.u32 %v663, 4294901760
        %665 = vmatpush1.msra.mxu0 %v664
        %666 = vmatprep.subr.mxu0 0.0
        %v667 = vand.u32 %v524, 4294901760
        %v668 = vsub.f32 %v524, %v667
        %v669 = vand.u32 %v668, 4294901760
        %v670 = vsub.f32 %v668, %v669
        %v671 = vand.u32 %v670, 4294901760
        %672 = vmatpush1.msra.mxu0 %v671
        %673 = vmatprep.subr.mxu0 0.0
        %v674 = vand.u32 %v523, 4294901760
        %v675 = vsub.f32 %v523, %v674
        %v676 = vand.u32 %v675, 4294901760
        %v677 = vsub.f32 %v675, %v676
        %v678 = vand.u32 %v677, 4294901760
        %679 = vmatpush1.msra.mxu0 %v678
        %680 = vmatprep.subr.mxu0 0.0
        %v681 = vand.u32 %v522, 4294901760
        %v682 = vsub.f32 %v522, %v681
        %v683 = vand.u32 %v682, 4294901760
        %v684 = vsub.f32 %v682, %v683
        %v685 = vand.u32 %v684, 4294901760
        %686 = vmatpush1.msra.mxu0 %v685
        %687 = vmatprep.subr.mxu0 0.0
        %v688 = vand.u32 %v521, 4294901760
        %v689 = vsub.f32 %v521, %v688
        %v690 = vand.u32 %v689, 4294901760
        %v691 = vsub.f32 %v689, %v690
        %v692 = vand.u32 %v691, 4294901760
        %693 = vmatpush1.msra.mxu0 %v692
        %694 = vmatprep.subr.mxu0 0.0
        %v695 = vand.u32 %v520, 4294901760
        %v696 = vsub.f32 %v520, %v695
        %v697 = vand.u32 %v696, 4294901760
        %v698 = vsub.f32 %v696, %v697
        %v699 = vand.u32 %v698, 4294901760
        %700 = vmatpush1.msra.mxu0 %v699
        %701 = vmatprep.subr.mxu0 0.0
        %v702 = vand.u32 %v519, 4294901760
        %v703 = vsub.f32 %v519, %v702
        %v704 = vand.u32 %v703, 4294901760
        %v705 = vsub.f32 %v703, %v704
        %v706 = vand.u32 %v705, 4294901760
        %707 = vmatpush1.msra.mxu0 %v706
        %708 = vmatprep.subr.mxu0 0.0
        %v709 = vand.u32 %v518, 4294901760
        %v710 = vsub.f32 %v518, %v709
        %v711 = vand.u32 %v710, 4294901760
        %v712 = vsub.f32 %v710, %v711
        %v713 = vand.u32 %v712, 4294901760
        %714 = vmatpush1.msra.mxu0 %v713
        %715 = vmatprep.subr.mxu0 0.0
        %v716 = vand.u32 %v517, 4294901760
        %v717 = vsub.f32 %v517, %v716
        %v718 = vand.u32 %v717, 4294901760
        %v719 = vsub.f32 %v717, %v718
        %v720 = vand.u32 %v719, 4294901760
        %721 = vmatpush1.msra.mxu0 %v720
        %722 = vmatprep.subr.mxu0 0.0
        %v723 = vand.u32 %v516, 4294901760
        %v724 = vsub.f32 %v516, %v723
        %v725 = vand.u32 %v724, 4294901760
        %v726 = vsub.f32 %v724, %v725
        %v727 = vand.u32 %v726, 4294901760
        %728 = vmatpush1.msra.mxu0 %v727
        %729 = vmatprep.subr.mxu0 0.0
        %v730 = vand.u32 %v515, 4294901760
        %v731 = vsub.f32 %v515, %v730
        %v732 = vand.u32 %v731, 4294901760
        %v733 = vsub.f32 %v731, %v732
        %v734 = vand.u32 %v733, 4294901760
        %735 = vmatpush1.msra.mxu0 %v734
        %736 = vmatprep.subr.mxu0 0.0
        %v737 = vand.u32 %v514, 4294901760
        %v738 = vsub.f32 %v514, %v737
        %v739 = vand.u32 %v738, 4294901760
        %v740 = vsub.f32 %v738, %v739
        %v741 = vand.u32 %v740, 4294901760
        %742 = vmatpush1.msra.mxu0 %v741
        %743 = vmatprep.subr.mxu0 0.0
        %744 = vmatpush2.msra.mxu0 0.0
        %745 = vmatprep.subr.mxu0 0.0
        %746 = vmatpush2.msra.mxu0 0.0
        %747 = vmatprep.subr.mxu0 0.0
        %748 = vmatpush2.msra.mxu0 0.0
        %749 = vmatprep.subr.mxu0 0.0
        %750 = vmatpush2.msra.mxu0 0.0
        %751 = vmatprep.subr.mxu0 0.0
        %752 = vmatpush2.msra.mxu0 0.0
        %753 = vmatprep.subr.mxu0 0.0
        %754 = vmatpush2.msra.mxu0 0.0
        %755 = vmatprep.subr.mxu0 0.0
        %756 = vmatpush2.msra.mxu0 0.0
        %757 = vmatprep.subr.mxu0 0.0
        %758 = vmatpush2.msra.mxu0 0.0
        %759 = vmatprep.subr.mxu0 0.0
        %760 = vmatpush2.msra.mxu0 0.0
        %761 = vmatprep.subr.mxu0 0.0
        %762 = vmatpush2.msra.mxu0 0.0
        %763 = vmatprep.subr.mxu0 0.0
        %764 = vmatpush2.msra.mxu0 0.0
        %765 = vmatprep.subr.mxu0 0.0
        %766 = vmatpush2.msra.mxu0 0.0
        %767 = vmatprep.subr.mxu0 0.0
        %768 = vmatpush2.msra.mxu0 0.0
        %769 = vmatprep.subr.mxu0 0.0
        %770 = vmatpush2.msra.mxu0 0.0
        %771 = vmatprep.subr.mxu0 0.0
        %772 = vmatpush2.msra.mxu0 0.0
        %773 = vmatprep.subr.mxu0 0.0
        %774 = vmatpush2.msra.mxu0 0.0
        %775 = vmatprep.mubr.f32.mxu0 0.0
        %v776 = vand.u32 %v512, 4294901760
        %777 = vmatmul.mubr.f32.gmra.mxu0 %v776
        %v778 = vpop.f32.mrf.mxu0
        %v779 = vadd.f32 %v618, %v778
        %v780 = vpop.f32.mrf.mxu0
        %781 = vmatprep.mubr.f32.mxu0 0.0
        %v782 = vand.u32 %v513, 4294901760
        %783 = vmatmul.mubr.f32.gmra.mxu0 %v782
        %v784 = vpop.f32.mrf.mxu0
        %v785 = vadd.f32 %v628, %v784
        %v786 = vpop.f32.mrf.mxu0
        %787 = vdwg.mxu0
        %788 = vmatprep.subr.mxu0 0.0
        %v789 = vand.u32 %v529, 4294901760
        %v790 = vsub.f32 %v529, %v789
        %791 = vmatpush1.msra.mxu0 %v790
        %792 = vmatprep.subr.mxu0 0.0
        %v793 = vand.u32 %v528, 4294901760
        %v794 = vsub.f32 %v528, %v793
        %795 = vmatpush1.msra.mxu0 %v794
        %796 = vmatprep.subr.mxu0 0.0
        %v797 = vand.u32 %v527, 4294901760
        %v798 = vsub.f32 %v527, %v797
        %799 = vmatpush1.msra.mxu0 %v798
        %800 = vmatprep.subr.mxu0 0.0
        %v801 = vand.u32 %v526, 4294901760
        %v802 = vsub.f32 %v526, %v801
        %803 = vmatpush1.msra.mxu0 %v802
        %804 = vmatprep.subr.mxu0 0.0
        %v805 = vand.u32 %v525, 4294901760
        %v806 = vsub.f32 %v525, %v805
        %807 = vmatpush1.msra.mxu0 %v806
        %808 = vmatprep.subr.mxu0 0.0
        %v809 = vand.u32 %v524, 4294901760
        %v810 = vsub.f32 %v524, %v809
        %811 = vmatpush1.msra.mxu0 %v810
        %812 = vmatprep.subr.mxu0 0.0
        %v813 = vand.u32 %v523, 4294901760
        %v814 = vsub.f32 %v523, %v813
        %815 = vmatpush1.msra.mxu0 %v814
        %816 = vmatprep.subr.mxu0 0.0
        %v817 = vand.u32 %v522, 4294901760
        %v818 = vsub.f32 %v522, %v817
        %819 = vmatpush1.msra.mxu0 %v818
        %820 = vmatprep.subr.mxu0 0.0
        %v821 = vand.u32 %v521, 4294901760
        %v822 = vsub.f32 %v521, %v821
        %823 = vmatpush1.msra.mxu0 %v822
        %824 = vmatprep.subr.mxu0 0.0
        %v825 = vand.u32 %v520, 4294901760
        %v826 = vsub.f32 %v520, %v825
        %827 = vmatpush1.msra.mxu0 %v826
        %828 = vmatprep.subr.mxu0 0.0
        %v829 = vand.u32 %v519, 4294901760
        %v830 = vsub.f32 %v519, %v829
        %831 = vmatpush1.msra.mxu0 %v830
        %832 = vmatprep.subr.mxu0 0.0
        %v833 = vand.u32 %v518, 4294901760
        %v834 = vsub.f32 %v518, %v833
        %835 = vmatpush1.msra.mxu0 %v834
        %836 = vmatprep.subr.mxu0 0.0
        %v837 = vand.u32 %v517, 4294901760
        %v838 = vsub.f32 %v517, %v837
        %839 = vmatpush1.msra.mxu0 %v838
        %840 = vmatprep.subr.mxu0 0.0
        %v841 = vand.u32 %v516, 4294901760
        %v842 = vsub.f32 %v516, %v841
        %843 = vmatpush1.msra.mxu0 %v842
        %844 = vmatprep.subr.mxu0 0.0
        %v845 = vand.u32 %v515, 4294901760
        %v846 = vsub.f32 %v515, %v845
        %847 = vmatpush1.msra.mxu0 %v846
        %848 = vmatprep.subr.mxu0 0.0
        %v849 = vand.u32 %v514, 4294901760
        %v850 = vsub.f32 %v514, %v849
        %851 = vmatpush1.msra.mxu0 %v850
        %852 = vmatprep.subr.mxu0 0.0
        %853 = vmatpush2.msra.mxu0 0.0
        %854 = vmatprep.subr.mxu0 0.0
        %855 = vmatpush2.msra.mxu0 0.0
        %856 = vmatprep.subr.mxu0 0.0
        %857 = vmatpush2.msra.mxu0 0.0
        %858 = vmatprep.subr.mxu0 0.0
        %859 = vmatpush2.msra.mxu0 0.0
        %860 = vmatprep.subr.mxu0 0.0
        %861 = vmatpush2.msra.mxu0 0.0
        %862 = vmatprep.subr.mxu0 0.0
        %863 = vmatpush2.msra.mxu0 0.0
        %864 = vmatprep.subr.mxu0 0.0
        %865 = vmatpush2.msra.mxu0 0.0
        %866 = vmatprep.subr.mxu0 0.0
        %867 = vmatpush2.msra.mxu0 0.0
        %868 = vmatprep.subr.mxu0 0.0
        %869 = vmatpush2.msra.mxu0 0.0
        %870 = vmatprep.subr.mxu0 0.0
        %871 = vmatpush2.msra.mxu0 0.0
        %872 = vmatprep.subr.mxu0 0.0
        %873 = vmatpush2.msra.mxu0 0.0
        %874 = vmatprep.subr.mxu0 0.0
        %875 = vmatpush2.msra.mxu0 0.0
        %876 = vmatprep.subr.mxu0 0.0
        %877 = vmatpush2.msra.mxu0 0.0
        %878 = vmatprep.subr.mxu0 0.0
        %879 = vmatpush2.msra.mxu0 0.0
        %880 = vmatprep.subr.mxu0 0.0
        %881 = vmatpush2.msra.mxu0 0.0
        %882 = vmatprep.subr.mxu0 0.0
        %883 = vmatpush2.msra.mxu0 0.0
        %884 = vmatprep.mubr.f32.mxu0 0.0
        %v885 = vand.u32 %v512, 4294901760
        %v886 = vsub.f32 %v512, %v885
        %887 = vmatmul.mubr.f32.gmra.mxu0 %v886
        %v888 = vpop.f32.mrf.mxu0
        %v889 = vadd.f32 %v779, %v888
        %v890 = vpop.f32.mrf.mxu0
        %891 = vmatprep.mubr.f32.mxu0 0.0
        %v892 = vand.u32 %v513, 4294901760
        %v893 = vsub.f32 %v513, %v892
        %894 = vmatmul.mubr.f32.gmra.mxu0 %v893
        %v895 = vpop.f32.mrf.mxu0
        %v896 = vadd.f32 %v785, %v895
        %v897 = vpop.f32.mrf.mxu0
        %898 = vdwg.mxu0
        %899 = vmatprep.subr.mxu0 0.0
        %v900 = vand.u32 %v529, 4294901760
        %901 = vmatpush1.msra.mxu0 %v900
        %902 = vmatprep.subr.mxu0 0.0
        %v903 = vand.u32 %v528, 4294901760
        %904 = vmatpush1.msra.mxu0 %v903
        %905 = vmatprep.subr.mxu0 0.0
        %v906 = vand.u32 %v527, 4294901760
        %907 = vmatpush1.msra.mxu0 %v906
        %908 = vmatprep.subr.mxu0 0.0
        %v909 = vand.u32 %v526, 4294901760
        %910 = vmatpush1.msra.mxu0 %v909
        %911 = vmatprep.subr.mxu0 0.0
        %v912 = vand.u32 %v525, 4294901760
        %913 = vmatpush1.msra.mxu0 %v912
        %914 = vmatprep.subr.mxu0 0.0
        %v915 = vand.u32 %v524, 4294901760
        %916 = vmatpush1.msra.mxu0 %v915
        %917 = vmatprep.subr.mxu0 0.0
        %v918 = vand.u32 %v523, 4294901760
        %919 = vmatpush1.msra.mxu0 %v918
        %920 = vmatprep.subr.mxu0 0.0
        %v921 = vand.u32 %v522, 4294901760
        %922 = vmatpush1.msra.mxu0 %v921
        %923 = vmatprep.subr.mxu0 0.0
        %v924 = vand.u32 %v521, 4294901760
        %925 = vmatpush1.msra.mxu0 %v924
        %926 = vmatprep.subr.mxu0 0.0
        %v927 = vand.u32 %v520, 4294901760
        %928 = vmatpush1.msra.mxu0 %v927
        %929 = vmatprep.subr.mxu0 0.0
        %v930 = vand.u32 %v519, 4294901760
        %931 = vmatpush1.msra.mxu0 %v930
        %932 = vmatprep.subr.mxu0 0.0
        %v933 = vand.u32 %v518, 4294901760
        %934 = vmatpush1.msra.mxu0 %v933
        %935 = vmatprep.subr.mxu0 0.0
        %v936 = vand.u32 %v517, 4294901760
        %937 = vmatpush1.msra.mxu0 %v936
        %938 = vmatprep.subr.mxu0 0.0
        %v939 = vand.u32 %v516, 4294901760
        %940 = vmatpush1.msra.mxu0 %v939
        %941 = vmatprep.subr.mxu0 0.0
        %v942 = vand.u32 %v515, 4294901760
        %943 = vmatpush1.msra.mxu0 %v942
        %944 = vmatprep.subr.mxu0 0.0
        %v945 = vand.u32 %v514, 4294901760
        %946 = vmatpush1.msra.mxu0 %v945
        %947 = vmatprep.subr.mxu0 0.0
        %948 = vmatpush2.msra.mxu0 0.0
        %949 = vmatprep.subr.mxu0 0.0
        %950 = vmatpush2.msra.mxu0 0.0
        %951 = vmatprep.subr.mxu0 0.0
        %952 = vmatpush2.msra.mxu0 0.0
        %953 = vmatprep.subr.mxu0 0.0
        %954 = vmatpush2.msra.mxu0 0.0
        %955 = vmatprep.subr.mxu0 0.0
        %956 = vmatpush2.msra.mxu0 0.0
        %957 = vmatprep.subr.mxu0 0.0
        %958 = vmatpush2.msra.mxu0 0.0
        %959 = vmatprep.subr.mxu0 0.0
        %960 = vmatpush2.msra.mxu0 0.0
        %961 = vmatprep.subr.mxu0 0.0
        %962 = vmatpush2.msra.mxu0 0.0
        %963 = vmatprep.subr.mxu0 0.0
        %964 = vmatpush2.msra.mxu0 0.0
        %965 = vmatprep.subr.mxu0 0.0
        %966 = vmatpush2.msra.mxu0 0.0
        %967 = vmatprep.subr.mxu0 0.0
        %968 = vmatpush2.msra.mxu0 0.0
        %969 = vmatprep.subr.mxu0 0.0
        %970 = vmatpush2.msra.mxu0 0.0
        %971 = vmatprep.subr.mxu0 0.0
        %972 = vmatpush2.msra.mxu0 0.0
        %973 = vmatprep.subr.mxu0 0.0
        %974 = vmatpush2.msra.mxu0 0.0
        %975 = vmatprep.subr.mxu0 0.0
        %976 = vmatpush2.msra.mxu0 0.0
        %977 = vmatprep.subr.mxu0 0.0
        %978 = vmatpush2.msra.mxu0 0.0
        %979 = vmatprep.mubr.f32.mxu0 0.0
        %v980 = vand.u32 %v512, 4294901760
        %v981 = vsub.f32 %v512, %v980
        %v982 = vand.u32 %v981, 4294901760
        %983 = vmatmul.mubr.f32.gmra.mxu0 %v982
        %v984 = vpop.f32.mrf.mxu0
        %v985 = vadd.f32 %v889, %v984
        %v986 = vpop.f32.mrf.mxu0
        %987 = vmatprep.mubr.f32.mxu0 0.0
        %v988 = vand.u32 %v513, 4294901760
        %v989 = vsub.f32 %v513, %v988
        %v990 = vand.u32 %v989, 4294901760
        %991 = vmatmul.mubr.f32.gmra.mxu0 %v990
        %v992 = vpop.f32.mrf.mxu0
        %v993 = vadd.f32 %v896, %v992
        %v994 = vpop.f32.mrf.mxu0
        %995 = vdwg.mxu0
        %996 = vmatprep.subr.mxu0 0.0
        %v997 = vand.u32 %v529, 4294901760
        %v998 = vsub.f32 %v529, %v997
        %v999 = vand.u32 %v998, 4294901760
        %1000 = vmatpush1.msra.mxu0 %v999
        %1001 = vmatprep.subr.mxu0 0.0
        %v1002 = vand.u32 %v528, 4294901760
        %v1003 = vsub.f32 %v528, %v1002
        %v1004 = vand.u32 %v1003, 4294901760
        %1005 = vmatpush1.msra.mxu0 %v1004
        %1006 = vmatprep.subr.mxu0 0.0
        %v1007 = vand.u32 %v527, 4294901760
        %v1008 = vsub.f32 %v527, %v1007
        %v1009 = vand.u32 %v1008, 4294901760
        %1010 = vmatpush1.msra.mxu0 %v1009
        %1011 = vmatprep.subr.mxu0 0.0
        %v1012 = vand.u32 %v526, 4294901760
        %v1013 = vsub.f32 %v526, %v1012
        %v1014 = vand.u32 %v1013, 4294901760
        %1015 = vmatpush1.msra.mxu0 %v1014
        %1016 = vmatprep.subr.mxu0 0.0
        %v1017 = vand.u32 %v525, 4294901760
        %v1018 = vsub.f32 %v525, %v1017
        %v1019 = vand.u32 %v1018, 4294901760
        %1020 = vmatpush1.msra.mxu0 %v1019
        %1021 = vmatprep.subr.mxu0 0.0
        %v1022 = vand.u32 %v524, 4294901760
        %v1023 = vsub.f32 %v524, %v1022
        %v1024 = vand.u32 %v1023, 4294901760
        %1025 = vmatpush1.msra.mxu0 %v1024
        %1026 = vmatprep.subr.mxu0 0.0
        %v1027 = vand.u32 %v523, 4294901760
        %v1028 = vsub.f32 %v523, %v1027
        %v1029 = vand.u32 %v1028, 4294901760
        %1030 = vmatpush1.msra.mxu0 %v1029
        %1031 = vmatprep.subr.mxu0 0.0
        %v1032 = vand.u32 %v522, 4294901760
        %v1033 = vsub.f32 %v522, %v1032
        %v1034 = vand.u32 %v1033, 4294901760
        %1035 = vmatpush1.msra.mxu0 %v1034
        %1036 = vmatprep.subr.mxu0 0.0
        %v1037 = vand.u32 %v521, 4294901760
        %v1038 = vsub.f32 %v521, %v1037
        %v1039 = vand.u32 %v1038, 4294901760
        %1040 = vmatpush1.msra.mxu0 %v1039
        %1041 = vmatprep.subr.mxu0 0.0
        %v1042 = vand.u32 %v520, 4294901760
        %v1043 = vsub.f32 %v520, %v1042
        %v1044 = vand.u32 %v1043, 4294901760
        %1045 = vmatpush1.msra.mxu0 %v1044
        %1046 = vmatprep.subr.mxu0 0.0
        %v1047 = vand.u32 %v519, 4294901760
        %v1048 = vsub.f32 %v519, %v1047
        %v1049 = vand.u32 %v1048, 4294901760
        %1050 = vmatpush1.msra.mxu0 %v1049
        %1051 = vmatprep.subr.mxu0 0.0
        %v1052 = vand.u32 %v518, 4294901760
        %v1053 = vsub.f32 %v518, %v1052
        %v1054 = vand.u32 %v1053, 4294901760
        %1055 = vmatpush1.msra.mxu0 %v1054
        %1056 = vmatprep.subr.mxu0 0.0
        %v1057 = vand.u32 %v517, 4294901760
        %v1058 = vsub.f32 %v517, %v1057
        %v1059 = vand.u32 %v1058, 4294901760
        %1060 = vmatpush1.msra.mxu0 %v1059
        %1061 = vmatprep.subr.mxu0 0.0
        %v1062 = vand.u32 %v516, 4294901760
        %v1063 = vsub.f32 %v516, %v1062
        %v1064 = vand.u32 %v1063, 4294901760
        %1065 = vmatpush1.msra.mxu0 %v1064
        %1066 = vmatprep.subr.mxu0 0.0
        %v1067 = vand.u32 %v515, 4294901760
        %v1068 = vsub.f32 %v515, %v1067
        %v1069 = vand.u32 %v1068, 4294901760
        %1070 = vmatpush1.msra.mxu0 %v1069
        %1071 = vmatprep.subr.mxu0 0.0
        %v1072 = vand.u32 %v514, 4294901760
        %v1073 = vsub.f32 %v514, %v1072
        %v1074 = vand.u32 %v1073, 4294901760
        %1075 = vmatpush1.msra.mxu0 %v1074
        %1076 = vmatprep.subr.mxu0 0.0
        %1077 = vmatpush2.msra.mxu0 0.0
        %1078 = vmatprep.subr.mxu0 0.0
        %1079 = vmatpush2.msra.mxu0 0.0
        %1080 = vmatprep.subr.mxu0 0.0
        %1081 = vmatpush2.msra.mxu0 0.0
        %1082 = vmatprep.subr.mxu0 0.0
        %1083 = vmatpush2.msra.mxu0 0.0
        %1084 = vmatprep.subr.mxu0 0.0
        %1085 = vmatpush2.msra.mxu0 0.0
        %1086 = vmatprep.subr.mxu0 0.0
        %1087 = vmatpush2.msra.mxu0 0.0
        %1088 = vmatprep.subr.mxu0 0.0
        %1089 = vmatpush2.msra.mxu0 0.0
        %1090 = vmatprep.subr.mxu0 0.0
        %1091 = vmatpush2.msra.mxu0 0.0
        %1092 = vmatprep.subr.mxu0 0.0
        %1093 = vmatpush2.msra.mxu0 0.0
        %1094 = vmatprep.subr.mxu0 0.0
        %1095 = vmatpush2.msra.mxu0 0.0
        %1096 = vmatprep.subr.mxu0 0.0
        %1097 = vmatpush2.msra.mxu0 0.0
        %1098 = vmatprep.subr.mxu0 0.0
        %1099 = vmatpush2.msra.mxu0 0.0
        %1100 = vmatprep.subr.mxu0 0.0
        %1101 = vmatpush2.msra.mxu0 0.0
        %1102 = vmatprep.subr.mxu0 0.0
        %1103 = vmatpush2.msra.mxu0 0.0
        %1104 = vmatprep.subr.mxu0 0.0
        %1105 = vmatpush2.msra.mxu0 0.0
        %1106 = vmatprep.subr.mxu0 0.0
        %1107 = vmatpush2.msra.mxu0 0.0
        %1108 = vmatprep.mubr.f32.mxu0 0.0
        %v1109 = vand.u32 %v512, 4294901760
        %1110 = vmatmul.mubr.f32.gmra.mxu0 %v1109
        %v1111 = vpop.f32.mrf.mxu0
        %v1112 = vadd.f32 %v985, %v1111
        %v1113 = vpop.f32.mrf.mxu0
        %1114 = vmatprep.mubr.f32.mxu0 0.0
        %v1115 = vand.u32 %v513, 4294901760
        %1116 = vmatmul.mubr.f32.gmra.mxu0 %v1115
        %v1117 = vpop.f32.mrf.mxu0
        %v1118 = vadd.f32 %v993, %v1117
        %v1119 = vpop.f32.mrf.mxu0
        %1120 = vdwg.mxu0
        %1121 = vmatprep.subr.mxu0 0.0
        %v1122 = vand.u32 %v529, 4294901760
        %1123 = vmatpush1.msra.mxu0 %v1122
        %1124 = vmatprep.subr.mxu0 0.0
        %v1125 = vand.u32 %v528, 4294901760
        %1126 = vmatpush1.msra.mxu0 %v1125
        %1127 = vmatprep.subr.mxu0 0.0
        %v1128 = vand.u32 %v527, 4294901760
        %1129 = vmatpush1.msra.mxu0 %v1128
        %1130 = vmatprep.subr.mxu0 0.0
        %v1131 = vand.u32 %v526, 4294901760
        %1132 = vmatpush1.msra.mxu0 %v1131
        %1133 = vmatprep.subr.mxu0 0.0
        %v1134 = vand.u32 %v525, 4294901760
        %1135 = vmatpush1.msra.mxu0 %v1134
        %1136 = vmatprep.subr.mxu0 0.0
        %v1137 = vand.u32 %v524, 4294901760
        %1138 = vmatpush1.msra.mxu0 %v1137
        %1139 = vmatprep.subr.mxu0 0.0
        %v1140 = vand.u32 %v523, 4294901760
        %1141 = vmatpush1.msra.mxu0 %v1140
        %1142 = vmatprep.subr.mxu0 0.0
        %v1143 = vand.u32 %v522, 4294901760
        %1144 = vmatpush1.msra.mxu0 %v1143
        %1145 = vmatprep.subr.mxu0 0.0
        %v1146 = vand.u32 %v521, 4294901760
        %1147 = vmatpush1.msra.mxu0 %v1146
        %1148 = vmatprep.subr.mxu0 0.0
        %v1149 = vand.u32 %v520, 4294901760
        %1150 = vmatpush1.msra.mxu0 %v1149
        %1151 = vmatprep.subr.mxu0 0.0
        %v1152 = vand.u32 %v519, 4294901760
        %1153 = vmatpush1.msra.mxu0 %v1152
        %1154 = vmatprep.subr.mxu0 0.0
        %v1155 = vand.u32 %v518, 4294901760
        %1156 = vmatpush1.msra.mxu0 %v1155
        %1157 = vmatprep.subr.mxu0 0.0
        %v1158 = vand.u32 %v517, 4294901760
        %1159 = vmatpush1.msra.mxu0 %v1158
        %1160 = vmatprep.subr.mxu0 0.0
        %v1161 = vand.u32 %v516, 4294901760
        %1162 = vmatpush1.msra.mxu0 %v1161
        %1163 = vmatprep.subr.mxu0 0.0
        %v1164 = vand.u32 %v515, 4294901760
        %1165 = vmatpush1.msra.mxu0 %v1164
        %1166 = vmatprep.subr.mxu0 0.0
        %v1167 = vand.u32 %v514, 4294901760
        %1168 = vmatpush1.msra.mxu0 %v1167
        %1169 = vmatprep.subr.mxu0 0.0
        %1170 = vmatpush2.msra.mxu0 0.0
        %1171 = vmatprep.subr.mxu0 0.0
        %1172 = vmatpush2.msra.mxu0 0.0
        %1173 = vmatprep.subr.mxu0 0.0
        %1174 = vmatpush2.msra.mxu0 0.0
        %1175 = vmatprep.subr.mxu0 0.0
        %1176 = vmatpush2.msra.mxu0 0.0
        %1177 = vmatprep.subr.mxu0 0.0
        %1178 = vmatpush2.msra.mxu0 0.0
        %1179 = vmatprep.subr.mxu0 0.0
        %1180 = vmatpush2.msra.mxu0 0.0
        %1181 = vmatprep.subr.mxu0 0.0
        %1182 = vmatpush2.msra.mxu0 0.0
        %1183 = vmatprep.subr.mxu0 0.0
        %1184 = vmatpush2.msra.mxu0 0.0
        %1185 = vmatprep.subr.mxu0 0.0
        %1186 = vmatpush2.msra.mxu0 0.0
        %1187 = vmatprep.subr.mxu0 0.0
        %1188 = vmatpush2.msra.mxu0 0.0
        %1189 = vmatprep.subr.mxu0 0.0
        %1190 = vmatpush2.msra.mxu0 0.0
        %1191 = vmatprep.subr.mxu0 0.0
        %1192 = vmatpush2.msra.mxu0 0.0
        %1193 = vmatprep.subr.mxu0 0.0
        %1194 = vmatpush2.msra.mxu0 0.0
        %1195 = vmatprep.subr.mxu0 0.0
        %1196 = vmatpush2.msra.mxu0 0.0
        %1197 = vmatprep.subr.mxu0 0.0
        %1198 = vmatpush2.msra.mxu0 0.0
        %1199 = vmatprep.subr.mxu0 0.0
        %1200 = vmatpush2.msra.mxu0 0.0
        %1201 = vmatprep.mubr.f32.mxu0 0.0
        %v1202 = vand.u32 %v512, 4294901760
        %1203 = vmatmul.mubr.f32.gmra.mxu0 %v1202
        %v1204 = vpop.f32.mrf.mxu0
        %v1205 = vadd.f32 %v1112, %v1204
        %v1206 = vpop.f32.mrf.mxu0
        %1207 = vmatprep.mubr.f32.mxu0 0.0
        %v1208 = vand.u32 %v513, 4294901760
        %1209 = vmatmul.mubr.f32.gmra.mxu0 %v1208
        %v1210 = vpop.f32.mrf.mxu0
        %v1211 = vadd.f32 %v1118, %v1210
        %v1212 = vpop.f32.mrf.mxu0
        %1213 = vdwg.mxu0
        %v1214 = vld [vmem:[%s3] sm:$0x1]
        %v1216 = vlaneseq
        %v1217 = vshrl.u32 %v1216, 7
        %v1218 = vsub.s32 0, %v1217
        %v1219 = vrot.slane %v1214, %v1218
        %v1221 = vmul.f32 %v1205, %v1219
        %v1222 = vmul.f32 %v1211, %v1219
        %v1223 = vmul.f32 %v1221, %v1221
        %v1224 = vmul.f32 %v1222, %v1222
        %1225 = vadd.xlane.f32.xlu0 %v1223
        %v1226 = vpop.xlane.xlu0 %1225
        %1227 = vadd.xlane.f32.xlu0 %v1224
        %v1228 = vpop.xlane.xlu0 %1227
        %v1229 = vadd.f32 %v1226, 1e-08
        %v1230 = vadd.f32 %v1228, 1e-08
        %1231 = vxpose.xlu0.b32.start [1/16] %v1229, 128
        %1232 = vxpose.xlu0.b32.cont [2/16] 0.0, 128
        %1233 = vxpose.xlu0.b32.cont [3/16] 0.0, 128
        %1234 = vxpose.xlu0.b32.cont [4/16] 0.0, 128
        %1235 = vxpose.xlu0.b32.cont [5/16] 0.0, 128
        %1236 = vxpose.xlu0.b32.cont [6/16] 0.0, 128
        %1237 = vxpose.xlu0.b32.cont [7/16] 0.0, 128
        %1238 = vxpose.xlu0.b32.cont [8/16] 0.0, 128
        %1239 = vxpose.xlu0.b32.cont [9/16] 0.0, 128
        %1240 = vxpose.xlu0.b32.cont [10/16] 0.0, 128
        %1241 = vxpose.xlu0.b32.cont [11/16] 0.0, 128
        %1242 = vxpose.xlu0.b32.cont [12/16] 0.0, 128
        %1243 = vxpose.xlu0.b32.cont [13/16] 0.0, 128
        %1244 = vxpose.xlu0.b32.cont [14/16] 0.0, 128
        %1245 = vxpose.xlu0.b32.cont [15/16] 0.0, 128
        %1246 = vxpose.xlu0.b32.end [16/16] 0.0, 128
        %v1247 = vpop.trf.xlu0
        %v1248 = vpop.trf.xlu0
        %v1249 = vpop.trf.xlu0
        %v1250 = vpop.trf.xlu0
        %v1251 = vpop.trf.xlu0
        %v1252 = vpop.trf.xlu0
        %v1253 = vpop.trf.xlu0
        %v1254 = vpop.trf.xlu0
        %v1255 = vpop.trf.xlu0
        %v1256 = vpop.trf.xlu0
        %v1257 = vpop.trf.xlu0
        %v1258 = vpop.trf.xlu0
        %v1259 = vpop.trf.xlu0
        %v1260 = vpop.trf.xlu0
        %v1261 = vpop.trf.xlu0
        %v1262 = vpop.trf.xlu0
        %1263 = vxpose.xlu0.b32.start [1/16] %v1230, 128
        %1264 = vxpose.xlu0.b32.cont [2/16] 0.0, 128
        %1265 = vxpose.xlu0.b32.cont [3/16] 0.0, 128
        %1266 = vxpose.xlu0.b32.cont [4/16] 0.0, 128
        %1267 = vxpose.xlu0.b32.cont [5/16] 0.0, 128
        %1268 = vxpose.xlu0.b32.cont [6/16] 0.0, 128
        %1269 = vxpose.xlu0.b32.cont [7/16] 0.0, 128
        %1270 = vxpose.xlu0.b32.cont [8/16] 0.0, 128
        %1271 = vxpose.xlu0.b32.cont [9/16] 0.0, 128
        %1272 = vxpose.xlu0.b32.cont [10/16] 0.0, 128
        %1273 = vxpose.xlu0.b32.cont [11/16] 0.0, 128
        %1274 = vxpose.xlu0.b32.cont [12/16] 0.0, 128
        %1275 = vxpose.xlu0.b32.cont [13/16] 0.0, 128
        %1276 = vxpose.xlu0.b32.cont [14/16] 0.0, 128
        %1277 = vxpose.xlu0.b32.cont [15/16] 0.0, 128
        %1278 = vxpose.xlu0.b32.end [16/16] 0.0, 128
        %v1279 = vpop.trf.xlu0
        %v1280 = vpop.trf.xlu0
        %v1281 = vpop.trf.xlu0
        %v1282 = vpop.trf.xlu0
        %v1283 = vpop.trf.xlu0
        %v1284 = vpop.trf.xlu0
        %v1285 = vpop.trf.xlu0
        %v1286 = vpop.trf.xlu0
        %v1287 = vpop.trf.xlu0
        %v1288 = vpop.trf.xlu0
        %v1289 = vpop.trf.xlu0
        %v1290 = vpop.trf.xlu0
        %v1291 = vpop.trf.xlu0
        %v1292 = vpop.trf.xlu0
        %v1293 = vpop.trf.xlu0
        %v1294 = vpop.trf.xlu0
        %v1295 = vlaneseq
        %v1296 = vshrl.u32 %v1295, 7
        %v1297 = vsub.s32 0, %v1296
        %v1298 = vrot.slane %v1247, %v1297
        %v1299 = vlaneseq
        %v1300 = vshrl.u32 %v1299, 7
        %v1301 = vsub.s32 0, %v1300
        %v1302 = vrot.slane %v1279, %v1301
        %vm1303 = vcmp.lt.f32.partialorder %v1298, %v1229
        %vm1304 = vcmp.lt.f32.partialorder %v1302, %v1230
        %v1305 = vsel %vm1303, 1, 0
        %v1306 = vsel %vm1304, 1, 0
        %vm1307 = vcmask 64512
        %v1308 = vsel %vm1307, %v1305, 0
        %v1309 = vand.u32 %v1308, 65535
        %v1310 = vshrl.u32 %v1308, 16
        %v1311 = vcvt.s32.f32 %v1309
        %v1312 = vcvt.s32.f32 %v1310
        %1313 = vadd.xlane.f32.xlu0 %v1311
        %v1314 = vpop.xlane.xlu0 %1313
        %1315 = vadd.xlane.f32.xlu0 %v1312
        %v1316 = vpop.xlane.xlu0 %1315
        %v1317 = vcvt.f32.s32 %v1314
        %v1318 = vcvt.f32.s32 %v1316
        %v1319 = vshll.u32 %v1318, 16
        %v1320 = vadd.s32 %v1319, %v1317
        %v1321 = vsel %vm1307, %v1306, 0
        %v1322 = vand.u32 %v1321, 65535
        %v1323 = vshrl.u32 %v1321, 16
        %v1324 = vcvt.s32.f32 %v1322
        %v1325 = vcvt.s32.f32 %v1323
        %1326 = vadd.xlane.f32.xlu0 %v1324
        %v1327 = vpop.xlane.xlu0 %1326
        %1328 = vadd.xlane.f32.xlu0 %v1325
        %v1329 = vpop.xlane.xlu0 %1328
        %v1330 = vcvt.f32.s32 %v1327
        %v1331 = vcvt.f32.s32 %v1329
        %v1332 = vshll.u32 %v1331, 16
        %v1333 = vadd.s32 %v1332, %v1330
        %vm1334 = vcmp.le.f32.partialorder %v1298, %v1229
        %vm1335 = vcmp.le.f32.partialorder %v1302, %v1230
        %v1336 = vsel %vm1334, 1, 0
        %v1337 = vsel %vm1335, 1, 0
        %v1338 = vsel %vm1307, %v1336, 0
        %v1339 = vand.u32 %v1338, 65535
        %v1340 = vshrl.u32 %v1338, 16
        %v1341 = vcvt.s32.f32 %v1339
        %v1342 = vcvt.s32.f32 %v1340
        %1343 = vadd.xlane.f32.xlu0 %v1341
        %v1344 = vpop.xlane.xlu0 %1343
        %1345 = vadd.xlane.f32.xlu0 %v1342
        %v1346 = vpop.xlane.xlu0 %1345
        %v1347 = vcvt.f32.s32 %v1344
        %v1348 = vcvt.f32.s32 %v1346
        %v1349 = vshll.u32 %v1348, 16
        %v1350 = vadd.s32 %v1349, %v1347
        %v1351 = vsel %vm1307, %v1337, 0
        %v1352 = vand.u32 %v1351, 65535
        %v1353 = vshrl.u32 %v1351, 16
        %v1354 = vcvt.s32.f32 %v1352
        %v1355 = vcvt.s32.f32 %v1353
        %1356 = vadd.xlane.f32.xlu0 %v1354
        %v1357 = vpop.xlane.xlu0 %1356
        %1358 = vadd.xlane.f32.xlu0 %v1355
        %v1359 = vpop.xlane.xlu0 %1358
        %v1360 = vcvt.f32.s32 %v1357
        %v1361 = vcvt.f32.s32 %v1359
        %v1362 = vshll.u32 %v1361, 16
        %v1363 = vadd.s32 %v1362, %v1360
        %vm1364 = vcmp.le.s32.totalorder %v1320, 3
        %vm1365 = vcmp.le.s32.totalorder %v1333, 3
        %vm1366 = vcmp.gt.s32.totalorder %v1350, 3
        %vm1367 = vcmp.gt.s32.totalorder %v1363, 3
        %vm1368 = vmand %vm1364, %vm1366
        %vm1369 = vmand %vm1365, %vm1367
        %v1370 = vsel %vm1368, %v1229, 0.0
        %v1371 = vsel %vm1369, %v1230, 0.0
        %v1372 = vrot.slane %v1370, 4
        %v1373 = vmax.f32 %v1370, %v1372
        %v1374 = vrot.slane %v1373, 2
        %v1375 = vmax.f32 %v1373, %v1374
        %v1376 = vrot.slane %v1375, 1
        %v1377 = vmax.f32 %v1375, %v1376
        %v1378 = vrot.slane %v1371, 4
        %v1379 = vmax.f32 %v1371, %v1378
        %v1380 = vrot.slane %v1379, 2
        %v1381 = vmax.f32 %v1379, %v1380
        %v1382 = vrot.slane %v1381, 1
        %v1383 = vmax.f32 %v1381, %v1382
        %vm1384 = vcmp.le.s32.totalorder %v1320, 4
        %vm1385 = vcmp.le.s32.totalorder %v1333, 4
        %vm1386 = vcmp.gt.s32.totalorder %v1350, 4
        %vm1387 = vcmp.gt.s32.totalorder %v1363, 4
        %vm1388 = vmand %vm1384, %vm1386
        %vm1389 = vmand %vm1385, %vm1387
        %v1390 = vsel %vm1388, %v1229, 0.0
        %v1391 = vsel %vm1389, %v1230, 0.0
        %v1392 = vrot.slane %v1390, 4
        %v1393 = vmax.f32 %v1390, %v1392
        %v1394 = vrot.slane %v1393, 2
        %v1395 = vmax.f32 %v1393, %v1394
        %v1396 = vrot.slane %v1395, 1
        %v1397 = vmax.f32 %v1395, %v1396
        %v1398 = vrot.slane %v1391, 4
        %v1399 = vmax.f32 %v1391, %v1398
        %v1400 = vrot.slane %v1399, 2
        %v1401 = vmax.f32 %v1399, %v1400
        %v1402 = vrot.slane %v1401, 1
        %v1403 = vmax.f32 %v1401, %v1402
        %v1404 = vmul.f32 %v1377, 0.5
        %v1405 = vmul.f32 %v1383, 0.5
        %v1406 = vmul.f32 %v1397, 0.5
        %v1407 = vmul.f32 %v1403, 0.5
        %v1408 = vadd.f32 %v1404, %v1406
        %v1409 = vadd.f32 %v1405, %v1407
        %v1410 = vadd.f32 %v1408, 1e-06
        %v1411 = vadd.f32 %v1409, 1e-06
        %v1412 = vrcp.pop %v1410
        %v1413 = vmul.f32 1.0, %v1412
        %v1414 = vrcp.pop %v1411
        %v1415 = vmul.f32 1.0, %v1414
        %v1416 = vmul.f32 %v1413, 10.0
        %v1417 = vmul.f32 %v1415, 10.0
        %v1418 = vmul.f32 %v1226, %v1416
        %v1419 = vmul.f32 %v1228, %v1417
        %s1420 = sld [smem:[#allocation2]]
        %v1421 = vstv %s1420
        %v1422 = vsub.f32 %v1418, %v1421
        %v1423 = vsub.f32 %v1419, %v1421
        %v1424 = vxor.u32 %v1422, 2147483648
        %v1425 = vxor.u32 %v1423, 2147483648
        %v1426 = vmul.f32 %v1424, 1.442695
        %v1427 = vpow.pop %v1426
        %v1428 = vmul.f32 %v1425, 1.442695
        %v1429 = vpow.pop %v1428
        %v1430 = vadd.f32 %v1427, 1.0
        %v1431 = vadd.f32 %v1429, 1.0
        %v1432 = vrcp.pop %v1430
        %v1433 = vmul.f32 1.0, %v1432
        %v1434 = vrcp.pop %v1431
        %v1435 = vmul.f32 1.0, %v1434
        %s1436 = sld [smem:[#allocation2 + $0x1]]
        %v1437 = vstv %s1436
        %v1438 = vsub.f32 %v1418, %v1437
        %v1439 = vsub.f32 %v1419, %v1437
        %v1440 = vxor.u32 %v1438, 2147483648
        %v1441 = vxor.u32 %v1439, 2147483648
        %v1442 = vmul.f32 %v1440, 1.442695
        %v1443 = vpow.pop %v1442
        %v1444 = vmul.f32 %v1441, 1.442695
        %v1445 = vpow.pop %v1444
        %v1446 = vadd.f32 %v1443, 1.0
        %v1447 = vadd.f32 %v1445, 1.0
        %v1448 = vrcp.pop %v1446
        %v1449 = vmul.f32 1.0, %v1448
        %v1450 = vrcp.pop %v1447
        %v1451 = vmul.f32 1.0, %v1450
        %v1452 = vmul.f32 %v1221, %v1433
        %v1453 = vmul.f32 %v1222, %v1435
        %v1454 = vld [vmem:[%s5] sm:$0x1f]
        %v1455 = vld [vmem:[%s6] sm:$0x1f]
        %v1456 = vlaneseq
        %v1457 = vshrl.u32 %v1456, 7
        %v1458 = vsub.s32 2, %v1457
        %v1459 = vrot.slane %v1454, %v1458
        %v1460 = vmul.f32 %v1452, %v1459
        %v1461 = vmul.f32 %v1453, %v1459
        %v1462 = vlaneseq
        %v1463 = vshrl.u32 %v1462, 7
        %v1464 = vsub.s32 2, %v1463
        %v1465 = vrot.slane %v1455, %v1464
        %v1466 = vmul.f32 %v1452, %v1465
        %v1467 = vmul.f32 %v1453, %v1465
        %v1468 = vrot.slane %v1452, 6
        %v1469 = vrot.slane %v1453, 6
        %vm1470 = vcmp.lt.s32.totalorder %v511, 2
        %v1471 = vsel %vm1470, %v1468, %v1469
        %v1472 = vsel %vm1470, %v1469, %v1468
        %vm1473 = vcmp.ge.s32.totalorder %v511, 2
        %v1474 = vsel %vm1473, 1, 0
        %vm1475 = vcmp.eq.s32.totalorder %v1474, 1
        %v1476 = vsel %vm1475, %v1472, 0.0
        %v1477 = vsel %vm1475, %v1471, 0.0
        %v1478 = vlaneseq
        %v1479 = vshrl.u32 %v1478, 7
        %v1480 = vsub.s32 0, %v1479
        %v1481 = vrot.slane %v1454, %v1480
        %v1482 = vmul.f32 %v1476, %v1481
        %v1483 = vmul.f32 %v1477, %v1481
        %v1484 = vadd.f32 %v1460, %v1482
        %v1485 = vadd.f32 %v1461, %v1483
        %v1486 = vlaneseq
        %v1487 = vshrl.u32 %v1486, 7
        %v1488 = vsub.s32 0, %v1487
        %v1489 = vrot.slane %v1455, %v1488
        %v1490 = vmul.f32 %v1476, %v1489
        %v1491 = vmul.f32 %v1477, %v1489
        %v1492 = vadd.f32 %v1466, %v1490
        %v1493 = vadd.f32 %v1467, %v1491
        %v1494 = vrot.slane %v1452, 7
        %v1495 = vrot.slane %v1453, 7
        %vm1496 = vcmp.lt.s32.totalorder %v511, 1
        %v1497 = vsel %vm1496, %v1494, %v1495
        %v1498 = vsel %vm1496, %v1495, %v1494
        %vm1499 = vcmp.ge.s32.totalorder %v511, 1
        %v1500 = vsel %vm1499, 1, 0
        %vm1501 = vcmp.eq.s32.totalorder %v1500, 1
        %v1502 = vsel %vm1501, %v1498, 0.0
        %v1503 = vsel %vm1501, %v1497, 0.0
        %v1504 = vlaneseq
        %v1505 = vshrl.u32 %v1504, 7
        %v1506 = vsub.s32 1, %v1505
        %v1507 = vrot.slane %v1454, %v1506
        %v1508 = vmul.f32 %v1502, %v1507
        %v1509 = vmul.f32 %v1503, %v1507
        %v1510 = vadd.f32 %v1484, %v1508
        %v1511 = vadd.f32 %v1485, %v1509
        %v1512 = vlaneseq
        %v1513 = vshrl.u32 %v1512, 7
        %v1514 = vsub.s32 1, %v1513
        %v1515 = vrot.slane %v1455, %v1514
        %v1516 = vmul.f32 %v1502, %v1515
        %v1517 = vmul.f32 %v1503, %v1515
        %v1518 = vadd.f32 %v1492, %v1516
        %v1519 = vadd.f32 %v1493, %v1517
        %v1520 = vrot.slane %v1452, 1
        %v1521 = vrot.slane %v1453, 1
        %vm1522 = vcmp.lt.s32.totalorder %v511, 7
        %v1523 = vsel %vm1522, %v1520, %v1521
        %v1524 = vsel %vm1522, %v1521, %v1520
        %v1525 = vsel %vm1522, 1, 0
        %vm1526 = vcmp.eq.s32.totalorder %v1525, 1
        %v1527 = vsel %vm1526, %v1523, 0.0
        %v1528 = vsel %vm1526, %v1524, 0.0
        %v1529 = vlaneseq
        %v1530 = vshrl.u32 %v1529, 7
        %v1531 = vsub.s32 3, %v1530
        %v1532 = vrot.slane %v1454, %v1531
        %v1533 = vmul.f32 %v1527, %v1532
        %v1534 = vmul.f32 %v1528, %v1532
        %v1535 = vadd.f32 %v1510, %v1533
        %v1536 = vadd.f32 %v1511, %v1534
        %v1537 = vlaneseq
        %v1538 = vshrl.u32 %v1537, 7
        %v1539 = vsub.s32 3, %v1538
        %v1540 = vrot.slane %v1455, %v1539
        %v1541 = vmul.f32 %v1527, %v1540
        %v1542 = vmul.f32 %v1528, %v1540
        %v1543 = vadd.f32 %v1518, %v1541
        %v1544 = vadd.f32 %v1519, %v1542
        %v1545 = vrot.slane %v1452, 2
        %v1546 = vrot.slane %v1453, 2
        %vm1547 = vcmp.lt.s32.totalorder %v511, 6
        %v1548 = vsel %vm1547, %v1545, %v1546
        %v1549 = vsel %vm1547, %v1546, %v1545
        %v1550 = vsel %vm1547, 1, 0
        %vm1551 = vcmp.eq.s32.totalorder %v1550, 1
        %v1552 = vsel %vm1551, %v1548, 0.0
        %v1553 = vsel %vm1551, %v1549, 0.0
        %v1554 = vlaneseq
        %v1555 = vshrl.u32 %v1554, 7
        %v1556 = vsub.s32 4, %v1555
        %v1557 = vrot.slane %v1454, %v1556
        %v1558 = vmul.f32 %v1552, %v1557
        %v1559 = vmul.f32 %v1553, %v1557
        %v1560 = vadd.f32 %v1535, %v1558
        %v1561 = vadd.f32 %v1536, %v1559
        %v1562 = vlaneseq
        %v1563 = vshrl.u32 %v1562, 7
        %v1564 = vsub.s32 4, %v1563
        %v1565 = vrot.slane %v1455, %v1564
        %v1566 = vmul.f32 %v1552, %v1565
        %v1567 = vmul.f32 %v1553, %v1565
        %v1568 = vadd.f32 %v1543, %v1566
        %v1569 = vadd.f32 %v1544, %v1567
        %v1570 = vld [vmem:[%s7] sm:$0x1]
        %v1572 = vlaneseq
        %v1573 = vshrl.u32 %v1572, 7
        %v1574 = vsub.s32 0, %v1573
        %v1575 = vrot.slane %v1570, %v1574
        %v1577 = vadd.f32 %v1560, %v1575
        %v1578 = vadd.f32 %v1561, %v1575
        %v1579 = vmul.f32 %v1577, 0.5
        %v1580 = vmul.f32 %v1578, 0.5
        %v1581 = vmul.f32 %v1577, 0.70710677
        %v1582 = vmul.f32 %v1578, 0.70710677
        %v1583 = vand.u32 2147483647, %v1581
        %v1584 = vand.u32 2147483647, %v1582
        %v1585 = vmul.f32 %v1583, 0.3275911
        %v1586 = vmul.f32 %v1584, 0.3275911
        %v1587 = vadd.f32 %v1585, 1.0
        %v1588 = vadd.f32 %v1586, 1.0
        %v1589 = vrcp.pop %v1587
        %v1590 = vmul.f32 1.0, %v1589
        %v1591 = vrcp.pop %v1588
        %v1592 = vmul.f32 1.0, %v1591
        %v1593 = vmul.f32 %v1590, 1.0614054
        %v1594 = vmul.f32 %v1592, 1.0614054
        %v1595 = vadd.f32 %v1593, -1.4531521
        %v1596 = vadd.f32 %v1594, -1.4531521
        %v1597 = vmul.f32 %v1595, %v1590
        %v1598 = vmul.f32 %v1596, %v1592
        %v1599 = vadd.f32 %v1597, 1.4214138
        %v1600 = vadd.f32 %v1598, 1.4214138
        %v1601 = vmul.f32 %v1599, %v1590
        %v1602 = vmul.f32 %v1600, %v1592
        %v1603 = vadd.f32 %v1601, -0.28449672
        %v1604 = vadd.f32 %v1602, -0.28449672
        %v1605 = vmul.f32 %v1603, %v1590
        %v1606 = vmul.f32 %v1604, %v1592
        %v1607 = vadd.f32 %v1605, 0.2548296
        %v1608 = vadd.f32 %v1606, 0.2548296
        %v1609 = vmul.f32 %v1607, %v1590
        %v1610 = vmul.f32 %v1608, %v1592
        %v1611 = vsub.f32 0.0, %v1583
        %v1612 = vsub.f32 0.0, %v1584
        %v1613 = vmul.f32 %v1611, %v1583
        %v1614 = vmul.f32 %v1612, %v1584
        %v1615 = vmul.f32 %v1613, 1.442695
        %v1616 = vpow.pop %v1615
        %v1617 = vmul.f32 %v1614, 1.442695
        %v1618 = vpow.pop %v1617
        %v1619 = vmul.f32 %v1609, %v1616
        %v1620 = vmul.f32 %v1610, %v1618
        %v1621 = vsub.f32 1.0, %v1619
        %v1622 = vsub.f32 1.0, %v1620
        %vm1623 = vcmp.ge.f32.partialorder %v1581, 0.0
        %vm1624 = vcmp.ge.f32.partialorder %v1582, 0.0
        %v1625 = vsub.f32 0.0, %v1621
        %v1626 = vsub.f32 0.0, %v1622
        %v1627 = vsel %vm1623, %v1621, %v1625
        %v1628 = vsel %vm1624, %v1622, %v1626
        %v1629 = vadd.f32 %v1627, 1.0
        %v1630 = vadd.f32 %v1628, 1.0
        %v1631 = vmul.f32 %v1579, %v1629
        %v1632 = vmul.f32 %v1580, %v1630
        %v1633 = vld [vmem:[%s8] sm:$0x1]
        %v1635 = vlaneseq
        %v1636 = vshrl.u32 %v1635, 7
        %v1637 = vsub.s32 0, %v1636
        %v1638 = vrot.slane %v1633, %v1637
        %v1640 = vadd.f32 %v1568, %v1638
        %v1641 = vadd.f32 %v1569, %v1638
        %v1642 = vmul.f32 %v1640, 0.5
        %v1643 = vmul.f32 %v1641, 0.5
        %v1644 = vmul.f32 %v1640, 0.70710677
        %v1645 = vmul.f32 %v1641, 0.70710677
        %v1646 = vand.u32 2147483647, %v1644
        %v1647 = vand.u32 2147483647, %v1645
        %v1648 = vmul.f32 %v1646, 0.3275911
        %v1649 = vmul.f32 %v1647, 0.3275911
        %v1650 = vadd.f32 %v1648, 1.0
        %v1651 = vadd.f32 %v1649, 1.0
        %v1652 = vrcp.pop %v1650
        %v1653 = vmul.f32 1.0, %v1652
        %v1654 = vrcp.pop %v1651
        %v1655 = vmul.f32 1.0, %v1654
        %v1656 = vmul.f32 %v1653, 1.0614054
        %v1657 = vmul.f32 %v1655, 1.0614054
        %v1658 = vadd.f32 %v1656, -1.4531521
        %v1659 = vadd.f32 %v1657, -1.4531521
        %v1660 = vmul.f32 %v1658, %v1653
        %v1661 = vmul.f32 %v1659, %v1655
        %v1662 = vadd.f32 %v1660, 1.4214138
        %v1663 = vadd.f32 %v1661, 1.4214138
        %v1664 = vmul.f32 %v1662, %v1653
        %v1665 = vmul.f32 %v1663, %v1655
        %v1666 = vadd.f32 %v1664, -0.28449672
        %v1667 = vadd.f32 %v1665, -0.28449672
        %v1668 = vmul.f32 %v1666, %v1653
        %v1669 = vmul.f32 %v1667, %v1655
        %v1670 = vadd.f32 %v1668, 0.2548296
        %v1671 = vadd.f32 %v1669, 0.2548296
        %v1672 = vmul.f32 %v1670, %v1653
        %v1673 = vmul.f32 %v1671, %v1655
        %v1674 = vsub.f32 0.0, %v1646
        %v1675 = vsub.f32 0.0, %v1647
        %v1676 = vmul.f32 %v1674, %v1646
        %v1677 = vmul.f32 %v1675, %v1647
        %v1678 = vmul.f32 %v1676, 1.442695
        %v1679 = vpow.pop %v1678
        %v1680 = vmul.f32 %v1677, 1.442695
        %v1681 = vpow.pop %v1680
        %v1682 = vmul.f32 %v1672, %v1679
        %v1683 = vmul.f32 %v1673, %v1681
        %v1684 = vsub.f32 1.0, %v1682
        %v1685 = vsub.f32 1.0, %v1683
        %vm1686 = vcmp.ge.f32.partialorder %v1644, 0.0
        %vm1687 = vcmp.ge.f32.partialorder %v1645, 0.0
        %v1688 = vsub.f32 0.0, %v1684
        %v1689 = vsub.f32 0.0, %v1685
        %v1690 = vsel %vm1686, %v1684, %v1688
        %v1691 = vsel %vm1687, %v1685, %v1689
        %v1692 = vadd.f32 %v1690, 1.0
        %v1693 = vadd.f32 %v1691, 1.0
        %v1694 = vmul.f32 %v1642, %v1692
        %v1695 = vmul.f32 %v1643, %v1693
        %v1696 = vld [vmem:[%s4] sm:$0x1]
        %v1698 = vlaneseq
        %v1699 = vshrl.u32 %v1698, 7
        %v1700 = vsub.s32 0, %v1699
        %v1701 = vrot.slane %v1696, %v1700
        %v1703 = vmul.f32 %v1205, %v1701
        %v1704 = vmul.f32 %v1211, %v1701
        %v1705 = vld [vmem:[%s9] sm:$0x7]
        %v1706 = vld [vmem:[%s10] sm:$0x7]
        %v1707 = vlaneseq
        %v1708 = vshrl.u32 %v1707, 7
        %v1709 = vsub.s32 1, %v1708
        %v1710 = vrot.slane %v1705, %v1709
        %v1711 = vmul.f32 %v1631, %v1710
        %v1712 = vmul.f32 %v1632, %v1710
        %v1713 = vlaneseq
        %v1714 = vshrl.u32 %v1713, 7
        %v1715 = vsub.s32 1, %v1714
        %v1716 = vrot.slane %v1706, %v1715
        %v1717 = vmul.f32 %v1694, %v1716
        %v1718 = vmul.f32 %v1695, %v1716
        %v1719 = vadd.f32 %v1711, %v1717
        %v1720 = vadd.f32 %v1712, %v1718
        %v1721 = vrot.slane %v1631, 7
        %v1722 = vrot.slane %v1632, 7
        %v1723 = vsel %vm1496, %v1721, %v1722
        %v1724 = vsel %vm1496, %v1722, %v1721
        %v1725 = vsel %vm1501, %v1724, 0.0
        %v1726 = vsel %vm1501, %v1723, 0.0
        %v1727 = vlaneseq
        %v1728 = vshrl.u32 %v1727, 7
        %v1729 = vsub.s32 0, %v1728
        %v1730 = vrot.slane %v1705, %v1729
        %v1731 = vmul.f32 %v1725, %v1730
        %v1732 = vmul.f32 %v1726, %v1730
        %v1733 = vadd.f32 %v1719, %v1731
        %v1734 = vadd.f32 %v1720, %v1732
        %v1735 = vrot.slane %v1694, 7
        %v1736 = vrot.slane %v1695, 7
        %v1737 = vsel %vm1496, %v1735, %v1736
        %v1738 = vsel %vm1496, %v1736, %v1735
        %v1739 = vsel %vm1501, %v1738, 0.0
        %v1740 = vsel %vm1501, %v1737, 0.0
        %v1741 = vlaneseq
        %v1742 = vshrl.u32 %v1741, 7
        %v1743 = vsub.s32 0, %v1742
        %v1744 = vrot.slane %v1706, %v1743
        %v1745 = vmul.f32 %v1739, %v1744
        %v1746 = vmul.f32 %v1740, %v1744
        %v1747 = vadd.f32 %v1733, %v1745
        %v1748 = vadd.f32 %v1734, %v1746
        %v1749 = vrot.slane %v1631, 1
        %v1750 = vrot.slane %v1632, 1
        %v1751 = vsel %vm1522, %v1749, %v1750
        %v1752 = vsel %vm1522, %v1750, %v1749
        %v1753 = vsel %vm1526, %v1751, 0.0
        %v1754 = vsel %vm1526, %v1752, 0.0
        %v1755 = vlaneseq
        %v1756 = vshrl.u32 %v1755, 7
        %v1757 = vsub.s32 2, %v1756
        %v1758 = vrot.slane %v1705, %v1757
        %v1759 = vmul.f32 %v1753, %v1758
        %v1760 = vmul.f32 %v1754, %v1758
        %v1761 = vadd.f32 %v1747, %v1759
        %v1762 = vadd.f32 %v1748, %v1760
        %v1763 = vrot.slane %v1694, 1
        %v1764 = vrot.slane %v1695, 1
        %v1765 = vsel %vm1522, %v1763, %v1764
        %v1766 = vsel %vm1522, %v1764, %v1763
        %v1767 = vsel %vm1526, %v1765, 0.0
        %v1768 = vsel %vm1526, %v1766, 0.0
        %v1769 = vlaneseq
        %v1770 = vshrl.u32 %v1769, 7
        %v1771 = vsub.s32 2, %v1770
        %v1772 = vrot.slane %v1706, %v1771
        %v1773 = vmul.f32 %v1767, %v1772
        %v1774 = vmul.f32 %v1768, %v1772
        %v1775 = vadd.f32 %v1761, %v1773
        %v1776 = vadd.f32 %v1762, %v1774
        %v1777 = vadd.f32 %v1703, %v1775
        %v1778 = vadd.f32 %v1704, %v1776
        %v1779 = vld [vmem:[%s11] sm:$0x1]
        %v1781 = vlaneseq
        %v1782 = vshrl.u32 %v1781, 7
        %v1783 = vsub.s32 0, %v1782
        %v1784 = vrot.slane %v1779, %v1783
        %v1786 = vadd.f32 %v1777, %v1784
        %v1787 = vadd.f32 %v1778, %v1784
        %v1788 = vmul.f32 %v1221, %v1449
        %v1789 = vmul.f32 %v1222, %v1451
        %v1790 = vld [vmem:[%s12] sm:$0x7]
        %v1791 = vlaneseq
        %v1792 = vshrl.u32 %v1791, 7
        %v1793 = vsub.s32 1, %v1792
        %v1794 = vrot.slane %v1790, %v1793
        %v1795 = vmul.f32 %v1788, %v1794
        %v1796 = vmul.f32 %v1789, %v1794
        %v1797 = vrot.slane %v1788, 7
        %v1798 = vrot.slane %v1789, 7
        %v1799 = vsel %vm1496, %v1797, %v1798
        %v1800 = vsel %vm1496, %v1798, %v1797
        %v1801 = vsel %vm1501, %v1800, 0.0
        %v1802 = vsel %vm1501, %v1799, 0.0
        %v1803 = vlaneseq
        %v1804 = vshrl.u32 %v1803, 7
        %v1805 = vsub.s32 0, %v1804
        %v1806 = vrot.slane %v1790, %v1805
        %v1807 = vmul.f32 %v1801, %v1806
        %v1808 = vmul.f32 %v1802, %v1806
        %v1809 = vadd.f32 %v1795, %v1807
        %v1810 = vadd.f32 %v1796, %v1808
        %v1811 = vrot.slane %v1788, 1
        %v1812 = vrot.slane %v1789, 1
        %v1813 = vsel %vm1522, %v1811, %v1812
        %v1814 = vsel %vm1522, %v1812, %v1811
        %v1815 = vsel %vm1526, %v1813, 0.0
        %v1816 = vsel %vm1526, %v1814, 0.0
        %v1817 = vlaneseq
        %v1818 = vshrl.u32 %v1817, 7
        %v1819 = vsub.s32 2, %v1818
        %v1820 = vrot.slane %v1790, %v1819
        %v1821 = vmul.f32 %v1815, %v1820
        %v1822 = vmul.f32 %v1816, %v1820
        %v1823 = vadd.f32 %v1809, %v1821
        %v1824 = vadd.f32 %v1810, %v1822
        %v1825 = vld [vmem:[%s13] sm:$0x1]
        %v1827 = vlaneseq
        %v1828 = vshrl.u32 %v1827, 7
        %v1829 = vsub.s32 0, %v1828
        %v1830 = vrot.slane %v1825, %v1829
        %v1832 = vadd.f32 %v1823, %v1830
        %v1833 = vadd.f32 %v1824, %v1830
        %v1834 = vmul.f32 %v1832, 0.5
        %v1835 = vmul.f32 %v1833, 0.5
        %v1836 = vmul.f32 %v1832, 0.70710677
        %v1837 = vmul.f32 %v1833, 0.70710677
        %v1838 = vand.u32 2147483647, %v1836
        %v1839 = vand.u32 2147483647, %v1837
        %v1840 = vmul.f32 %v1838, 0.3275911
        %v1841 = vmul.f32 %v1839, 0.3275911
        %v1842 = vadd.f32 %v1840, 1.0
        %v1843 = vadd.f32 %v1841, 1.0
        %v1844 = vrcp.pop %v1842
        %v1845 = vmul.f32 1.0, %v1844
        %v1846 = vrcp.pop %v1843
        %v1847 = vmul.f32 1.0, %v1846
        %v1848 = vmul.f32 %v1845, 1.0614054
        %v1849 = vmul.f32 %v1847, 1.0614054
        %v1850 = vadd.f32 %v1848, -1.4531521
        %v1851 = vadd.f32 %v1849, -1.4531521
        %v1852 = vmul.f32 %v1850, %v1845
        %v1853 = vmul.f32 %v1851, %v1847
        %v1854 = vadd.f32 %v1852, 1.4214138
        %v1855 = vadd.f32 %v1853, 1.4214138
        %v1856 = vmul.f32 %v1854, %v1845
        %v1857 = vmul.f32 %v1855, %v1847
        %v1858 = vadd.f32 %v1856, -0.28449672
        %v1859 = vadd.f32 %v1857, -0.28449672
        %v1860 = vmul.f32 %v1858, %v1845
        %v1861 = vmul.f32 %v1859, %v1847
        %v1862 = vadd.f32 %v1860, 0.2548296
        %v1863 = vadd.f32 %v1861, 0.2548296
        %v1864 = vmul.f32 %v1862, %v1845
        %v1865 = vmul.f32 %v1863, %v1847
        %v1866 = vsub.f32 0.0, %v1838
        %v1867 = vsub.f32 0.0, %v1839
        %v1868 = vmul.f32 %v1866, %v1838
        %v1869 = vmul.f32 %v1867, %v1839
        %v1870 = vmul.f32 %v1868, 1.442695
        %v1871 = vpow.pop %v1870
        %v1872 = vmul.f32 %v1869, 1.442695
        %v1873 = vpow.pop %v1872
        %v1874 = vmul.f32 %v1864, %v1871
        %v1875 = vmul.f32 %v1865, %v1873
        %v1876 = vsub.f32 1.0, %v1874
        %v1877 = vsub.f32 1.0, %v1875
        %vm1878 = vcmp.ge.f32.partialorder %v1836, 0.0
        %vm1879 = vcmp.ge.f32.partialorder %v1837, 0.0
        %v1880 = vsub.f32 0.0, %v1876
        %v1881 = vsub.f32 0.0, %v1877
        %v1882 = vsel %vm1878, %v1876, %v1880
        %v1883 = vsel %vm1879, %v1877, %v1881
        %v1884 = vadd.f32 %v1882, 1.0
        %v1885 = vadd.f32 %v1883, 1.0
        %v1886 = vmul.f32 %v1834, %v1884
        %v1887 = vmul.f32 %v1835, %v1885
        %s1888 = sld [smem:[#allocation2 + $0x2]]
        %v1889 = vstv %s1888
        %v1890 = vmul.f32 %v1889, %v1886
        %v1891 = vmul.f32 %v1889, %v1887
        %v1892 = vadd.f32 %v1786, %v1890
        %v1893 = vadd.f32 %v1787, %v1891
        %v1894 = vld [vmem:[%s2] sm:$0xff]
        %v1895 = vld [vmem:[%s2 + $0x8] sm:$0xff]
        %v1896 = vld [vmem:[%s2 + $0x10] sm:$0xff]
        %v1897 = vld [vmem:[%s2 + $0x18] sm:$0xff]
        %v1898 = vld [vmem:[%s2 + $0x20] sm:$0xff]
        %v1899 = vld [vmem:[%s2 + $0x28] sm:$0xff]
        %v1900 = vld [vmem:[%s2 + $0x30] sm:$0xff]
        %v1901 = vld [vmem:[%s2 + $0x38] sm:$0xff]
        %v1902 = vld [vmem:[%s2 + $0x40] sm:$0xff]
        %v1903 = vld [vmem:[%s2 + $0x48] sm:$0xff]
        %v1904 = vld [vmem:[%s2 + $0x50] sm:$0xff]
        %v1905 = vld [vmem:[%s2 + $0x58] sm:$0xff]
        %v1906 = vld [vmem:[%s2 + $0x60] sm:$0xff]
        %v1907 = vld [vmem:[%s2 + $0x68] sm:$0xff]
        %v1908 = vld [vmem:[%s2 + $0x70] sm:$0xff]
        %v1909 = vld [vmem:[%s2 + $0x78] sm:$0xff]
        %1910 = vmatprep.subr.mxu0 0.0
        %v1911 = vand.u32 %v1909, 4294901760
        %1912 = vmatpush1.msra.mxu0 %v1911
        %1913 = vmatprep.subr.mxu0 0.0
        %v1914 = vand.u32 %v1908, 4294901760
        %1915 = vmatpush1.msra.mxu0 %v1914
        %1916 = vmatprep.subr.mxu0 0.0
        %v1917 = vand.u32 %v1907, 4294901760
        %1918 = vmatpush1.msra.mxu0 %v1917
        %1919 = vmatprep.subr.mxu0 0.0
        %v1920 = vand.u32 %v1906, 4294901760
        %1921 = vmatpush1.msra.mxu0 %v1920
        %1922 = vmatprep.subr.mxu0 0.0
        %v1923 = vand.u32 %v1905, 4294901760
        %1924 = vmatpush1.msra.mxu0 %v1923
        %1925 = vmatprep.subr.mxu0 0.0
        %v1926 = vand.u32 %v1904, 4294901760
        %1927 = vmatpush1.msra.mxu0 %v1926
        %1928 = vmatprep.subr.mxu0 0.0
        %v1929 = vand.u32 %v1903, 4294901760
        %1930 = vmatpush1.msra.mxu0 %v1929
        %1931 = vmatprep.subr.mxu0 0.0
        %v1932 = vand.u32 %v1902, 4294901760
        %1933 = vmatpush1.msra.mxu0 %v1932
        %1934 = vmatprep.subr.mxu0 0.0
        %v1935 = vand.u32 %v1901, 4294901760
        %1936 = vmatpush1.msra.mxu0 %v1935
        %1937 = vmatprep.subr.mxu0 0.0
        %v1938 = vand.u32 %v1900, 4294901760
        %1939 = vmatpush1.msra.mxu0 %v1938
        %1940 = vmatprep.subr.mxu0 0.0
        %v1941 = vand.u32 %v1899, 4294901760
        %1942 = vmatpush1.msra.mxu0 %v1941
        %1943 = vmatprep.subr.mxu0 0.0
        %v1944 = vand.u32 %v1898, 4294901760
        %1945 = vmatpush1.msra.mxu0 %v1944
        %1946 = vmatprep.subr.mxu0 0.0
        %v1947 = vand.u32 %v1897, 4294901760
        %1948 = vmatpush1.msra.mxu0 %v1947
        %1949 = vmatprep.subr.mxu0 0.0
        %v1950 = vand.u32 %v1896, 4294901760
        %1951 = vmatpush1.msra.mxu0 %v1950
        %1952 = vmatprep.subr.mxu0 0.0
        %v1953 = vand.u32 %v1895, 4294901760
        %1954 = vmatpush1.msra.mxu0 %v1953
        %1955 = vmatprep.subr.mxu0 0.0
        %v1956 = vand.u32 %v1894, 4294901760
        %1957 = vmatpush1.msra.mxu0 %v1956
        %1958 = vmatprep.subr.mxu0 0.0
        %1959 = vmatpush2.msra.mxu0 0.0
        %1960 = vmatprep.subr.mxu0 0.0
        %1961 = vmatpush2.msra.mxu0 0.0
        %1962 = vmatprep.subr.mxu0 0.0
        %1963 = vmatpush2.msra.mxu0 0.0
        %1964 = vmatprep.subr.mxu0 0.0
        %1965 = vmatpush2.msra.mxu0 0.0
        %1966 = vmatprep.subr.mxu0 0.0
        %1967 = vmatpush2.msra.mxu0 0.0
        %1968 = vmatprep.subr.mxu0 0.0
        %1969 = vmatpush2.msra.mxu0 0.0
        %1970 = vmatprep.subr.mxu0 0.0
        %1971 = vmatpush2.msra.mxu0 0.0
        %1972 = vmatprep.subr.mxu0 0.0
        %1973 = vmatpush2.msra.mxu0 0.0
        %1974 = vmatprep.subr.mxu0 0.0
        %1975 = vmatpush2.msra.mxu0 0.0
        %1976 = vmatprep.subr.mxu0 0.0
        %1977 = vmatpush2.msra.mxu0 0.0
        %1978 = vmatprep.subr.mxu0 0.0
        %1979 = vmatpush2.msra.mxu0 0.0
        %1980 = vmatprep.subr.mxu0 0.0
        %1981 = vmatpush2.msra.mxu0 0.0
        %1982 = vmatprep.subr.mxu0 0.0
        %1983 = vmatpush2.msra.mxu0 0.0
        %1984 = vmatprep.subr.mxu0 0.0
        %1985 = vmatpush2.msra.mxu0 0.0
        %1986 = vmatprep.subr.mxu0 0.0
        %1987 = vmatpush2.msra.mxu0 0.0
        %1988 = vmatprep.subr.mxu0 0.0
        %1989 = vmatpush2.msra.mxu0 0.0
        %1990 = vmatprep.mubr.f32.mxu0 0.0
        %v1991 = vand.u32 %v1892, 4294901760
        %v1992 = vsub.f32 %v1892, %v1991
        %v1993 = vand.u32 %v1992, 4294901760
        %v1994 = vsub.f32 %v1992, %v1993
        %v1995 = vand.u32 %v1994, 4294901760
        %1996 = vmatmul.mubr.f32.gmra.mxu0 %v1995
        %v1997 = vpop.f32.mrf.mxu0
        %v1998 = vadd.f32 0.0, %v1997
        %v1999 = vpop.f32.mrf.mxu0
        %2000 = vmatprep.mubr.f32.mxu0 0.0
        %v2001 = vand.u32 %v1893, 4294901760
        %v2002 = vsub.f32 %v1893, %v2001
        %v2003 = vand.u32 %v2002, 4294901760
        %v2004 = vsub.f32 %v2002, %v2003
        %v2005 = vand.u32 %v2004, 4294901760
        %2006 = vmatmul.mubr.f32.gmra.mxu0 %v2005
        %v2007 = vpop.f32.mrf.mxu0
        %v2008 = vadd.f32 0.0, %v2007
        %v2009 = vpop.f32.mrf.mxu0
        %2010 = vdwg.mxu0
        %2011 = vmatprep.subr.mxu0 0.0
        %v2012 = vand.u32 %v1909, 4294901760
        %v2013 = vsub.f32 %v1909, %v2012
        %v2014 = vand.u32 %v2013, 4294901760
        %v2015 = vsub.f32 %v2013, %v2014
        %v2016 = vand.u32 %v2015, 4294901760
        %2017 = vmatpush1.msra.mxu0 %v2016
        %2018 = vmatprep.subr.mxu0 0.0
        %v2019 = vand.u32 %v1908, 4294901760
        %v2020 = vsub.f32 %v1908, %v2019
        %v2021 = vand.u32 %v2020, 4294901760
        %v2022 = vsub.f32 %v2020, %v2021
        %v2023 = vand.u32 %v2022, 4294901760
        %2024 = vmatpush1.msra.mxu0 %v2023
        %2025 = vmatprep.subr.mxu0 0.0
        %v2026 = vand.u32 %v1907, 4294901760
        %v2027 = vsub.f32 %v1907, %v2026
        %v2028 = vand.u32 %v2027, 4294901760
        %v2029 = vsub.f32 %v2027, %v2028
        %v2030 = vand.u32 %v2029, 4294901760
        %2031 = vmatpush1.msra.mxu0 %v2030
        %2032 = vmatprep.subr.mxu0 0.0
        %v2033 = vand.u32 %v1906, 4294901760
        %v2034 = vsub.f32 %v1906, %v2033
        %v2035 = vand.u32 %v2034, 4294901760
        %v2036 = vsub.f32 %v2034, %v2035
        %v2037 = vand.u32 %v2036, 4294901760
        %2038 = vmatpush1.msra.mxu0 %v2037
        %2039 = vmatprep.subr.mxu0 0.0
        %v2040 = vand.u32 %v1905, 4294901760
        %v2041 = vsub.f32 %v1905, %v2040
        %v2042 = vand.u32 %v2041, 4294901760
        %v2043 = vsub.f32 %v2041, %v2042
        %v2044 = vand.u32 %v2043, 4294901760
        %2045 = vmatpush1.msra.mxu0 %v2044
        %2046 = vmatprep.subr.mxu0 0.0
        %v2047 = vand.u32 %v1904, 4294901760
        %v2048 = vsub.f32 %v1904, %v2047
        %v2049 = vand.u32 %v2048, 4294901760
        %v2050 = vsub.f32 %v2048, %v2049
        %v2051 = vand.u32 %v2050, 4294901760
        %2052 = vmatpush1.msra.mxu0 %v2051
        %2053 = vmatprep.subr.mxu0 0.0
        %v2054 = vand.u32 %v1903, 4294901760
        %v2055 = vsub.f32 %v1903, %v2054
        %v2056 = vand.u32 %v2055, 4294901760
        %v2057 = vsub.f32 %v2055, %v2056
        %v2058 = vand.u32 %v2057, 4294901760
        %2059 = vmatpush1.msra.mxu0 %v2058
        %2060 = vmatprep.subr.mxu0 0.0
        %v2061 = vand.u32 %v1902, 4294901760
        %v2062 = vsub.f32 %v1902, %v2061
        %v2063 = vand.u32 %v2062, 4294901760
        %v2064 = vsub.f32 %v2062, %v2063
        %v2065 = vand.u32 %v2064, 4294901760
        %2066 = vmatpush1.msra.mxu0 %v2065
        %2067 = vmatprep.subr.mxu0 0.0
        %v2068 = vand.u32 %v1901, 4294901760
        %v2069 = vsub.f32 %v1901, %v2068
        %v2070 = vand.u32 %v2069, 4294901760
        %v2071 = vsub.f32 %v2069, %v2070
        %v2072 = vand.u32 %v2071, 4294901760
        %2073 = vmatpush1.msra.mxu0 %v2072
        %2074 = vmatprep.subr.mxu0 0.0
        %v2075 = vand.u32 %v1900, 4294901760
        %v2076 = vsub.f32 %v1900, %v2075
        %v2077 = vand.u32 %v2076, 4294901760
        %v2078 = vsub.f32 %v2076, %v2077
        %v2079 = vand.u32 %v2078, 4294901760
        %2080 = vmatpush1.msra.mxu0 %v2079
        %2081 = vmatprep.subr.mxu0 0.0
        %v2082 = vand.u32 %v1899, 4294901760
        %v2083 = vsub.f32 %v1899, %v2082
        %v2084 = vand.u32 %v2083, 4294901760
        %v2085 = vsub.f32 %v2083, %v2084
        %v2086 = vand.u32 %v2085, 4294901760
        %2087 = vmatpush1.msra.mxu0 %v2086
        %2088 = vmatprep.subr.mxu0 0.0
        %v2089 = vand.u32 %v1898, 4294901760
        %v2090 = vsub.f32 %v1898, %v2089
        %v2091 = vand.u32 %v2090, 4294901760
        %v2092 = vsub.f32 %v2090, %v2091
        %v2093 = vand.u32 %v2092, 4294901760
        %2094 = vmatpush1.msra.mxu0 %v2093
        %2095 = vmatprep.subr.mxu0 0.0
        %v2096 = vand.u32 %v1897, 4294901760
        %v2097 = vsub.f32 %v1897, %v2096
        %v2098 = vand.u32 %v2097, 4294901760
        %v2099 = vsub.f32 %v2097, %v2098
        %v2100 = vand.u32 %v2099, 4294901760
        %2101 = vmatpush1.msra.mxu0 %v2100
        %2102 = vmatprep.subr.mxu0 0.0
        %v2103 = vand.u32 %v1896, 4294901760
        %v2104 = vsub.f32 %v1896, %v2103
        %v2105 = vand.u32 %v2104, 4294901760
        %v2106 = vsub.f32 %v2104, %v2105
        %v2107 = vand.u32 %v2106, 4294901760
        %2108 = vmatpush1.msra.mxu0 %v2107
        %2109 = vmatprep.subr.mxu0 0.0
        %v2110 = vand.u32 %v1895, 4294901760
        %v2111 = vsub.f32 %v1895, %v2110
        %v2112 = vand.u32 %v2111, 4294901760
        %v2113 = vsub.f32 %v2111, %v2112
        %v2114 = vand.u32 %v2113, 4294901760
        %2115 = vmatpush1.msra.mxu0 %v2114
        %2116 = vmatprep.subr.mxu0 0.0
        %v2117 = vand.u32 %v1894, 4294901760
        %v2118 = vsub.f32 %v1894, %v2117
        %v2119 = vand.u32 %v2118, 4294901760
        %v2120 = vsub.f32 %v2118, %v2119
        %v2121 = vand.u32 %v2120, 4294901760
        %2122 = vmatpush1.msra.mxu0 %v2121
        %2123 = vmatprep.subr.mxu0 0.0
        %2124 = vmatpush2.msra.mxu0 0.0
        %2125 = vmatprep.subr.mxu0 0.0
        %2126 = vmatpush2.msra.mxu0 0.0
        %2127 = vmatprep.subr.mxu0 0.0
        %2128 = vmatpush2.msra.mxu0 0.0
        %2129 = vmatprep.subr.mxu0 0.0
        %2130 = vmatpush2.msra.mxu0 0.0
        %2131 = vmatprep.subr.mxu0 0.0
        %2132 = vmatpush2.msra.mxu0 0.0
        %2133 = vmatprep.subr.mxu0 0.0
        %2134 = vmatpush2.msra.mxu0 0.0
        %2135 = vmatprep.subr.mxu0 0.0
        %2136 = vmatpush2.msra.mxu0 0.0
        %2137 = vmatprep.subr.mxu0 0.0
        %2138 = vmatpush2.msra.mxu0 0.0
        %2139 = vmatprep.subr.mxu0 0.0
        %2140 = vmatpush2.msra.mxu0 0.0
        %2141 = vmatprep.subr.mxu0 0.0
        %2142 = vmatpush2.msra.mxu0 0.0
        %2143 = vmatprep.subr.mxu0 0.0
        %2144 = vmatpush2.msra.mxu0 0.0
        %2145 = vmatprep.subr.mxu0 0.0
        %2146 = vmatpush2.msra.mxu0 0.0
        %2147 = vmatprep.subr.mxu0 0.0
        %2148 = vmatpush2.msra.mxu0 0.0
        %2149 = vmatprep.subr.mxu0 0.0
        %2150 = vmatpush2.msra.mxu0 0.0
        %2151 = vmatprep.subr.mxu0 0.0
        %2152 = vmatpush2.msra.mxu0 0.0
        %2153 = vmatprep.subr.mxu0 0.0
        %2154 = vmatpush2.msra.mxu0 0.0
        %2155 = vmatprep.mubr.f32.mxu0 0.0
        %v2156 = vand.u32 %v1892, 4294901760
        %2157 = vmatmul.mubr.f32.gmra.mxu0 %v2156
        %v2158 = vpop.f32.mrf.mxu0
        %v2159 = vadd.f32 %v1998, %v2158
        %v2160 = vpop.f32.mrf.mxu0
        %2161 = vmatprep.mubr.f32.mxu0 0.0
        %v2162 = vand.u32 %v1893, 4294901760
        %2163 = vmatmul.mubr.f32.gmra.mxu0 %v2162
        %v2164 = vpop.f32.mrf.mxu0
        %v2165 = vadd.f32 %v2008, %v2164
        %v2166 = vpop.f32.mrf.mxu0
        %2167 = vdwg.mxu0
        %2168 = vmatprep.subr.mxu0 0.0
        %v2169 = vand.u32 %v1909, 4294901760
        %v2170 = vsub.f32 %v1909, %v2169
        %2171 = vmatpush1.msra.mxu0 %v2170
        %2172 = vmatprep.subr.mxu0 0.0
        %v2173 = vand.u32 %v1908, 4294901760
        %v2174 = vsub.f32 %v1908, %v2173
        %2175 = vmatpush1.msra.mxu0 %v2174
        %2176 = vmatprep.subr.mxu0 0.0
        %v2177 = vand.u32 %v1907, 4294901760
        %v2178 = vsub.f32 %v1907, %v2177
        %2179 = vmatpush1.msra.mxu0 %v2178
        %2180 = vmatprep.subr.mxu0 0.0
        %v2181 = vand.u32 %v1906, 4294901760
        %v2182 = vsub.f32 %v1906, %v2181
        %2183 = vmatpush1.msra.mxu0 %v2182
        %2184 = vmatprep.subr.mxu0 0.0
        %v2185 = vand.u32 %v1905, 4294901760
        %v2186 = vsub.f32 %v1905, %v2185
        %2187 = vmatpush1.msra.mxu0 %v2186
        %2188 = vmatprep.subr.mxu0 0.0
        %v2189 = vand.u32 %v1904, 4294901760
        %v2190 = vsub.f32 %v1904, %v2189
        %2191 = vmatpush1.msra.mxu0 %v2190
        %2192 = vmatprep.subr.mxu0 0.0
        %v2193 = vand.u32 %v1903, 4294901760
        %v2194 = vsub.f32 %v1903, %v2193
        %2195 = vmatpush1.msra.mxu0 %v2194
        %2196 = vmatprep.subr.mxu0 0.0
        %v2197 = vand.u32 %v1902, 4294901760
        %v2198 = vsub.f32 %v1902, %v2197
        %2199 = vmatpush1.msra.mxu0 %v2198
        %2200 = vmatprep.subr.mxu0 0.0
        %v2201 = vand.u32 %v1901, 4294901760
        %v2202 = vsub.f32 %v1901, %v2201
        %2203 = vmatpush1.msra.mxu0 %v2202
        %2204 = vmatprep.subr.mxu0 0.0
        %v2205 = vand.u32 %v1900, 4294901760
        %v2206 = vsub.f32 %v1900, %v2205
        %2207 = vmatpush1.msra.mxu0 %v2206
        %2208 = vmatprep.subr.mxu0 0.0
        %v2209 = vand.u32 %v1899, 4294901760
        %v2210 = vsub.f32 %v1899, %v2209
        %2211 = vmatpush1.msra.mxu0 %v2210
        %2212 = vmatprep.subr.mxu0 0.0
        %v2213 = vand.u32 %v1898, 4294901760
        %v2214 = vsub.f32 %v1898, %v2213
        %2215 = vmatpush1.msra.mxu0 %v2214
        %2216 = vmatprep.subr.mxu0 0.0
        %v2217 = vand.u32 %v1897, 4294901760
        %v2218 = vsub.f32 %v1897, %v2217
        %2219 = vmatpush1.msra.mxu0 %v2218
        %2220 = vmatprep.subr.mxu0 0.0
        %v2221 = vand.u32 %v1896, 4294901760
        %v2222 = vsub.f32 %v1896, %v2221
        %2223 = vmatpush1.msra.mxu0 %v2222
        %2224 = vmatprep.subr.mxu0 0.0
        %v2225 = vand.u32 %v1895, 4294901760
        %v2226 = vsub.f32 %v1895, %v2225
        %2227 = vmatpush1.msra.mxu0 %v2226
        %2228 = vmatprep.subr.mxu0 0.0
        %v2229 = vand.u32 %v1894, 4294901760
        %v2230 = vsub.f32 %v1894, %v2229
        %2231 = vmatpush1.msra.mxu0 %v2230
        %2232 = vmatprep.subr.mxu0 0.0
        %2233 = vmatpush2.msra.mxu0 0.0
        %2234 = vmatprep.subr.mxu0 0.0
        %2235 = vmatpush2.msra.mxu0 0.0
        %2236 = vmatprep.subr.mxu0 0.0
        %2237 = vmatpush2.msra.mxu0 0.0
        %2238 = vmatprep.subr.mxu0 0.0
        %2239 = vmatpush2.msra.mxu0 0.0
        %2240 = vmatprep.subr.mxu0 0.0
        %2241 = vmatpush2.msra.mxu0 0.0
        %2242 = vmatprep.subr.mxu0 0.0
        %2243 = vmatpush2.msra.mxu0 0.0
        %2244 = vmatprep.subr.mxu0 0.0
        %2245 = vmatpush2.msra.mxu0 0.0
        %2246 = vmatprep.subr.mxu0 0.0
        %2247 = vmatpush2.msra.mxu0 0.0
        %2248 = vmatprep.subr.mxu0 0.0
        %2249 = vmatpush2.msra.mxu0 0.0
        %2250 = vmatprep.subr.mxu0 0.0
        %2251 = vmatpush2.msra.mxu0 0.0
        %2252 = vmatprep.subr.mxu0 0.0
        %2253 = vmatpush2.msra.mxu0 0.0
        %2254 = vmatprep.subr.mxu0 0.0
        %2255 = vmatpush2.msra.mxu0 0.0
        %2256 = vmatprep.subr.mxu0 0.0
        %2257 = vmatpush2.msra.mxu0 0.0
        %2258 = vmatprep.subr.mxu0 0.0
        %2259 = vmatpush2.msra.mxu0 0.0
        %2260 = vmatprep.subr.mxu0 0.0
        %2261 = vmatpush2.msra.mxu0 0.0
        %2262 = vmatprep.subr.mxu0 0.0
        %2263 = vmatpush2.msra.mxu0 0.0
        %2264 = vmatprep.mubr.f32.mxu0 0.0
        %v2265 = vand.u32 %v1892, 4294901760
        %v2266 = vsub.f32 %v1892, %v2265
        %2267 = vmatmul.mubr.f32.gmra.mxu0 %v2266
        %v2268 = vpop.f32.mrf.mxu0
        %v2269 = vadd.f32 %v2159, %v2268
        %v2270 = vpop.f32.mrf.mxu0
        %2271 = vmatprep.mubr.f32.mxu0 0.0
        %v2272 = vand.u32 %v1893, 4294901760
        %v2273 = vsub.f32 %v1893, %v2272
        %2274 = vmatmul.mubr.f32.gmra.mxu0 %v2273
        %v2275 = vpop.f32.mrf.mxu0
        %v2276 = vadd.f32 %v2165, %v2275
        %v2277 = vpop.f32.mrf.mxu0
        %2278 = vdwg.mxu0
        %2279 = vmatprep.subr.mxu0 0.0
        %v2280 = vand.u32 %v1909, 4294901760
        %2281 = vmatpush1.msra.mxu0 %v2280
        %2282 = vmatprep.subr.mxu0 0.0
        %v2283 = vand.u32 %v1908, 4294901760
        %2284 = vmatpush1.msra.mxu0 %v2283
        %2285 = vmatprep.subr.mxu0 0.0
        %v2286 = vand.u32 %v1907, 4294901760
        %2287 = vmatpush1.msra.mxu0 %v2286
        %2288 = vmatprep.subr.mxu0 0.0
        %v2289 = vand.u32 %v1906, 4294901760
        %2290 = vmatpush1.msra.mxu0 %v2289
        %2291 = vmatprep.subr.mxu0 0.0
        %v2292 = vand.u32 %v1905, 4294901760
        %2293 = vmatpush1.msra.mxu0 %v2292
        %2294 = vmatprep.subr.mxu0 0.0
        %v2295 = vand.u32 %v1904, 4294901760
        %2296 = vmatpush1.msra.mxu0 %v2295
        %2297 = vmatprep.subr.mxu0 0.0
        %v2298 = vand.u32 %v1903, 4294901760
        %2299 = vmatpush1.msra.mxu0 %v2298
        %2300 = vmatprep.subr.mxu0 0.0
        %v2301 = vand.u32 %v1902, 4294901760
        %2302 = vmatpush1.msra.mxu0 %v2301
        %2303 = vmatprep.subr.mxu0 0.0
        %v2304 = vand.u32 %v1901, 4294901760
        %2305 = vmatpush1.msra.mxu0 %v2304
        %2306 = vmatprep.subr.mxu0 0.0
        %v2307 = vand.u32 %v1900, 4294901760
        %2308 = vmatpush1.msra.mxu0 %v2307
        %2309 = vmatprep.subr.mxu0 0.0
        %v2310 = vand.u32 %v1899, 4294901760
        %2311 = vmatpush1.msra.mxu0 %v2310
        %2312 = vmatprep.subr.mxu0 0.0
        %v2313 = vand.u32 %v1898, 4294901760
        %2314 = vmatpush1.msra.mxu0 %v2313
        %2315 = vmatprep.subr.mxu0 0.0
        %v2316 = vand.u32 %v1897, 4294901760
        %2317 = vmatpush1.msra.mxu0 %v2316
        %2318 = vmatprep.subr.mxu0 0.0
        %v2319 = vand.u32 %v1896, 4294901760
        %2320 = vmatpush1.msra.mxu0 %v2319
        %2321 = vmatprep.subr.mxu0 0.0
        %v2322 = vand.u32 %v1895, 4294901760
        %2323 = vmatpush1.msra.mxu0 %v2322
        %2324 = vmatprep.subr.mxu0 0.0
        %v2325 = vand.u32 %v1894, 4294901760
        %2326 = vmatpush1.msra.mxu0 %v2325
        %2327 = vmatprep.subr.mxu0 0.0
        %2328 = vmatpush2.msra.mxu0 0.0
        %2329 = vmatprep.subr.mxu0 0.0
        %2330 = vmatpush2.msra.mxu0 0.0
        %2331 = vmatprep.subr.mxu0 0.0
        %2332 = vmatpush2.msra.mxu0 0.0
        %2333 = vmatprep.subr.mxu0 0.0
        %2334 = vmatpush2.msra.mxu0 0.0
        %2335 = vmatprep.subr.mxu0 0.0
        %2336 = vmatpush2.msra.mxu0 0.0
        %2337 = vmatprep.subr.mxu0 0.0
        %2338 = vmatpush2.msra.mxu0 0.0
        %2339 = vmatprep.subr.mxu0 0.0
        %2340 = vmatpush2.msra.mxu0 0.0
        %2341 = vmatprep.subr.mxu0 0.0
        %2342 = vmatpush2.msra.mxu0 0.0
        %2343 = vmatprep.subr.mxu0 0.0
        %2344 = vmatpush2.msra.mxu0 0.0
        %2345 = vmatprep.subr.mxu0 0.0
        %2346 = vmatpush2.msra.mxu0 0.0
        %2347 = vmatprep.subr.mxu0 0.0
        %2348 = vmatpush2.msra.mxu0 0.0
        %2349 = vmatprep.subr.mxu0 0.0
        %2350 = vmatpush2.msra.mxu0 0.0
        %2351 = vmatprep.subr.mxu0 0.0
        %2352 = vmatpush2.msra.mxu0 0.0
        %2353 = vmatprep.subr.mxu0 0.0
        %2354 = vmatpush2.msra.mxu0 0.0
        %2355 = vmatprep.subr.mxu0 0.0
        %2356 = vmatpush2.msra.mxu0 0.0
        %2357 = vmatprep.subr.mxu0 0.0
        %2358 = vmatpush2.msra.mxu0 0.0
        %2359 = vmatprep.mubr.f32.mxu0 0.0
        %v2360 = vand.u32 %v1892, 4294901760
        %v2361 = vsub.f32 %v1892, %v2360
        %v2362 = vand.u32 %v2361, 4294901760
        %2363 = vmatmul.mubr.f32.gmra.mxu0 %v2362
        %v2364 = vpop.f32.mrf.mxu0
        %v2365 = vadd.f32 %v2269, %v2364
        %v2366 = vpop.f32.mrf.mxu0
        %2367 = vmatprep.mubr.f32.mxu0 0.0
        %v2368 = vand.u32 %v1893, 4294901760
        %v2369 = vsub.f32 %v1893, %v2368
        %v2370 = vand.u32 %v2369, 4294901760
        %2371 = vmatmul.mubr.f32.gmra.mxu0 %v2370
        %v2372 = vpop.f32.mrf.mxu0
        %v2373 = vadd.f32 %v2276, %v2372
        %v2374 = vpop.f32.mrf.mxu0
        %2375 = vdwg.mxu0
        %2376 = vmatprep.subr.mxu0 0.0
        %v2377 = vand.u32 %v1909, 4294901760
        %v2378 = vsub.f32 %v1909, %v2377
        %v2379 = vand.u32 %v2378, 4294901760
        %2380 = vmatpush1.msra.mxu0 %v2379
        %2381 = vmatprep.subr.mxu0 0.0
        %v2382 = vand.u32 %v1908, 4294901760
        %v2383 = vsub.f32 %v1908, %v2382
        %v2384 = vand.u32 %v2383, 4294901760
        %2385 = vmatpush1.msra.mxu0 %v2384
        %2386 = vmatprep.subr.mxu0 0.0
        %v2387 = vand.u32 %v1907, 4294901760
        %v2388 = vsub.f32 %v1907, %v2387
        %v2389 = vand.u32 %v2388, 4294901760
        %2390 = vmatpush1.msra.mxu0 %v2389
        %2391 = vmatprep.subr.mxu0 0.0
        %v2392 = vand.u32 %v1906, 4294901760
        %v2393 = vsub.f32 %v1906, %v2392
        %v2394 = vand.u32 %v2393, 4294901760
        %2395 = vmatpush1.msra.mxu0 %v2394
        %2396 = vmatprep.subr.mxu0 0.0
        %v2397 = vand.u32 %v1905, 4294901760
        %v2398 = vsub.f32 %v1905, %v2397
        %v2399 = vand.u32 %v2398, 4294901760
        %2400 = vmatpush1.msra.mxu0 %v2399
        %2401 = vmatprep.subr.mxu0 0.0
        %v2402 = vand.u32 %v1904, 4294901760
        %v2403 = vsub.f32 %v1904, %v2402
        %v2404 = vand.u32 %v2403, 4294901760
        %2405 = vmatpush1.msra.mxu0 %v2404
        %2406 = vmatprep.subr.mxu0 0.0
        %v2407 = vand.u32 %v1903, 4294901760
        %v2408 = vsub.f32 %v1903, %v2407
        %v2409 = vand.u32 %v2408, 4294901760
        %2410 = vmatpush1.msra.mxu0 %v2409
        %2411 = vmatprep.subr.mxu0 0.0
        %v2412 = vand.u32 %v1902, 4294901760
        %v2413 = vsub.f32 %v1902, %v2412
        %v2414 = vand.u32 %v2413, 4294901760
        %2415 = vmatpush1.msra.mxu0 %v2414
        %2416 = vmatprep.subr.mxu0 0.0
        %v2417 = vand.u32 %v1901, 4294901760
        %v2418 = vsub.f32 %v1901, %v2417
        %v2419 = vand.u32 %v2418, 4294901760
        %2420 = vmatpush1.msra.mxu0 %v2419
        %2421 = vmatprep.subr.mxu0 0.0
        %v2422 = vand.u32 %v1900, 4294901760
        %v2423 = vsub.f32 %v1900, %v2422
        %v2424 = vand.u32 %v2423, 4294901760
        %2425 = vmatpush1.msra.mxu0 %v2424
        %2426 = vmatprep.subr.mxu0 0.0
        %v2427 = vand.u32 %v1899, 4294901760
        %v2428 = vsub.f32 %v1899, %v2427
        %v2429 = vand.u32 %v2428, 4294901760
        %2430 = vmatpush1.msra.mxu0 %v2429
        %2431 = vmatprep.subr.mxu0 0.0
        %v2432 = vand.u32 %v1898, 4294901760
        %v2433 = vsub.f32 %v1898, %v2432
        %v2434 = vand.u32 %v2433, 4294901760
        %2435 = vmatpush1.msra.mxu0 %v2434
        %2436 = vmatprep.subr.mxu0 0.0
        %v2437 = vand.u32 %v1897, 4294901760
        %v2438 = vsub.f32 %v1897, %v2437
        %v2439 = vand.u32 %v2438, 4294901760
        %2440 = vmatpush1.msra.mxu0 %v2439
        %2441 = vmatprep.subr.mxu0 0.0
        %v2442 = vand.u32 %v1896, 4294901760
        %v2443 = vsub.f32 %v1896, %v2442
        %v2444 = vand.u32 %v2443, 4294901760
        %2445 = vmatpush1.msra.mxu0 %v2444
        %2446 = vmatprep.subr.mxu0 0.0
        %v2447 = vand.u32 %v1895, 4294901760
        %v2448 = vsub.f32 %v1895, %v2447
        %v2449 = vand.u32 %v2448, 4294901760
        %2450 = vmatpush1.msra.mxu0 %v2449
        %2451 = vmatprep.subr.mxu0 0.0
        %v2452 = vand.u32 %v1894, 4294901760
        %v2453 = vsub.f32 %v1894, %v2452
        %v2454 = vand.u32 %v2453, 4294901760
        %2455 = vmatpush1.msra.mxu0 %v2454
        %2456 = vmatprep.subr.mxu0 0.0
        %2457 = vmatpush2.msra.mxu0 0.0
        %2458 = vmatprep.subr.mxu0 0.0
        %2459 = vmatpush2.msra.mxu0 0.0
        %2460 = vmatprep.subr.mxu0 0.0
        %2461 = vmatpush2.msra.mxu0 0.0
        %2462 = vmatprep.subr.mxu0 0.0
        %2463 = vmatpush2.msra.mxu0 0.0
        %2464 = vmatprep.subr.mxu0 0.0
        %2465 = vmatpush2.msra.mxu0 0.0
        %2466 = vmatprep.subr.mxu0 0.0
        %2467 = vmatpush2.msra.mxu0 0.0
        %2468 = vmatprep.subr.mxu0 0.0
        %2469 = vmatpush2.msra.mxu0 0.0
        %2470 = vmatprep.subr.mxu0 0.0
        %2471 = vmatpush2.msra.mxu0 0.0
        %2472 = vmatprep.subr.mxu0 0.0
        %2473 = vmatpush2.msra.mxu0 0.0
        %2474 = vmatprep.subr.mxu0 0.0
        %2475 = vmatpush2.msra.mxu0 0.0
        %2476 = vmatprep.subr.mxu0 0.0
        %2477 = vmatpush2.msra.mxu0 0.0
        %2478 = vmatprep.subr.mxu0 0.0
        %2479 = vmatpush2.msra.mxu0 0.0
        %2480 = vmatprep.subr.mxu0 0.0
        %2481 = vmatpush2.msra.mxu0 0.0
        %2482 = vmatprep.subr.mxu0 0.0
        %2483 = vmatpush2.msra.mxu0 0.0
        %2484 = vmatprep.subr.mxu0 0.0
        %2485 = vmatpush2.msra.mxu0 0.0
        %2486 = vmatprep.subr.mxu0 0.0
        %2487 = vmatpush2.msra.mxu0 0.0
        %2488 = vmatprep.mubr.f32.mxu0 0.0
        %v2489 = vand.u32 %v1892, 4294901760
        %2490 = vmatmul.mubr.f32.gmra.mxu0 %v2489
        %v2491 = vpop.f32.mrf.mxu0
        %v2492 = vadd.f32 %v2365, %v2491
        %v2493 = vpop.f32.mrf.mxu0
        %2494 = vmatprep.mubr.f32.mxu0 0.0
        %v2495 = vand.u32 %v1893, 4294901760
        %2496 = vmatmul.mubr.f32.gmra.mxu0 %v2495
        %v2497 = vpop.f32.mrf.mxu0
        %v2498 = vadd.f32 %v2373, %v2497
        %v2499 = vpop.f32.mrf.mxu0
        %2500 = vdwg.mxu0
        %2501 = vmatprep.subr.mxu0 0.0
        %v2502 = vand.u32 %v1909, 4294901760
        %2503 = vmatpush1.msra.mxu0 %v2502
        %2504 = vmatprep.subr.mxu0 0.0
        %v2505 = vand.u32 %v1908, 4294901760
        %2506 = vmatpush1.msra.mxu0 %v2505
        %2507 = vmatprep.subr.mxu0 0.0
        %v2508 = vand.u32 %v1907, 4294901760
        %2509 = vmatpush1.msra.mxu0 %v2508
        %2510 = vmatprep.subr.mxu0 0.0
        %v2511 = vand.u32 %v1906, 4294901760
        %2512 = vmatpush1.msra.mxu0 %v2511
        %2513 = vmatprep.subr.mxu0 0.0
        %v2514 = vand.u32 %v1905, 4294901760
        %2515 = vmatpush1.msra.mxu0 %v2514
        %2516 = vmatprep.subr.mxu0 0.0
        %v2517 = vand.u32 %v1904, 4294901760
        %2518 = vmatpush1.msra.mxu0 %v2517
        %2519 = vmatprep.subr.mxu0 0.0
        %v2520 = vand.u32 %v1903, 4294901760
        %2521 = vmatpush1.msra.mxu0 %v2520
        %2522 = vmatprep.subr.mxu0 0.0
        %v2523 = vand.u32 %v1902, 4294901760
        %2524 = vmatpush1.msra.mxu0 %v2523
        %2525 = vmatprep.subr.mxu0 0.0
        %v2526 = vand.u32 %v1901, 4294901760
        %2527 = vmatpush1.msra.mxu0 %v2526
        %2528 = vmatprep.subr.mxu0 0.0
        %v2529 = vand.u32 %v1900, 4294901760
        %2530 = vmatpush1.msra.mxu0 %v2529
        %2531 = vmatprep.subr.mxu0 0.0
        %v2532 = vand.u32 %v1899, 4294901760
        %2533 = vmatpush1.msra.mxu0 %v2532
        %2534 = vmatprep.subr.mxu0 0.0
        %v2535 = vand.u32 %v1898, 4294901760
        %2536 = vmatpush1.msra.mxu0 %v2535
        %2537 = vmatprep.subr.mxu0 0.0
        %v2538 = vand.u32 %v1897, 4294901760
        %2539 = vmatpush1.msra.mxu0 %v2538
        %2540 = vmatprep.subr.mxu0 0.0
        %v2541 = vand.u32 %v1896, 4294901760
        %2542 = vmatpush1.msra.mxu0 %v2541
        %2543 = vmatprep.subr.mxu0 0.0
        %v2544 = vand.u32 %v1895, 4294901760
        %2545 = vmatpush1.msra.mxu0 %v2544
        %2546 = vmatprep.subr.mxu0 0.0
        %v2547 = vand.u32 %v1894, 4294901760
        %2548 = vmatpush1.msra.mxu0 %v2547
        %2549 = vmatprep.subr.mxu0 0.0
        %2550 = vmatpush2.msra.mxu0 0.0
        %2551 = vmatprep.subr.mxu0 0.0
        %2552 = vmatpush2.msra.mxu0 0.0
        %2553 = vmatprep.subr.mxu0 0.0
        %2554 = vmatpush2.msra.mxu0 0.0
        %2555 = vmatprep.subr.mxu0 0.0
        %2556 = vmatpush2.msra.mxu0 0.0
        %2557 = vmatprep.subr.mxu0 0.0
        %2558 = vmatpush2.msra.mxu0 0.0
        %2559 = vmatprep.subr.mxu0 0.0
        %2560 = vmatpush2.msra.mxu0 0.0
        %2561 = vmatprep.subr.mxu0 0.0
        %2562 = vmatpush2.msra.mxu0 0.0
        %2563 = vmatprep.subr.mxu0 0.0
        %2564 = vmatpush2.msra.mxu0 0.0
        %2565 = vmatprep.subr.mxu0 0.0
        %2566 = vmatpush2.msra.mxu0 0.0
        %2567 = vmatprep.subr.mxu0 0.0
        %2568 = vmatpush2.msra.mxu0 0.0
        %2569 = vmatprep.subr.mxu0 0.0
        %2570 = vmatpush2.msra.mxu0 0.0
        %2571 = vmatprep.subr.mxu0 0.0
        %2572 = vmatpush2.msra.mxu0 0.0
        %2573 = vmatprep.subr.mxu0 0.0
        %2574 = vmatpush2.msra.mxu0 0.0
        %2575 = vmatprep.subr.mxu0 0.0
        %2576 = vmatpush2.msra.mxu0 0.0
        %2577 = vmatprep.subr.mxu0 0.0
        %2578 = vmatpush2.msra.mxu0 0.0
        %2579 = vmatprep.subr.mxu0 0.0
        %2580 = vmatpush2.msra.mxu0 0.0
        %2581 = vmatprep.mubr.f32.mxu0 0.0
        %v2582 = vand.u32 %v1892, 4294901760
        %2583 = vmatmul.mubr.f32.gmra.mxu0 %v2582
        %v2584 = vpop.f32.mrf.mxu0
        %v2585 = vadd.f32 %v2492, %v2584
        %v2586 = vpop.f32.mrf.mxu0
        %2587 = vmatprep.mubr.f32.mxu0 0.0
        %v2588 = vand.u32 %v1893, 4294901760
        %2589 = vmatmul.mubr.f32.gmra.mxu0 %v2588
        %v2590 = vpop.f32.mrf.mxu0
        %v2591 = vadd.f32 %v2498, %v2590
        %v2592 = vpop.f32.mrf.mxu0
        %2593 = vdwg.mxu0
        %vm2594 = vcmp.ne.f32.partialorder %v2585, %v2585
        %vm2595 = vcmp.ne.f32.partialorder %v2591, %v2591
        %v2596 = vsel %vm2594, 0.0, %v2585
        %v2597 = vsel %vm2595, 0.0, %v2591
        %v2598 = vmax.f32 %v2596, -3.4028235e+38
        %v2599 = vmax.f32 %v2597, -3.4028235e+38
        %v2600 = vmin.f32 %v2598, 3.4028235e+38
        %v2601 = vmin.f32 %v2599, 3.4028235e+38
        %2602 = vst [vmem:[%s502] sm:$0xff] %v2600
        %2603 = vst [vmem:[%s502 + $0x8] sm:$0xff] %v2601
        %s2604 = sand.u32 %s358, 1
        %s2605 = scalar_lea.sflag [#allocation3], %s2604
        %s2606 = sand.u32 %s358, 1
        %s2607 = smul.addr %s2606, 16
        %s2608 = scalar_lea.vmem [#allocation5], %s2607
        // Predicated region
        $region85: #{adaptive_freq_denoise_block.1} parent=79 // pred_check
          %p2609 = pneg %p368
        $region86: #{adaptive_freq_denoise_block.1} parent=79 // pred_check_branch
          %2611 = sbr.rel (%p2609) target = $region88
        $region87: #{adaptive_freq_denoise_block.1} parent=79 // pred_region
          %s2612 = smul.u32 2, %s30
          %s2614 = ssub.s32 256, 256
          %2615 = vsyncadd %s2605, %s2614
          %s2616 = smul.addr %s2612, 128
          %s2617 = scalar_lea.hbm %s15, %s2616
          %s2618 = sshll.u32 %s2608, 4
          %s2619 = int_to_ptr.vmem [resolvable:$true] %s2618
          %2624 = dma.vmem_to_hbm [thread:$0]  %s2619, 256, %s2617, %s2605, 128, 128, 8
        $region88: #{adaptive_freq_denoise_block.1} parent=79 // pred_fallthru
          _
      $region80: #{adaptive_freq_denoise_block.1} parent=5 // pred_fallthru
        _
      %p2625 = scmp.le.s32.totalorder 2, %s25
      // Predicated region
      $region89: #{adaptive_freq_denoise_block.1} parent=5 // pred_check
        %p2626 = pneg %p2625
      $region90: #{adaptive_freq_denoise_block.1} parent=5 // pred_check_branch
        %2628 = sbr.rel (%p2626) target = $region92
      $region91: #{adaptive_freq_denoise_block.1} parent=5 // pred_region
        %s2629 = ssub.s32 %s25, 2
        // Predicated region
        $region93: #{adaptive_freq_denoise_block.1} parent=91 // pred_check
          %p2630 = pneg %p374
        $region94: #{adaptive_freq_denoise_block.1} parent=91 // pred_check_branch
          %2632 = sbr.rel (%p2630) target = $region96
        $region95: #{adaptive_freq_denoise_block.1} parent=91 // pred_region
          %s2633 = sand.u32 %s359, 1
          %s2634 = scalar_lea.sflag [#allocation3], %s2633
          %s2635 = sand.u32 %s359, 1
          %s2636 = smul.addr %s2635, 16
          %s2637 = scalar_lea.vmem [#allocation5], %s2636
          %2638 = dma.done %s2634, 256
        $region96: #{adaptive_freq_denoise_block.1} parent=91 // pred_fallthru
          _
      $region92: #{adaptive_freq_denoise_block.1} parent=5 // pred_fallthru
        _
    $region6: #{adaptive_freq_denoise_block.1} parent=1 // loop_footer
      %s29 = sadd.s32 1, %s25
    $region7: #{adaptive_freq_denoise_block.1} parent=1 // loop_footer_branch
      %24 = sbr.rel target = $region3
    $region8: #{adaptive_freq_denoise_block.1} parent=1 // loop_exit
      _
    %2639 = vsyncpa [#allocation3], 1
    %s2640 = scalar_lea.sflag [#allocation3], 1
    %2641 = vsyncpa %s2640, 1
    %2642 = vsyncpa [#allocation4], 1
    %s2643 = scalar_lea.sflag [#allocation4], 1
    %2644 = vsyncpa %s2643, 1

</llo_original>
